<compile_context>
chip_gen: v7x
topology: tpu7x:2x2x1
jax: 0.10.0
libtpu: 0.0.40
codegen_flags: <defaults>
</compile_context>

<pallas_src>
import jax
import jax.numpy as jnp
from jax.experimental import pallas as pl
from jax.experimental.pallas import tpu as pltpu

BN_EPS = 1e-5
LANES = 128


def _round_up(x, m):
    return (x + m - 1) // m * m


def _cdiv(a, b):
    return -(-a // b)


def _vmem_limits():
    """Returns (vmem_limit_bytes for the compiler, per-step tiling budget)."""
    cap = 64 * 1024 * 1024                      # conservative fallback (v7x per-TC)
    try:
        info = pltpu.get_tpu_info()
        cap = int(getattr(info, "vmem_capacity_bytes", cap))
    except Exception:
        pass
    # ~96 MiB on v5e/v6e (128 MiB physical), ~48 MiB on v7x (64 MiB per TC).
    limit = min(cap * 3 // 4, 112 * 1024 * 1024)
    budget = limit * 7 // 10                    # headroom for compiler scratch
    return limit, budget


def _choose_tile_h(H, W, C_in, c_pad, budget):
    """Largest even TH whose per-grid-step VMEM footprint fits `budget`.

    TH need not divide H (ragged tail blocks are padded + masked).  TH*W is
    kept a multiple of 16 (unless the image is a single block) so the
    lane-dense bf16 output block satisfies the (sublane, lane) constraint and
    the in-kernel (TH, W, C) -> (TH*W, C) reshape stays a pure relayout.
    """
    w2p = _round_up(W + 2, 16)                  # bf16 sublane padding in VMEM
    cip = _round_up(C_in, LANES)                # lane padding in VMEM

    def step_bytes(th):
        tm = th * W
        in_tile = th * w2p * cip * 2            # bf16 main input block
        halo = 2 * w2p * cip * 2                # bf16 2-row halo block
        wts = 9 * _round_up(C_in, 16) * c_pad * 2
        out_tile = tm * c_pad * 2               # bf16 output block (pass 2)
        acc = tm * c_pad * 4                    # f32 conv accumulator
        # double-buffered pipelined operands + acc + ~2 tile-sized temporaries
        return 2 * (in_tile + halo + wts + out_tile) + acc + 2 * max(in_tile, acc)

    th_cap = _round_up(H, 2)
    best = None
    for th in range(2, th_cap + 1, 2):
        layout_ok = (th * W) % 16 == 0 or _cdiv(H, th) == 1
        if layout_ok and step_bytes(th) <= budget \
                and th * W * c_pad * 4 <= 16 * 1024 * 1024:
            best = th
    if best is None:                            # huge image: smallest legal tile
        for th in range(2, th_cap + 1, 2):
            if (th * W) % 16 == 0 or _cdiv(H, th) == 1:
                best = th
                break
        best = best if best is not None else th_cap
    return best


def _make_conv_tile(TH, TM, W, C_in, C_pad):
    """Computes one conv tile [TM, C_pad] (f32) from main + halo input blocks."""

    def conv_tile(xm_ref, xh_ref, w_ref):
        # xm_ref: [1, TH, W+2, C_in] bf16   main rows of the padded image
        # xh_ref: [1, 2,  W+2, C_in] bf16   bottom-halo rows
        # w_ref : [3, 3, C_in, C_pad] bf16
        xt = jnp.concatenate([xm_ref[0], xh_ref[0]], axis=0)   # [TH+2, W+2, C_in]
        acc = jnp.zeros((TM, C_pad), jnp.float32)
        for ki in range(3):                     # static unroll: 9 MXU matmuls
            xk = xt[ki:ki + TH]                 # [TH, W+2, C_in]
            for kj in range(3):
                win = xk[:, kj:kj + W, :].reshape(TM, C_in)
                acc = acc + jnp.dot(win, w_ref[ki, kj],
                                    preferred_element_type=jnp.float32)
        # TODO(synk): when 3*C_in approaches the MXU systolic depth, fuse the
        # kj (or ki) windows along K in VMEM to cut MXU passes.
        return acc

    return conv_tile


def _make_stats_kernel(conv_tile, TH, TM, W, H, C_pad, ragged):
    def kernel(xm_ref, xh_ref, w_ref, sum_ref, sq_ref):
        y = conv_tile(xm_ref, xh_ref, w_ref)
        if ragged:  # mask pixels of the padded tail block that lie past H
            hb = pl.program_id(1)
            row = jax.lax.broadcasted_iota(jnp.int32, (TH, W), 0).reshape(TM, 1)
            y = jnp.where(hb * TH + row < H, y, 0.0)
        sum_ref[...] = jnp.sum(y, axis=0).reshape(1, 1, 1, C_pad)
        sq_ref[...] = jnp.sum(y * y, axis=0).reshape(1, 1, 1, C_pad)
        # TODO(synk): the channel sum could be moved onto the MXU
        # (ones[1,TM] @ y) to offload the VPU reduction.

    return kernel


def _make_bn_relu_kernel(conv_tile):
    def kernel(xm_ref, xh_ref, w_ref, scale_ref, shift_ref, o_ref):
        y = conv_tile(xm_ref, xh_ref, w_ref)
        out = jnp.maximum(y * scale_ref[...] + shift_ref[...], 0.0)
        o_ref[...] = out.astype(o_ref.dtype)[None]

    return kernel


def convlayer_forward(x, conv_w, conv_b=None, bn_gamma=None, bn_beta=None):
    """x: [N, C_in, H, W] f32 (NCHW). conv_w: [C_out, C_in, 3, 3].

    conv_b is accepted for API parity but unused: a per-channel constant added
    before train-mode BatchNorm cancels exactly in the normalized output.
    Returns [N, C_out, H, W] f32.
    """
    N, C_in, H, W = x.shape
    C_out = conv_w.shape[0]
    if bn_gamma is None:
        bn_gamma = jnp.ones((C_out,), jnp.float32)
    if bn_beta is None:
        bn_beta = jnp.zeros((C_out,), jnp.float32)

    C_pad = _round_up(C_out, LANES)             # lane-dense matmul cols / stores
    vmem_limit, budget = _vmem_limits()
    TH = _choose_tile_h(H, W, C_in, C_pad, budget)
    nHB = _cdiv(H, TH)
    Hp = nHB * TH
    TM = TH * W
    W2 = W + 2
    ragged = Hp != H
    M = N * H * W

    # ---- glue: the only HBM materialization (NHWC reflect-pad, bf16) -------
    x_nhwc = jnp.transpose(x, (0, 2, 3, 1))
    x_pad = jnp.pad(x_nhwc, ((0, 0), (1, 1), (1, 1), (0, 0)), mode="reflect")
    x_pad = x_pad.astype(jnp.bfloat16)                        # [N, H+2, W+2, C_in]
    if ragged:  # extra rows are never read by valid output pixels
        x_pad = jnp.pad(x_pad, ((0, 0), (0, Hp - H), (0, 0), (0, 0)))

    # weights as [ki, kj, ci, co], co lane-padded to C_pad, bf16 for the MXU
    w_t = jnp.transpose(conv_w, (2, 3, 1, 0))
    w_t = jnp.pad(w_t, ((0, 0), (0, 0), (0, 0), (0, C_pad - C_out)))
    w_t = w_t.astype(jnp.bfloat16)

    conv_tile = _make_conv_tile(TH, TM, W, C_in, C_pad)

    grid = (N, nHB)
    # main rows [hb*TH, hb*TH+TH) and halo rows [(hb+1)*TH, (hb+1)*TH+2) of
    # the SAME padded array (passed twice) -> no halo-duplicated HBM copy.
    xm_spec = pl.BlockSpec((1, TH, W2, C_in), lambda n, hb: (n, hb, 0, 0))
    xh_spec = pl.BlockSpec((1, 2, W2, C_in),
                           lambda n, hb: (n, (hb + 1) * (TH // 2), 0, 0))
    w_spec = pl.BlockSpec((3, 3, C_in, C_pad), lambda n, hb: (0, 0, 0, 0))
    stat_spec = pl.BlockSpec((1, 1, 1, C_pad), lambda n, hb: (n, hb, 0, 0))
    cparams = pltpu.CompilerParams(
        dimension_semantics=("parallel", "parallel"),
        vmem_limit_bytes=vmem_limit)

    # ---- pass 1: per-block per-channel sum / sum-of-squares (f32) ----------
    sums, sqs = pl.pallas_call(
        _make_stats_kernel(conv_tile, TH, TM, W, H, C_pad, ragged),
        grid=grid,
        in_specs=[xm_spec, xh_spec, w_spec],
        out_specs=(stat_spec, stat_spec),
        out_shape=(jax.ShapeDtypeStruct((N, nHB, 1, C_pad), jnp.float32),
                   jax.ShapeDtypeStruct((N, nHB, 1, C_pad), jnp.float32)),
        compiler_params=cparams,
    )(x_pad, x_pad, w_t)

    # ---- glue: finalize BatchNorm statistics (tiny, per-channel, f32) ------
    ch_sum = jnp.sum(sums, axis=(0, 1, 2))
    ch_sq = jnp.sum(sqs, axis=(0, 1, 2))
    mean = ch_sum / M
    var = jnp.maximum(ch_sq / M - mean * mean, 0.0)   # biased var (PyTorch norm)
    inv = jax.lax.rsqrt(var + BN_EPS)
    gamma_p = jnp.pad(bn_gamma.astype(jnp.float32), (0, C_pad - C_out))
    beta_p = jnp.pad(bn_beta.astype(jnp.float32), (0, C_pad - C_out))
    scale = (gamma_p * inv).reshape(1, C_pad)
    shift = (beta_p - mean * gamma_p * inv).reshape(1, C_pad)
    # TODO(synk): PyTorch BatchNorm2d also updates running_mean/running_var in
    # train mode; this functional forward does not carry that buffer state.

    # ---- pass 2: recompute conv tile, fused normalize + ReLU, bf16 store ---
    # TODO(synk): add a store-y elementwise pass-2 variant for the
    # C_pad <= ~3*C_in regime (recompute is cheaper when 3*C_in << C_pad).
    out_flat = pl.pallas_call(
        _make_bn_relu_kernel(conv_tile),
        grid=grid,
        in_specs=[xm_spec, xh_spec, w_spec,
                  pl.BlockSpec((1, C_pad), lambda n, hb: (0, 0)),
                  pl.BlockSpec((1, C_pad), lambda n, hb: (0, 0))],
        out_specs=pl.BlockSpec((1, TM, C_pad), lambda n, hb: (n, hb, 0)),
        out_shape=jax.ShapeDtypeStruct((N, nHB * TM, C_pad), jnp.bfloat16),
        compiler_params=cparams,
    )(x_pad, x_pad, w_t, scale, shift)

    # back to NCHW f32 (module contract); drop lane padding / ragged rows first
    out = out_flat[:, :, :C_out].reshape(N, Hp, W, C_out)[:, :H]
    return out.transpose(0, 3, 1, 2).astype(jnp.float32)


def _reference(x, conv_w, bn_gamma, bn_beta):
    """Pure-JAX reference with the same bf16 conv operands / f32 accumulation."""
    N, C_in, H, W = x.shape
    C_out = conv_w.shape[0]
    xn = jnp.transpose(x, (0, 2, 3, 1))
    xp = jnp.pad(xn, ((0, 0), (1, 1), (1, 1), (0, 0)), mode="reflect")
    xp = xp.astype(jnp.bfloat16)
    w = jnp.transpose(conv_w, (2, 3, 1, 0)).astype(jnp.bfloat16)  # [ki,kj,ci,co]
    y = jnp.zeros((N, H, W, C_out), jnp.float32)
    for ki in range(3):
        for kj in range(3):
            y = y + jnp.einsum("nhwc,co->nhwo",
                               xp[:, ki:ki + H, kj:kj + W, :], w[ki, kj],
                               preferred_element_type=jnp.float32)
    mean = jnp.mean(y, axis=(0, 1, 2))
    var = jnp.mean((y - mean) ** 2, axis=(0, 1, 2))
    out = (y - mean) * jax.lax.rsqrt(var + BN_EPS) * bn_gamma + bn_beta
    out = jnp.maximum(out, 0.0)
    return jnp.transpose(out, (0, 3, 1, 2))


if __name__ == "__main__":
    key = jax.random.PRNGKey(0)
    k_x, k_w, k_b = jax.random.split(key, 3)

    N, C_in, H, W = 2, 4, 16, 16
    C_out = 8

    x = jax.random.normal(k_x, (N, C_in, H, W), dtype=jnp.float32)

    # Deterministic parameter init (matches PyTorch shapes; synthetic values).
    fan_in = C_in * 3 * 3
    bound = 1.0 / (fan_in ** 0.5)
    conv_w = jax.random.uniform(k_w, (C_out, C_in, 3, 3),
                                minval=-bound, maxval=bound, dtype=jnp.float32)
    conv_b = jax.random.uniform(k_b, (C_out,),
                                minval=-bound, maxval=bound, dtype=jnp.float32)
    bn_gamma = jnp.ones((C_out,), dtype=jnp.float32)
    bn_beta = jnp.zeros((C_out,), dtype=jnp.float32)

    out = jax.jit(convlayer_forward)(x, conv_w, conv_b, bn_gamma, bn_beta)
    out = jax.block_until_ready(out)
    assert out.shape == (N, C_out, H, W)

    ref = _reference(x, conv_w, bn_gamma, bn_beta)
    max_err = float(jnp.max(jnp.abs(out - ref)))
    # bf16 output store adds up to ~0.2% relative error on top of the bf16
    # conv operands used identically in kernel and reference.
    assert jnp.allclose(out, ref, atol=1e-2, rtol=1e-2), max_err
    print("KERNEL_OK")
</pallas_src>

<mosaic_0001>
module attributes {stable_mosaic.version = 11 : i64} {
  func.func @kernel(%arg0: i32, %arg1: i32, %arg2: memref<1x16x18x4xbf16, #tpu.memory_space<vmem>>, %arg3: memref<1x2x18x4xbf16, #tpu.memory_space<vmem>>, %arg4: memref<3x3x4x128xbf16, #tpu.memory_space<vmem>>, %arg5: memref<1x1x1x128xf32, #tpu.memory_space<vmem>>, %arg6: memref<1x1x1x128xf32, #tpu.memory_space<vmem>>) attributes {dimension_semantics = [#tpu.dimension_semantics<parallel>, #tpu.dimension_semantics<parallel>], iteration_bounds = array<i64: 2, 1>, scalar_prefetch = 0 : i64, scratch_operands = 0 : i64, tpu.core_type = #tpu.core_type<tc>, window_params = [{transform_indices = @transform_0, window_bounds = array<i64: 1, 16, 18, 4>}, {transform_indices = @transform_1, window_bounds = array<i64: 1, 2, 18, 4>}, {pipeline_mode = #tpu.pipeline_mode<synchronous>, transform_indices = @transform_2, window_bounds = array<i64: 3, 3, 4, 128>}, {transform_indices = @transform_3, window_bounds = array<i64: 1, 1, 1, 128>}, {transform_indices = @transform_4, window_bounds = array<i64: 1, 1, 1, 128>}]} {
    %c0 = arith.constant 0 : index
    %c0_0 = arith.constant 0 : index
    %c0_1 = arith.constant 0 : index
    %c0_2 = arith.constant 0 : index
    %0 = vector.load %arg2[%c0, %c0_0, %c0_1, %c0_2] : memref<1x16x18x4xbf16, #tpu.memory_space<vmem>>, vector<1x16x18x4xbf16>
    %1 = vector.shape_cast %0 : vector<1x16x18x4xbf16> to vector<16x18x4xbf16>
    %c0_3 = arith.constant 0 : index
    %c0_4 = arith.constant 0 : index
    %c0_5 = arith.constant 0 : index
    %c0_6 = arith.constant 0 : index
    %2 = vector.load %arg3[%c0_3, %c0_4, %c0_5, %c0_6] : memref<1x2x18x4xbf16, #tpu.memory_space<vmem>>, vector<1x2x18x4xbf16>
    %3 = vector.shape_cast %2 : vector<1x2x18x4xbf16> to vector<2x18x4xbf16>
    %4 = tpu.concatenate %1, %3 in 0 : vector<16x18x4xbf16>, vector<2x18x4xbf16> -> vector<18x18x4xbf16>
    %cst = arith.constant 0.000000e+00 : f32
    %5 = vector.broadcast %cst : f32 to vector<256x128xf32>
    %6 = vector.extract_strided_slice %4 {offsets = [0, 0, 0], sizes = [16, 18, 4], strides = [1, 1, 1]} : vector<18x18x4xbf16> to vector<16x18x4xbf16>
    %7 = vector.extract_strided_slice %6 {offsets = [0, 0, 0], sizes = [16, 16, 4], strides = [1, 1, 1]} : vector<16x18x4xbf16> to vector<16x16x4xbf16>
    %8 = vector.shape_cast %7 : vector<16x16x4xbf16> to vector<256x4xbf16>
    %c0_7 = arith.constant 0 : index
    %c0_8 = arith.constant 0 : index
    %c0_9 = arith.constant 0 : index
    %c0_10 = arith.constant 0 : index
    %9 = vector.load %arg4[%c0_7, %c0_8, %c0_9, %c0_10] : memref<3x3x4x128xbf16, #tpu.memory_space<vmem>>, vector<1x1x4x128xbf16>
    %10 = vector.shape_cast %9 : vector<1x1x4x128xbf16> to vector<4x128xbf16>
    %cst_11 = arith.constant dense<0.000000e+00> : vector<256x128xf32>
    %11 = tpu.matmul %8, %10, %cst_11 {dimension_numbers = #tpu.dot_dimension_numbers<[1], [0], [0], [1], [0, 0, 1, 1], [], []>} : vector<256x4xbf16>, vector<4x128xbf16>, vector<256x128xf32> -> vector<256x128xf32>
    %12 = arith.addf %5, %11 : vector<256x128xf32>
    %13 = vector.extract_strided_slice %6 {offsets = [0, 1, 0], sizes = [16, 16, 4], strides = [1, 1, 1]} : vector<16x18x4xbf16> to vector<16x16x4xbf16>
    %14 = vector.shape_cast %13 : vector<16x16x4xbf16> to vector<256x4xbf16>
    %c0_12 = arith.constant 0 : index
    %c1 = arith.constant 1 : index
    %c0_13 = arith.constant 0 : index
    %c0_14 = arith.constant 0 : index
    %15 = vector.load %arg4[%c0_12, %c1, %c0_13, %c0_14] : memref<3x3x4x128xbf16, #tpu.memory_space<vmem>>, vector<1x1x4x128xbf16>
    %16 = vector.shape_cast %15 : vector<1x1x4x128xbf16> to vector<4x128xbf16>
    %cst_15 = arith.constant dense<0.000000e+00> : vector<256x128xf32>
    %17 = tpu.matmul %14, %16, %cst_15 {dimension_numbers = #tpu.dot_dimension_numbers<[1], [0], [0], [1], [0, 0, 1, 1], [], []>} : vector<256x4xbf16>, vector<4x128xbf16>, vector<256x128xf32> -> vector<256x128xf32>
    %18 = arith.addf %12, %17 : vector<256x128xf32>
    %19 = vector.extract_strided_slice %6 {offsets = [0, 2, 0], sizes = [16, 16, 4], strides = [1, 1, 1]} : vector<16x18x4xbf16> to vector<16x16x4xbf16>
    %20 = vector.shape_cast %19 : vector<16x16x4xbf16> to vector<256x4xbf16>
    %c0_16 = arith.constant 0 : index
    %c2 = arith.constant 2 : index
    %c0_17 = arith.constant 0 : index
    %c0_18 = arith.constant 0 : index
    %21 = vector.load %arg4[%c0_16, %c2, %c0_17, %c0_18] : memref<3x3x4x128xbf16, #tpu.memory_space<vmem>>, vector<1x1x4x128xbf16>
    %22 = vector.shape_cast %21 : vector<1x1x4x128xbf16> to vector<4x128xbf16>
    %cst_19 = arith.constant dense<0.000000e+00> : vector<256x128xf32>
    %23 = tpu.matmul %20, %22, %cst_19 {dimension_numbers = #tpu.dot_dimension_numbers<[1], [0], [0], [1], [0, 0, 1, 1], [], []>} : vector<256x4xbf16>, vector<4x128xbf16>, vector<256x128xf32> -> vector<256x128xf32>
    %24 = arith.addf %18, %23 : vector<256x128xf32>
    %25 = vector.extract_strided_slice %4 {offsets = [1, 0, 0], sizes = [16, 18, 4], strides = [1, 1, 1]} : vector<18x18x4xbf16> to vector<16x18x4xbf16>
    %26 = vector.extract_strided_slice %25 {offsets = [0, 0, 0], sizes = [16, 16, 4], strides = [1, 1, 1]} : vector<16x18x4xbf16> to vector<16x16x4xbf16>
    %27 = vector.shape_cast %26 : vector<16x16x4xbf16> to vector<256x4xbf16>
    %c1_20 = arith.constant 1 : index
    %c0_21 = arith.constant 0 : index
    %c0_22 = arith.constant 0 : index
    %c0_23 = arith.constant 0 : index
    %28 = vector.load %arg4[%c1_20, %c0_21, %c0_22, %c0_23] : memref<3x3x4x128xbf16, #tpu.memory_space<vmem>>, vector<1x1x4x128xbf16>
    %29 = vector.shape_cast %28 : vector<1x1x4x128xbf16> to vector<4x128xbf16>
    %cst_24 = arith.constant dense<0.000000e+00> : vector<256x128xf32>
    %30 = tpu.matmul %27, %29, %cst_24 {dimension_numbers = #tpu.dot_dimension_numbers<[1], [0], [0], [1], [0, 0, 1, 1], [], []>} : vector<256x4xbf16>, vector<4x128xbf16>, vector<256x128xf32> -> vector<256x128xf32>
    %31 = arith.addf %24, %30 : vector<256x128xf32>
    %32 = vector.extract_strided_slice %25 {offsets = [0, 1, 0], sizes = [16, 16, 4], strides = [1, 1, 1]} : vector<16x18x4xbf16> to vector<16x16x4xbf16>
    %33 = vector.shape_cast %32 : vector<16x16x4xbf16> to vector<256x4xbf16>
    %c1_25 = arith.constant 1 : index
    %c1_26 = arith.constant 1 : index
    %c0_27 = arith.constant 0 : index
    %c0_28 = arith.constant 0 : index
    %34 = vector.load %arg4[%c1_25, %c1_26, %c0_27, %c0_28] : memref<3x3x4x128xbf16, #tpu.memory_space<vmem>>, vector<1x1x4x128xbf16>
    %35 = vector.shape_cast %34 : vector<1x1x4x128xbf16> to vector<4x128xbf16>
    %cst_29 = arith.constant dense<0.000000e+00> : vector<256x128xf32>
    %36 = tpu.matmul %33, %35, %cst_29 {dimension_numbers = #tpu.dot_dimension_numbers<[1], [0], [0], [1], [0, 0, 1, 1], [], []>} : vector<256x4xbf16>, vector<4x128xbf16>, vector<256x128xf32> -> vector<256x128xf32>
    %37 = arith.addf %31, %36 : vector<256x128xf32>
    %38 = vector.extract_strided_slice %25 {offsets = [0, 2, 0], sizes = [16, 16, 4], strides = [1, 1, 1]} : vector<16x18x4xbf16> to vector<16x16x4xbf16>
    %39 = vector.shape_cast %38 : vector<16x16x4xbf16> to vector<256x4xbf16>
    %c1_30 = arith.constant 1 : index
    %c2_31 = arith.constant 2 : index
    %c0_32 = arith.constant 0 : index
    %c0_33 = arith.constant 0 : index
    %40 = vector.load %arg4[%c1_30, %c2_31, %c0_32, %c0_33] : memref<3x3x4x128xbf16, #tpu.memory_space<vmem>>, vector<1x1x4x128xbf16>
    %41 = vector.shape_cast %40 : vector<1x1x4x128xbf16> to vector<4x128xbf16>
    %cst_34 = arith.constant dense<0.000000e+00> : vector<256x128xf32>
    %42 = tpu.matmul %39, %41, %cst_34 {dimension_numbers = #tpu.dot_dimension_numbers<[1], [0], [0], [1], [0, 0, 1, 1], [], []>} : vector<256x4xbf16>, vector<4x128xbf16>, vector<256x128xf32> -> vector<256x128xf32>
    %43 = arith.addf %37, %42 : vector<256x128xf32>
    %44 = vector.extract_strided_slice %4 {offsets = [2, 0, 0], sizes = [16, 18, 4], strides = [1, 1, 1]} : vector<18x18x4xbf16> to vector<16x18x4xbf16>
    %45 = vector.extract_strided_slice %44 {offsets = [0, 0, 0], sizes = [16, 16, 4], strides = [1, 1, 1]} : vector<16x18x4xbf16> to vector<16x16x4xbf16>
    %46 = vector.shape_cast %45 : vector<16x16x4xbf16> to vector<256x4xbf16>
    %c2_35 = arith.constant 2 : index
    %c0_36 = arith.constant 0 : index
    %c0_37 = arith.constant 0 : index
    %c0_38 = arith.constant 0 : index
    %47 = vector.load %arg4[%c2_35, %c0_36, %c0_37, %c0_38] : memref<3x3x4x128xbf16, #tpu.memory_space<vmem>>, vector<1x1x4x128xbf16>
    %48 = vector.shape_cast %47 : vector<1x1x4x128xbf16> to vector<4x128xbf16>
    %cst_39 = arith.constant dense<0.000000e+00> : vector<256x128xf32>
    %49 = tpu.matmul %46, %48, %cst_39 {dimension_numbers = #tpu.dot_dimension_numbers<[1], [0], [0], [1], [0, 0, 1, 1], [], []>} : vector<256x4xbf16>, vector<4x128xbf16>, vector<256x128xf32> -> vector<256x128xf32>
    %50 = arith.addf %43, %49 : vector<256x128xf32>
    %51 = vector.extract_strided_slice %44 {offsets = [0, 1, 0], sizes = [16, 16, 4], strides = [1, 1, 1]} : vector<16x18x4xbf16> to vector<16x16x4xbf16>
    %52 = vector.shape_cast %51 : vector<16x16x4xbf16> to vector<256x4xbf16>
    %c2_40 = arith.constant 2 : index
    %c1_41 = arith.constant 1 : index
    %c0_42 = arith.constant 0 : index
    %c0_43 = arith.constant 0 : index
    %53 = vector.load %arg4[%c2_40, %c1_41, %c0_42, %c0_43] : memref<3x3x4x128xbf16, #tpu.memory_space<vmem>>, vector<1x1x4x128xbf16>
    %54 = vector.shape_cast %53 : vector<1x1x4x128xbf16> to vector<4x128xbf16>
    %cst_44 = arith.constant dense<0.000000e+00> : vector<256x128xf32>
    %55 = tpu.matmul %52, %54, %cst_44 {dimension_numbers = #tpu.dot_dimension_numbers<[1], [0], [0], [1], [0, 0, 1, 1], [], []>} : vector<256x4xbf16>, vector<4x128xbf16>, vector<256x128xf32> -> vector<256x128xf32>
    %56 = arith.addf %50, %55 : vector<256x128xf32>
    %57 = vector.extract_strided_slice %44 {offsets = [0, 2, 0], sizes = [16, 16, 4], strides = [1, 1, 1]} : vector<16x18x4xbf16> to vector<16x16x4xbf16>
    %58 = vector.shape_cast %57 : vector<16x16x4xbf16> to vector<256x4xbf16>
    %c2_45 = arith.constant 2 : index
    %c2_46 = arith.constant 2 : index
    %c0_47 = arith.constant 0 : index
    %c0_48 = arith.constant 0 : index
    %59 = vector.load %arg4[%c2_45, %c2_46, %c0_47, %c0_48] : memref<3x3x4x128xbf16, #tpu.memory_space<vmem>>, vector<1x1x4x128xbf16>
    %60 = vector.shape_cast %59 : vector<1x1x4x128xbf16> to vector<4x128xbf16>
    %cst_49 = arith.constant dense<0.000000e+00> : vector<256x128xf32>
    %61 = tpu.matmul %58, %60, %cst_49 {dimension_numbers = #tpu.dot_dimension_numbers<[1], [0], [0], [1], [0, 0, 1, 1], [], []>} : vector<256x4xbf16>, vector<4x128xbf16>, vector<256x128xf32> -> vector<256x128xf32>
    %62 = arith.addf %56, %61 : vector<256x128xf32>
    %cst_50 = arith.constant dense<0.000000e+00> : vector<128xf32>
    %63 = vector.multi_reduction <add>, %62, %cst_50 [0] : vector<256x128xf32> to vector<128xf32>
    %64 = vector.shape_cast %63 : vector<128xf32> to vector<1x1x1x128xf32>
    %c0_51 = arith.constant 0 : index
    %c0_52 = arith.constant 0 : index
    %c0_53 = arith.constant 0 : index
    %c0_54 = arith.constant 0 : index
    %65 = vector.load %arg5[%c0_51, %c0_52, %c0_53, %c0_54] : memref<1x1x1x128xf32, #tpu.memory_space<vmem>>, vector<1x1x1x128xf32>
    tpu.vector_store %arg5[%c0_51, %c0_52, %c0_53, %c0_54], %64 {strides = array<i32>} : memref<1x1x1x128xf32, #tpu.memory_space<vmem>>, vector<1x1x1x128xf32>,
    %66 = arith.mulf %62, %62 : vector<256x128xf32>
    %cst_55 = arith.constant dense<0.000000e+00> : vector<128xf32>
    %67 = vector.multi_reduction <add>, %66, %cst_55 [0] : vector<256x128xf32> to vector<128xf32>
    %68 = vector.shape_cast %67 : vector<128xf32> to vector<1x1x1x128xf32>
    %c0_56 = arith.constant 0 : index
    %c0_57 = arith.constant 0 : index
    %c0_58 = arith.constant 0 : index
    %c0_59 = arith.constant 0 : index
    %69 = vector.load %arg6[%c0_56, %c0_57, %c0_58, %c0_59] : memref<1x1x1x128xf32, #tpu.memory_space<vmem>>, vector<1x1x1x128xf32>
    tpu.vector_store %arg6[%c0_56, %c0_57, %c0_58, %c0_59], %68 {strides = array<i32>} : memref<1x1x1x128xf32, #tpu.memory_space<vmem>>, vector<1x1x1x128xf32>,
    return
  }
  func.func @transform_0(%arg0: i32, %arg1: i32) -> (i32, i32, i32, i32) {
    %c0_i32 = arith.constant 0 : i32
    %c0_i32_0 = arith.constant 0 : i32
    %c0_i32_1 = arith.constant 0 : i32
    return %arg0, %arg1, %c0_i32, %c0_i32_0 : i32, i32, i32, i32
  }
  func.func @transform_1(%arg0: i32, %arg1: i32) -> (i32, i32, i32, i32) {
    %c1_i32 = arith.constant 1 : i32
    %0 = arith.addi %arg1, %c1_i32 : i32
    %c8_i32 = arith.constant 8 : i32
    %1 = arith.muli %0, %c8_i32 : i32
    %c0_i32 = arith.constant 0 : i32
    %c0_i32_0 = arith.constant 0 : i32
    %c0_i32_1 = arith.constant 0 : i32
    return %arg0, %1, %c0_i32, %c0_i32_0 : i32, i32, i32, i32
  }
  func.func @transform_2(%arg0: i32, %arg1: i32) -> (i32, i32, i32, i32) {
    %c0_i32 = arith.constant 0 : i32
    %c0_i32_0 = arith.constant 0 : i32
    %c0_i32_1 = arith.constant 0 : i32
    %c0_i32_2 = arith.constant 0 : i32
    %c0_i32_3 = arith.constant 0 : i32
    return %c0_i32, %c0_i32_0, %c0_i32_1, %c0_i32_2 : i32, i32, i32, i32
  }
  func.func @transform_3(%arg0: i32, %arg1: i32) -> (i32, i32, i32, i32) {
    %c0_i32 = arith.constant 0 : i32
    %c0_i32_0 = arith.constant 0 : i32
    %c0_i32_1 = arith.constant 0 : i32
    return %arg0, %arg1, %c0_i32, %c0_i32_0 : i32, i32, i32, i32
  }
  func.func @transform_4(%arg0: i32, %arg1: i32) -> (i32, i32, i32, i32) {
    %c0_i32 = arith.constant 0 : i32
    %c0_i32_0 = arith.constant 0 : i32
    %c0_i32_1 = arith.constant 0 : i32
    return %arg0, %arg1, %c0_i32, %c0_i32_0 : i32, i32, i32, i32
  }
}

module attributes {stable_mosaic.version = 11 : i64} {
  func.func @kernel(%arg0: i32, %arg1: i32, %arg2: memref<1x16x18x4xbf16, #tpu.memory_space<vmem>>, %arg3: memref<1x2x18x4xbf16, #tpu.memory_space<vmem>>, %arg4: memref<3x3x4x128xbf16, #tpu.memory_space<vmem>>, %arg5: memref<1x128xf32, #tpu.memory_space<vmem>>, %arg6: memref<1x128xf32, #tpu.memory_space<vmem>>, %arg7: memref<1x256x128xbf16, #tpu.memory_space<vmem>>) attributes {dimension_semantics = [#tpu.dimension_semantics<parallel>, #tpu.dimension_semantics<parallel>], iteration_bounds = array<i64: 2, 1>, scalar_prefetch = 0 : i64, scratch_operands = 0 : i64, tpu.core_type = #tpu.core_type<tc>, window_params = [{transform_indices = @transform_0, window_bounds = array<i64: 1, 16, 18, 4>}, {transform_indices = @transform_1, window_bounds = array<i64: 1, 2, 18, 4>}, {pipeline_mode = #tpu.pipeline_mode<synchronous>, transform_indices = @transform_2, window_bounds = array<i64: 3, 3, 4, 128>}, {pipeline_mode = #tpu.pipeline_mode<synchronous>, transform_indices = @transform_3, window_bounds = array<i64: 1, 128>}, {pipeline_mode = #tpu.pipeline_mode<synchronous>, transform_indices = @transform_4, window_bounds = array<i64: 1, 128>}, {transform_indices = @transform_5, window_bounds = array<i64: 1, 256, 128>}]} {
    %c0 = arith.constant 0 : index
    %c0_0 = arith.constant 0 : index
    %c0_1 = arith.constant 0 : index
    %c0_2 = arith.constant 0 : index
    %0 = vector.load %arg2[%c0, %c0_0, %c0_1, %c0_2] : memref<1x16x18x4xbf16, #tpu.memory_space<vmem>>, vector<1x16x18x4xbf16>
    %1 = vector.shape_cast %0 : vector<1x16x18x4xbf16> to vector<16x18x4xbf16>
    %c0_3 = arith.constant 0 : index
    %c0_4 = arith.constant 0 : index
    %c0_5 = arith.constant 0 : index
    %c0_6 = arith.constant 0 : index
    %2 = vector.load %arg3[%c0_3, %c0_4, %c0_5, %c0_6] : memref<1x2x18x4xbf16, #tpu.memory_space<vmem>>, vector<1x2x18x4xbf16>
    %3 = vector.shape_cast %2 : vector<1x2x18x4xbf16> to vector<2x18x4xbf16>
    %4 = tpu.concatenate %1, %3 in 0 : vector<16x18x4xbf16>, vector<2x18x4xbf16> -> vector<18x18x4xbf16>
    %cst = arith.constant 0.000000e+00 : f32
    %5 = vector.broadcast %cst : f32 to vector<256x128xf32>
    %6 = vector.extract_strided_slice %4 {offsets = [0, 0, 0], sizes = [16, 18, 4], strides = [1, 1, 1]} : vector<18x18x4xbf16> to vector<16x18x4xbf16>
    %7 = vector.extract_strided_slice %6 {offsets = [0, 0, 0], sizes = [16, 16, 4], strides = [1, 1, 1]} : vector<16x18x4xbf16> to vector<16x16x4xbf16>
    %8 = vector.shape_cast %7 : vector<16x16x4xbf16> to vector<256x4xbf16>
    %c0_7 = arith.constant 0 : index
    %c0_8 = arith.constant 0 : index
    %c0_9 = arith.constant 0 : index
    %c0_10 = arith.constant 0 : index
    %9 = vector.load %arg4[%c0_7, %c0_8, %c0_9, %c0_10] : memref<3x3x4x128xbf16, #tpu.memory_space<vmem>>, vector<1x1x4x128xbf16>
    %10 = vector.shape_cast %9 : vector<1x1x4x128xbf16> to vector<4x128xbf16>
    %cst_11 = arith.constant dense<0.000000e+00> : vector<256x128xf32>
    %11 = tpu.matmul %8, %10, %cst_11 {dimension_numbers = #tpu.dot_dimension_numbers<[1], [0], [0], [1], [0, 0, 1, 1], [], []>} : vector<256x4xbf16>, vector<4x128xbf16>, vector<256x128xf32> -> vector<256x128xf32>
    %12 = arith.addf %5, %11 : vector<256x128xf32>
    %13 = vector.extract_strided_slice %6 {offsets = [0, 1, 0], sizes = [16, 16, 4], strides = [1, 1, 1]} : vector<16x18x4xbf16> to vector<16x16x4xbf16>
    %14 = vector.shape_cast %13 : vector<16x16x4xbf16> to vector<256x4xbf16>
    %c0_12 = arith.constant 0 : index
    %c1 = arith.constant 1 : index
    %c0_13 = arith.constant 0 : index
    %c0_14 = arith.constant 0 : index
    %15 = vector.load %arg4[%c0_12, %c1, %c0_13, %c0_14] : memref<3x3x4x128xbf16, #tpu.memory_space<vmem>>, vector<1x1x4x128xbf16>
    %16 = vector.shape_cast %15 : vector<1x1x4x128xbf16> to vector<4x128xbf16>
    %cst_15 = arith.constant dense<0.000000e+00> : vector<256x128xf32>
    %17 = tpu.matmul %14, %16, %cst_15 {dimension_numbers = #tpu.dot_dimension_numbers<[1], [0], [0], [1], [0, 0, 1, 1], [], []>} : vector<256x4xbf16>, vector<4x128xbf16>, vector<256x128xf32> -> vector<256x128xf32>
    %18 = arith.addf %12, %17 : vector<256x128xf32>
    %19 = vector.extract_strided_slice %6 {offsets = [0, 2, 0], sizes = [16, 16, 4], strides = [1, 1, 1]} : vector<16x18x4xbf16> to vector<16x16x4xbf16>
    %20 = vector.shape_cast %19 : vector<16x16x4xbf16> to vector<256x4xbf16>
    %c0_16 = arith.constant 0 : index
    %c2 = arith.constant 2 : index
    %c0_17 = arith.constant 0 : index
    %c0_18 = arith.constant 0 : index
    %21 = vector.load %arg4[%c0_16, %c2, %c0_17, %c0_18] : memref<3x3x4x128xbf16, #tpu.memory_space<vmem>>, vector<1x1x4x128xbf16>
    %22 = vector.shape_cast %21 : vector<1x1x4x128xbf16> to vector<4x128xbf16>
    %cst_19 = arith.constant dense<0.000000e+00> : vector<256x128xf32>
    %23 = tpu.matmul %20, %22, %cst_19 {dimension_numbers = #tpu.dot_dimension_numbers<[1], [0], [0], [1], [0, 0, 1, 1], [], []>} : vector<256x4xbf16>, vector<4x128xbf16>, vector<256x128xf32> -> vector<256x128xf32>
    %24 = arith.addf %18, %23 : vector<256x128xf32>
    %25 = vector.extract_strided_slice %4 {offsets = [1, 0, 0], sizes = [16, 18, 4], strides = [1, 1, 1]} : vector<18x18x4xbf16> to vector<16x18x4xbf16>
    %26 = vector.extract_strided_slice %25 {offsets = [0, 0, 0], sizes = [16, 16, 4], strides = [1, 1, 1]} : vector<16x18x4xbf16> to vector<16x16x4xbf16>
    %27 = vector.shape_cast %26 : vector<16x16x4xbf16> to vector<256x4xbf16>
    %c1_20 = arith.constant 1 : index
    %c0_21 = arith.constant 0 : index
    %c0_22 = arith.constant 0 : index
    %c0_23 = arith.constant 0 : index
    %28 = vector.load %arg4[%c1_20, %c0_21, %c0_22, %c0_23] : memref<3x3x4x128xbf16, #tpu.memory_space<vmem>>, vector<1x1x4x128xbf16>
    %29 = vector.shape_cast %28 : vector<1x1x4x128xbf16> to vector<4x128xbf16>
    %cst_24 = arith.constant dense<0.000000e+00> : vector<256x128xf32>
    %30 = tpu.matmul %27, %29, %cst_24 {dimension_numbers = #tpu.dot_dimension_numbers<[1], [0], [0], [1], [0, 0, 1, 1], [], []>} : vector<256x4xbf16>, vector<4x128xbf16>, vector<256x128xf32> -> vector<256x128xf32>
    %31 = arith.addf %24, %30 : vector<256x128xf32>
    %32 = vector.extract_strided_slice %25 {offsets = [0, 1, 0], sizes = [16, 16, 4], strides = [1, 1, 1]} : vector<16x18x4xbf16> to vector<16x16x4xbf16>
    %33 = vector.shape_cast %32 : vector<16x16x4xbf16> to vector<256x4xbf16>
    %c1_25 = arith.constant 1 : index
    %c1_26 = arith.constant 1 : index
    %c0_27 = arith.constant 0 : index
    %c0_28 = arith.constant 0 : index
    %34 = vector.load %arg4[%c1_25, %c1_26, %c0_27, %c0_28] : memref<3x3x4x128xbf16, #tpu.memory_space<vmem>>, vector<1x1x4x128xbf16>
    %35 = vector.shape_cast %34 : vector<1x1x4x128xbf16> to vector<4x128xbf16>
    %cst_29 = arith.constant dense<0.000000e+00> : vector<256x128xf32>
    %36 = tpu.matmul %33, %35, %cst_29 {dimension_numbers = #tpu.dot_dimension_numbers<[1], [0], [0], [1], [0, 0, 1, 1], [], []>} : vector<256x4xbf16>, vector<4x128xbf16>, vector<256x128xf32> -> vector<256x128xf32>
    %37 = arith.addf %31, %36 : vector<256x128xf32>
    %38 = vector.extract_strided_slice %25 {offsets = [0, 2, 0], sizes = [16, 16, 4], strides = [1, 1, 1]} : vector<16x18x4xbf16> to vector<16x16x4xbf16>
    %39 = vector.shape_cast %38 : vector<16x16x4xbf16> to vector<256x4xbf16>
    %c1_30 = arith.constant 1 : index
    %c2_31 = arith.constant 2 : index
    %c0_32 = arith.constant 0 : index
    %c0_33 = arith.constant 0 : index
    %40 = vector.load %arg4[%c1_30, %c2_31, %c0_32, %c0_33] : memref<3x3x4x128xbf16, #tpu.memory_space<vmem>>, vector<1x1x4x128xbf16>
    %41 = vector.shape_cast %40 : vector<1x1x4x128xbf16> to vector<4x128xbf16>
    %cst_34 = arith.constant dense<0.000000e+00> : vector<256x128xf32>
    %42 = tpu.matmul %39, %41, %cst_34 {dimension_numbers = #tpu.dot_dimension_numbers<[1], [0], [0], [1], [0, 0, 1, 1], [], []>} : vector<256x4xbf16>, vector<4x128xbf16>, vector<256x128xf32> -> vector<256x128xf32>
    %43 = arith.addf %37, %42 : vector<256x128xf32>
    %44 = vector.extract_strided_slice %4 {offsets = [2, 0, 0], sizes = [16, 18, 4], strides = [1, 1, 1]} : vector<18x18x4xbf16> to vector<16x18x4xbf16>
    %45 = vector.extract_strided_slice %44 {offsets = [0, 0, 0], sizes = [16, 16, 4], strides = [1, 1, 1]} : vector<16x18x4xbf16> to vector<16x16x4xbf16>
    %46 = vector.shape_cast %45 : vector<16x16x4xbf16> to vector<256x4xbf16>
    %c2_35 = arith.constant 2 : index
    %c0_36 = arith.constant 0 : index
    %c0_37 = arith.constant 0 : index
    %c0_38 = arith.constant 0 : index
    %47 = vector.load %arg4[%c2_35, %c0_36, %c0_37, %c0_38] : memref<3x3x4x128xbf16, #tpu.memory_space<vmem>>, vector<1x1x4x128xbf16>
    %48 = vector.shape_cast %47 : vector<1x1x4x128xbf16> to vector<4x128xbf16>
    %cst_39 = arith.constant dense<0.000000e+00> : vector<256x128xf32>
    %49 = tpu.matmul %46, %48, %cst_39 {dimension_numbers = #tpu.dot_dimension_numbers<[1], [0], [0], [1], [0, 0, 1, 1], [], []>} : vector<256x4xbf16>, vector<4x128xbf16>, vector<256x128xf32> -> vector<256x128xf32>
    %50 = arith.addf %43, %49 : vector<256x128xf32>
    %51 = vector.extract_strided_slice %44 {offsets = [0, 1, 0], sizes = [16, 16, 4], strides = [1, 1, 1]} : vector<16x18x4xbf16> to vector<16x16x4xbf16>
    %52 = vector.shape_cast %51 : vector<16x16x4xbf16> to vector<256x4xbf16>
    %c2_40 = arith.constant 2 : index
    %c1_41 = arith.constant 1 : index
    %c0_42 = arith.constant 0 : index
    %c0_43 = arith.constant 0 : index
    %53 = vector.load %arg4[%c2_40, %c1_41, %c0_42, %c0_43] : memref<3x3x4x128xbf16, #tpu.memory_space<vmem>>, vector<1x1x4x128xbf16>
    %54 = vector.shape_cast %53 : vector<1x1x4x128xbf16> to vector<4x128xbf16>
    %cst_44 = arith.constant dense<0.000000e+00> : vector<256x128xf32>
    %55 = tpu.matmul %52, %54, %cst_44 {dimension_numbers = #tpu.dot_dimension_numbers<[1], [0], [0], [1], [0, 0, 1, 1], [], []>} : vector<256x4xbf16>, vector<4x128xbf16>, vector<256x128xf32> -> vector<256x128xf32>
    %56 = arith.addf %50, %55 : vector<256x128xf32>
    %57 = vector.extract_strided_slice %44 {offsets = [0, 2, 0], sizes = [16, 16, 4], strides = [1, 1, 1]} : vector<16x18x4xbf16> to vector<16x16x4xbf16>
    %58 = vector.shape_cast %57 : vector<16x16x4xbf16> to vector<256x4xbf16>
    %c2_45 = arith.constant 2 : index
    %c2_46 = arith.constant 2 : index
    %c0_47 = arith.constant 0 : index
    %c0_48 = arith.constant 0 : index
    %59 = vector.load %arg4[%c2_45, %c2_46, %c0_47, %c0_48] : memref<3x3x4x128xbf16, #tpu.memory_space<vmem>>, vector<1x1x4x128xbf16>
    %60 = vector.shape_cast %59 : vector<1x1x4x128xbf16> to vector<4x128xbf16>
    %cst_49 = arith.constant dense<0.000000e+00> : vector<256x128xf32>
    %61 = tpu.matmul %58, %60, %cst_49 {dimension_numbers = #tpu.dot_dimension_numbers<[1], [0], [0], [1], [0, 0, 1, 1], [], []>} : vector<256x4xbf16>, vector<4x128xbf16>, vector<256x128xf32> -> vector<256x128xf32>
    %62 = arith.addf %56, %61 : vector<256x128xf32>
    %c0_50 = arith.constant 0 : index
    %c0_51 = arith.constant 0 : index
    %63 = vector.load %arg5[%c0_50, %c0_51] : memref<1x128xf32, #tpu.memory_space<vmem>>, vector<1x128xf32>
    %64 = vector.broadcast %63 : vector<1x128xf32> to vector<256x128xf32>
    %65 = arith.mulf %62, %64 : vector<256x128xf32>
    %c0_52 = arith.constant 0 : index
    %c0_53 = arith.constant 0 : index
    %66 = vector.load %arg6[%c0_52, %c0_53] : memref<1x128xf32, #tpu.memory_space<vmem>>, vector<1x128xf32>
    %67 = vector.broadcast %66 : vector<1x128xf32> to vector<256x128xf32>
    %68 = arith.addf %65, %67 : vector<256x128xf32>
    %cst_54 = arith.constant 0.000000e+00 : f32
    %69 = vector.broadcast %cst_54 : f32 to vector<256x128xf32>
    %70 = arith.maximumf %68, %69 : vector<256x128xf32>
    %71 = arith.truncf %70 : vector<256x128xf32> to vector<256x128xbf16>
    %72 = vector.shape_cast %71 : vector<256x128xbf16> to vector<1x256x128xbf16>
    %c0_55 = arith.constant 0 : index
    %c0_56 = arith.constant 0 : index
    %c0_57 = arith.constant 0 : index
    %73 = vector.load %arg7[%c0_55, %c0_56, %c0_57] : memref<1x256x128xbf16, #tpu.memory_space<vmem>>, vector<1x256x128xbf16>
    tpu.vector_store %arg7[%c0_55, %c0_56, %c0_57], %72 {strides = array<i32>} : memref<1x256x128xbf16, #tpu.memory_space<vmem>>, vector<1x256x128xbf16>,
    return
  }
  func.func @transform_0(%arg0: i32, %arg1: i32) -> (i32, i32, i32, i32) {
    %c0_i32 = arith.constant 0 : i32
    %c0_i32_0 = arith.constant 0 : i32
    %c0_i32_1 = arith.constant 0 : i32
    return %arg0, %arg1, %c0_i32, %c0_i32_0 : i32, i32, i32, i32
  }
  func.func @transform_1(%arg0: i32, %arg1: i32) -> (i32, i32, i32, i32) {
    %c1_i32 = arith.constant 1 : i32
    %0 = arith.addi %arg1, %c1_i32 : i32
    %c8_i32 = arith.constant 8 : i32
    %1 = arith.muli %0, %c8_i32 : i32
    %c0_i32 = arith.constant 0 : i32
    %c0_i32_0 = arith.constant 0 : i32
    %c0_i32_1 = arith.constant 0 : i32
    return %arg0, %1, %c0_i32, %c0_i32_0 : i32, i32, i32, i32
  }
  func.func @transform_2(%arg0: i32, %arg1: i32) -> (i32, i32, i32, i32) {
    %c0_i32 = arith.constant 0 : i32
    %c0_i32_0 = arith.constant 0 : i32
    %c0_i32_1 = arith.constant 0 : i32
    %c0_i32_2 = arith.constant 0 : i32
    %c0_i32_3 = arith.constant 0 : i32
    return %c0_i32, %c0_i32_0, %c0_i32_1, %c0_i32_2 : i32, i32, i32, i32
  }
  func.func @transform_3(%arg0: i32, %arg1: i32) -> (i32, i32) {
    %c0_i32 = arith.constant 0 : i32
    %c0_i32_0 = arith.constant 0 : i32
    %c0_i32_1 = arith.constant 0 : i32
    return %c0_i32, %c0_i32_0 : i32, i32
  }
  func.func @transform_4(%arg0: i32, %arg1: i32) -> (i32, i32) {
    %c0_i32 = arith.constant 0 : i32
    %c0_i32_0 = arith.constant 0 : i32
    %c0_i32_1 = arith.constant 0 : i32
    return %c0_i32, %c0_i32_0 : i32, i32
  }
  func.func @transform_5(%arg0: i32, %arg1: i32) -> (i32, i32, i32) {
    %c0_i32 = arith.constant 0 : i32
    %c0_i32_0 = arith.constant 0 : i32
    return %arg0, %arg1, %c0_i32 : i32, i32, i32
  }
}

</mosaic_0001>

<llo_original>
// kernel: convlayer_forward.2
$region0: #{convlayer_forward.2}
  #allocation0 [shape = 'u32[]', space=smem, size = 0x4, offset = 0x4, fixed_abs, tag = 'smem constant byte address 0x4 - core index']
  #allocation1 [shape = 'u32[144,128]{1,0:T(1,128)}', space=vmem, size = 0x12000, scoped, tag = 'internal scratch']
  %s0 = inlined_call_operand.vmem [shape: bf16[2,18,18,4], index: 0, kind: input, shape index: {}, may-alias: {0,1}]
  %s1 = inlined_call_operand.vmem [shape: bf16[2,18,18,4], index: 1, kind: input, shape index: {}, may-alias: {0,1}]
  %s2 = inlined_call_operand.vmem [shape: bf16[3,3,4,128], index: 2, kind: input, shape index: {}]
  %s3 = inlined_call_operand.vmem [shape: f32[2,1,1,128], index: 3, kind: output, shape index: {0}]
  %s4 = inlined_call_operand.vmem [shape: f32[2,1,1,128], index: 4, kind: output, shape index: {1}]
  %5 = xla_tuple %s3, %s4
  %s6 = sld [smem:[#allocation0]]
  $region53: #{convlayer_forward.2} parent=0
    _
  %s8 = ssub.s32 1, %s6
  %s9 = scalar_select 0, %s8, %s6
  loop: start=0, step=1, limit=4
  $region2: #{convlayer_forward.2} parent=0 // loop_pre_header
    _
  $region3: #{convlayer_forward.2} parent=0 // loop_header
    %s11 = sphi 0, %s15
    %p12 = scmp.ge.s32.totalorder %s11, 4
    %s18 = sphi 0, %s30
    %s19 = sphi 0, %s26
    %s20 = sphi 0, %s18
    %s21 = sphi 0, %s19
    %s22 = sphi 0, %s20
    %s23 = sphi 0, %s21
    %s35 = sphi 0, %s37
    %s38 = sphi 0, %s35
    %s39 = sphi 0, %s38
    %s55 = sphi 0, %s39
    %s67 = sphi 0, %s69
    %s70 = sphi 0, %s67
    %s71 = sphi 0, %s70
    %s87 = sphi 0, %s71
    %s91 = sphi 0, %s91
    %s93 = sphi 0, %s91
    %s94 = sphi 0, %s93
    %s108 = sphi 0, %s94
    %s116 = sphi 0, %s118
    %s119 = sphi 0, %s116
    %s120 = sphi 0, %s119
    %s136 = sphi 0, %s120
    %s144 = sphi 0, %s146
    %s147 = sphi 0, %s144
    %s148 = sphi 0, %s147
    %s164 = sphi 0, %s148
  $region4: #{convlayer_forward.2} parent=0 // loop_header_branch
    %14 = sbr.rel (%p12) target = $region8
  $region5: #{convlayer_forward.2} parent=0 // loop_body
    %s16 = ssub.s32 %s11, 1
    %s17 = ssub.s32 %s11, 2
    %s24 = sadd.s32 1, %s19
    %p25 = scmp.ge.s32.totalorder %s24, 1
    %s26 = scalar_select %p25, 0, %s24
    %s27 = sadd.s32 1, %s18
    %s28 = scalar_select %p25, %s27, %s18
    %p29 = scmp.ge.s32.totalorder %s28, 2
    %s30 = scalar_select %p29, 0, %s28
    %s31 = ssub.s32 %s18, %s30
    %s32 = ssub.s32 %s19, %s26
    %s33 = sor.u32 %s31, %s32
    %p34 = scmp.eq.s32.totalorder %s33, 0
    %s36 = sadd.s32 %s35, 1
    %s37 = scalar_select %p34, %s35, %s36
    %p40 = pneg %p34
    %p41 = scmp.eq.s32.totalorder %s11, 1
    %p42 = por %p40, %p41
    %p43 = scmp.ne.s32.totalorder %s35, %s38
    %p44 = scmp.eq.s32.totalorder %s11, 0
    %p45 = por %p43, %p44
    %p46 = scmp.ne.s32.totalorder %s35, %s38
    %p47 = scmp.eq.s32.totalorder %s16, 1
    %p48 = por %p46, %p47
    %p49 = scmp.ne.s32.totalorder %s38, %s39
    %p50 = scmp.eq.s32.totalorder %s16, 0
    %p51 = por %p49, %p50
    %p52 = scmp.ne.s32.totalorder %s38, %s39
    %p53 = scmp.eq.s32.totalorder %s17, 1
    %p54 = por %p52, %p53
    %p56 = scmp.ne.s32.totalorder %s39, %s55
    %p57 = scmp.eq.s32.totalorder %s17, 0
    %p58 = por %p56, %p57
    %s59 = sadd.s32 %s19, 1
    %s60 = smul.u32 %s59, 8
    %s61 = sadd.s32 %s26, 1
    %s62 = smul.u32 %s61, 8
    %s63 = ssub.s32 %s18, %s30
    %s64 = ssub.s32 %s60, %s62
    %s65 = sor.u32 %s63, %s64
    %p66 = scmp.eq.s32.totalorder %s65, 0
    %s68 = sadd.s32 %s67, 1
    %s69 = scalar_select %p66, %s67, %s68
    %p72 = pneg %p66
    %p73 = scmp.eq.s32.totalorder %s11, 1
    %p74 = por %p72, %p73
    %p75 = scmp.ne.s32.totalorder %s67, %s70
    %p76 = scmp.eq.s32.totalorder %s11, 0
    %p77 = por %p75, %p76
    %p78 = scmp.ne.s32.totalorder %s67, %s70
    %p79 = scmp.eq.s32.totalorder %s16, 1
    %p80 = por %p78, %p79
    %p81 = scmp.ne.s32.totalorder %s70, %s71
    %p82 = scmp.eq.s32.totalorder %s16, 0
    %p83 = por %p81, %p82
    %p84 = scmp.ne.s32.totalorder %s70, %s71
    %p85 = scmp.eq.s32.totalorder %s17, 1
    %p86 = por %p84, %p85
    %p88 = scmp.ne.s32.totalorder %s71, %s87
    %p89 = scmp.eq.s32.totalorder %s17, 0
    %p90 = por %p88, %p89
    %s92 = sadd.s32 %s91, 1
    %p95 = scmp.eq.s32.totalorder %s11, 1
    %p96 = scmp.ne.s32.totalorder %s91, %s93
    %p97 = scmp.eq.s32.totalorder %s11, 0
    %p98 = por %p96, %p97
    %p99 = scmp.ne.s32.totalorder %s91, %s93
    %p100 = scmp.eq.s32.totalorder %s16, 1
    %p101 = por %p99, %p100
    %p102 = scmp.ne.s32.totalorder %s93, %s94
    %p103 = scmp.eq.s32.totalorder %s16, 0
    %p104 = por %p102, %p103
    %p105 = scmp.ne.s32.totalorder %s93, %s94
    %p106 = scmp.eq.s32.totalorder %s17, 1
    %p107 = por %p105, %p106
    %p109 = scmp.ne.s32.totalorder %s94, %s108
    %p110 = scmp.eq.s32.totalorder %s17, 0
    %p111 = por %p109, %p110
    %s112 = ssub.s32 %s18, %s30
    %s113 = ssub.s32 %s19, %s26
    %s114 = sor.u32 %s112, %s113
    %p115 = scmp.eq.s32.totalorder %s114, 0
    %s117 = sadd.s32 %s116, 1
    %s118 = scalar_select %p115, %s116, %s117
    %p121 = pneg %p115
    %p122 = scmp.eq.s32.totalorder %s11, 1
    %p123 = por %p121, %p122
    %p124 = scmp.ne.s32.totalorder %s116, %s119
    %p125 = scmp.eq.s32.totalorder %s11, 0
    %p126 = por %p124, %p125
    %p127 = scmp.ne.s32.totalorder %s116, %s119
    %p128 = scmp.eq.s32.totalorder %s16, 1
    %p129 = por %p127, %p128
    %p130 = scmp.ne.s32.totalorder %s119, %s120
    %p131 = scmp.eq.s32.totalorder %s16, 0
    %p132 = por %p130, %p131
    %p133 = scmp.ne.s32.totalorder %s119, %s120
    %p134 = scmp.eq.s32.totalorder %s17, 1
    %p135 = por %p133, %p134
    %p137 = scmp.ne.s32.totalorder %s120, %s136
    %p138 = scmp.eq.s32.totalorder %s17, 0
    %p139 = por %p137, %p138
    %s140 = ssub.s32 %s18, %s30
    %s141 = ssub.s32 %s19, %s26
    %s142 = sor.u32 %s140, %s141
    %p143 = scmp.eq.s32.totalorder %s142, 0
    %s145 = sadd.s32 %s144, 1
    %s146 = scalar_select %p143, %s144, %s145
    %p149 = pneg %p143
    %p150 = scmp.eq.s32.totalorder %s11, 1
    %p151 = por %p149, %p150
    %p152 = scmp.ne.s32.totalorder %s144, %s147
    %p153 = scmp.eq.s32.totalorder %s11, 0
    %p154 = por %p152, %p153
    %p155 = scmp.ne.s32.totalorder %s144, %s147
    %p156 = scmp.eq.s32.totalorder %s16, 1
    %p157 = por %p155, %p156
    %p158 = scmp.ne.s32.totalorder %s147, %s148
    %p159 = scmp.eq.s32.totalorder %s16, 0
    %p160 = por %p158, %p159
    %p161 = scmp.ne.s32.totalorder %s147, %s148
    %p162 = scmp.eq.s32.totalorder %s17, 1
    %p163 = por %p161, %p162
    %p165 = scmp.ne.s32.totalorder %s148, %s164
    %p166 = scmp.eq.s32.totalorder %s17, 0
    %p167 = por %p165, %p166
    %p168 = scmp.le.s32.totalorder 1, %s11
    %p169 = scmp.lt.s32.totalorder %s11, 3
    %p170 = pnand %p168, %p169
    %p171 = pneg %p170
    // Predicated region
    $region9: #{convlayer_forward.2} parent=5 // pred_check
      _
    $region10: #{convlayer_forward.2} parent=5 // pred_check_branch
      %173 = sbr.rel (%p170) target = $region12
    $region11: #{convlayer_forward.2} parent=5 // pred_region
      %s174 = ssub.s32 %s11, 1
      // Predicated region
      $region13: #{convlayer_forward.2} parent=11 // pred_check
        %p175 = pneg %p104
      $region14: #{convlayer_forward.2} parent=11 // pred_check_branch
        %177 = sbr.rel (%p175) target = $region16
      $region15: #{convlayer_forward.2} parent=11 // pred_region
        _
      $region16: #{convlayer_forward.2} parent=11 // pred_fallthru
        _
    $region12: #{convlayer_forward.2} parent=5 // pred_fallthru
      _
    %p178 = scmp.lt.s32.totalorder %s11, 2
    // Predicated region
    $region17: #{convlayer_forward.2} parent=5 // pred_check
      %p179 = pneg %p178
    $region18: #{convlayer_forward.2} parent=5 // pred_check_branch
      %181 = sbr.rel (%p179) target = $region20
    $region19: #{convlayer_forward.2} parent=5 // pred_region
      // Predicated region
      $region21: #{convlayer_forward.2} parent=19 // pred_check
        %p182 = pneg %p45
      $region22: #{convlayer_forward.2} parent=19 // pred_check_branch
        %184 = sbr.rel (%p182) target = $region24
      $region23: #{convlayer_forward.2} parent=19 // pred_region
        %s185 = smul.u32 16, %s19
        %s186 = ssub.s32 18, %s185
        %p187 = scmp.lt.s32.totalorder %s186, 16
        %s188 = scalar_select %p187, %s186, 16
        %s189 = smul.u32 64, %s188
        %s190 = smul.u32 %s189, 3
        %p191 = scmp.lt.s32.totalorder %s18, 1
        %s192 = scalar_select %p191, %s18, 1
        %p193 = scmp.lt.s32.totalorder %s185, 17
        %s194 = scalar_select %p193, %s185, 17
        %s195 = smul.addr %s194, 3
        %s196 = smul.addr %s192, 54
        %s197 = sadd.s32 %s195, %s196
        %s198 = smul.addr %s197, 4
        %s199 = scalar_lea.vmem %s0, %s198
        %s200 = smul.u32 16, %s19
        %s201 = ssub.s32 18, %s200
        %p202 = scmp.lt.s32.totalorder %s201, 16
        %s203 = scalar_select %p202, %s201, 16
        %s204 = smul.u32 64, %s203
        %s205 = smul.u32 %s204, 3
      $region24: #{convlayer_forward.2} parent=19 // pred_fallthru
        _
      // Predicated region
      $region25: #{convlayer_forward.2} parent=19 // pred_check
        %p206 = pneg %p77
      $region26: #{convlayer_forward.2} parent=19 // pred_check_branch
        %208 = sbr.rel (%p206) target = $region28
      $region27: #{convlayer_forward.2} parent=19 // pred_region
        %s209 = sadd.s32 %s19, 1
        %s210 = smul.u32 %s209, 8
        %s211 = smul.u32 2, %s210
        %p212 = scmp.lt.s32.totalorder %s18, 1
        %s213 = scalar_select %p212, %s18, 1
        %p214 = scmp.lt.s32.totalorder %s211, 17
        %s215 = scalar_select %p214, %s211, 17
        %s216 = smul.addr %s215, 3
        %s217 = smul.addr %s213, 54
        %s218 = sadd.s32 %s216, %s217
        %s219 = smul.addr %s218, 4
        %s220 = scalar_lea.vmem %s1, %s219
        %s221 = sadd.s32 %s19, 1
        %s222 = smul.u32 %s221, 8
        %s223 = smul.u32 2, %s222
      $region28: #{convlayer_forward.2} parent=19 // pred_fallthru
        _
    $region20: #{convlayer_forward.2} parent=5 // pred_fallthru
      _
    %p224 = scmp.le.s32.totalorder 1, %s11
    %p225 = scmp.lt.s32.totalorder %s11, 3
    %p226 = pnand %p224, %p225
    %p227 = pneg %p226
    // Predicated region
    $region29: #{convlayer_forward.2} parent=5 // pred_check
      _
    $region30: #{convlayer_forward.2} parent=5 // pred_check_branch
      %229 = sbr.rel (%p226) target = $region32
    $region31: #{convlayer_forward.2} parent=5 // pred_region
      %s230 = ssub.s32 %s11, 1
      %s231 = smul.u32 16, %s21
      %s232 = ssub.s32 18, %s231
      %p233 = scmp.lt.s32.totalorder %s232, 16
      %s234 = scalar_select %p233, %s232, 16
      %s235 = smul.u32 64, %s234
      %s236 = smul.u32 %s235, 3
      %p237 = scmp.lt.s32.totalorder %s20, 1
      %s238 = scalar_select %p237, %s20, 1
      %p239 = scmp.lt.s32.totalorder %s231, 17
      %s240 = scalar_select %p239, %s231, 17
      %s241 = smul.addr %s240, 3
      %s242 = smul.addr %s238, 54
      %s243 = sadd.s32 %s241, %s242
      %s244 = smul.addr %s243, 4
      %s245 = scalar_lea.vmem %s0, %s244
      %p246 = pneg %p51
      %p247 = pneg %p48
      %s248 = sadd.s32 %s21, 1
      %s249 = smul.u32 %s248, 8
      %s250 = smul.u32 2, %s249
      %p251 = scmp.lt.s32.totalorder %s20, 1
      %s252 = scalar_select %p251, %s20, 1
      %p253 = scmp.lt.s32.totalorder %s250, 17
      %s254 = scalar_select %p253, %s250, 17
      %s255 = smul.addr %s254, 3
      %s256 = smul.addr %s252, 54
      %s257 = sadd.s32 %s255, %s256
      %s258 = smul.addr %s257, 4
      %s259 = scalar_lea.vmem %s1, %s258
      %p260 = pneg %p83
      %p261 = pneg %p80
      %p262 = pneg %p104
      %p263 = pneg %p101
      %p264 = pneg %p132
      %p265 = pneg %p129
      %p266 = scmp.lt.s32.totalorder %s20, 1
      %s267 = scalar_select %p266, %s20, 1
      %p268 = scmp.lt.s32.totalorder %s21, 0
      %s269 = scalar_select %p268, %s21, 0
      %s270 = sadd.s32 %s269, %s267
      %s271 = scalar_lea.vmem %s3, %s270
      %p272 = pneg %p160
      %p273 = pneg %p157
      %p274 = scmp.lt.s32.totalorder %s20, 1
      %s275 = scalar_select %p274, %s20, 1
      %p276 = scmp.lt.s32.totalorder %s21, 0
      %s277 = scalar_select %p276, %s21, 0
      %s278 = sadd.s32 %s277, %s275
      %s279 = scalar_lea.vmem %s4, %s278
      %s280 = smul.u32 16, %s21
      %s281 = ssub.s32 18, %s280
      %p282 = scmp.lt.s32.totalorder %s281, 16
      %s283 = scalar_select %p282, %s281, 16
      %s284 = smul.u32 64, %s283
      %s285 = smul.u32 %s284, 3
      %p286 = scmp.lt.s32.totalorder %s20, 1
      %s287 = scalar_select %p286, %s20, 1
      %p288 = scmp.lt.s32.totalorder %s280, 17
      %s289 = scalar_select %p288, %s280, 17
      %s290 = smul.addr %s289, 3
      %s291 = smul.addr %s287, 54
      %s292 = sadd.s32 %s290, %s291
      %s293 = smul.addr %s292, 4
      %s294 = scalar_lea.vmem %s0, %s293
      %s295 = smul.u32 16, %s21
      %s296 = ssub.s32 18, %s295
      %p297 = scmp.lt.s32.totalorder %s296, 16
      %s298 = scalar_select %p297, %s296, 16
      %s299 = smul.u32 64, %s298
      %s300 = smul.u32 %s299, 3
      %s301 = sadd.s32 %s21, 1
      %s302 = smul.u32 %s301, 8
      %s303 = smul.u32 2, %s302
      %p304 = scmp.lt.s32.totalorder %s20, 1
      %s305 = scalar_select %p304, %s20, 1
      %p306 = scmp.lt.s32.totalorder %s303, 17
      %s307 = scalar_select %p306, %s303, 17
      %s308 = smul.addr %s307, 3
      %s309 = smul.addr %s305, 54
      %s310 = sadd.s32 %s308, %s309
      %s311 = smul.addr %s310, 4
      %s312 = scalar_lea.vmem %s1, %s311
      %s313 = sadd.s32 %s21, 1
      %s314 = smul.u32 %s313, 8
      %s315 = smul.u32 2, %s314
      %p316 = scmp.lt.s32.totalorder %s20, 1
      %s317 = scalar_select %p316, %s20, 1
      %p318 = scmp.lt.s32.totalorder %s21, 0
      %s319 = scalar_select %p318, %s21, 0
      %s320 = sadd.s32 %s319, %s317
      %s321 = scalar_lea.vmem %s3, %s320
      %p322 = scmp.lt.s32.totalorder %s20, 1
      %s323 = scalar_select %p322, %s20, 1
      %p324 = scmp.lt.s32.totalorder %s21, 0
      %s325 = scalar_select %p324, %s21, 0
      %s326 = sadd.s32 %s325, %s323
      %s327 = scalar_lea.vmem %s4, %s326
      %v329 = vld [vmem:[%s294] sm:$0xf]
      %v330 = vld [vmem:[%s294 + $0x4] sm:$0xf]
      %v331 = vld [vmem:[%s294 + $0x8] sm:$0x1]
      %v332 = vld [vmem:[%s294 + $0xc] sm:$0xf]
      %v333 = vld [vmem:[%s294 + $0x10] sm:$0xf]
      %v334 = vld [vmem:[%s294 + $0x14] sm:$0x1]
      %v335 = vld [vmem:[%s294 + $0x18] sm:$0xf]
      %v336 = vld [vmem:[%s294 + $0x1c] sm:$0xf]
      %v337 = vld [vmem:[%s294 + $0x20] sm:$0x1]
      %v338 = vld [vmem:[%s294 + $0x24] sm:$0xf]
      %v339 = vld [vmem:[%s294 + $0x28] sm:$0xf]
      %v340 = vld [vmem:[%s294 + $0x2c] sm:$0x1]
      %v341 = vld [vmem:[%s294 + $0x30] sm:$0xf]
      %v342 = vld [vmem:[%s294 + $0x34] sm:$0xf]
      %v343 = vld [vmem:[%s294 + $0x38] sm:$0x1]
      %v344 = vld [vmem:[%s294 + $0x3c] sm:$0xf]
      %v345 = vld [vmem:[%s294 + $0x40] sm:$0xf]
      %v346 = vld [vmem:[%s294 + $0x44] sm:$0x1]
      %v347 = vld [vmem:[%s294 + $0x48] sm:$0xf]
      %v348 = vld [vmem:[%s294 + $0x4c] sm:$0xf]
      %v349 = vld [vmem:[%s294 + $0x50] sm:$0x1]
      %v350 = vld [vmem:[%s294 + $0x54] sm:$0xf]
      %v351 = vld [vmem:[%s294 + $0x58] sm:$0xf]
      %v352 = vld [vmem:[%s294 + $0x5c] sm:$0x1]
      %v353 = vld [vmem:[%s294 + $0x60] sm:$0xf]
      %v354 = vld [vmem:[%s294 + $0x64] sm:$0xf]
      %v355 = vld [vmem:[%s294 + $0x68] sm:$0x1]
      %v356 = vld [vmem:[%s294 + $0x6c] sm:$0xf]
      %v357 = vld [vmem:[%s294 + $0x70] sm:$0xf]
      %v358 = vld [vmem:[%s294 + $0x74] sm:$0x1]
      %v359 = vld [vmem:[%s294 + $0x78] sm:$0xf]
      %v360 = vld [vmem:[%s294 + $0x7c] sm:$0xf]
      %v361 = vld [vmem:[%s294 + $0x80] sm:$0x1]
      %v362 = vld [vmem:[%s294 + $0x84] sm:$0xf]
      %v363 = vld [vmem:[%s294 + $0x88] sm:$0xf]
      %v364 = vld [vmem:[%s294 + $0x8c] sm:$0x1]
      %v365 = vld [vmem:[%s294 + $0x90] sm:$0xf]
      %v366 = vld [vmem:[%s294 + $0x94] sm:$0xf]
      %v367 = vld [vmem:[%s294 + $0x98] sm:$0x1]
      %v368 = vld [vmem:[%s294 + $0x9c] sm:$0xf]
      %v369 = vld [vmem:[%s294 + $0xa0] sm:$0xf]
      %v370 = vld [vmem:[%s294 + $0xa4] sm:$0x1]
      %v371 = vld [vmem:[%s294 + $0xa8] sm:$0xf]
      %v372 = vld [vmem:[%s294 + $0xac] sm:$0xf]
      %v373 = vld [vmem:[%s294 + $0xb0] sm:$0x1]
      %v374 = vld [vmem:[%s294 + $0xb4] sm:$0xf]
      %v375 = vld [vmem:[%s294 + $0xb8] sm:$0xf]
      %v376 = vld [vmem:[%s294 + $0xbc] sm:$0x1]
      %v377 = vld [vmem:[%s312] sm:$0xf]
      %v378 = vld [vmem:[%s312 + $0x4] sm:$0xf]
      %v379 = vld [vmem:[%s312 + $0x8] sm:$0x1]
      %v380 = vld [vmem:[%s312 + $0xc] sm:$0xf]
      %v381 = vld [vmem:[%s312 + $0x10] sm:$0xf]
      %v382 = vld [vmem:[%s312 + $0x14] sm:$0x1]
      %v383 = vld [vmem:[%s2] sm:$0x3]
      %vm384 = vsmask.f32 3328
      %vm385 = vsmask.f32 7440
      %vm386 = vmor %vm384, %vm385
      %v388 = vshrl.u32 %v329, 16
      %v390 = vrot.slane %v388, 4
      %v391 = vshll.u32 %v329, 16
      %v393 = vrot.slane %v391, 5
      %v394 = vor.u32 %v390, %v393
      %v395 = vrot.slane %v394, 4
      %v397 = vshll.u32 %v330, 16
      %v399 = vrot.slane %v397, 5
      %v400 = vsel %vm386, %v395, %v399
      %v401 = vshrl.u32 %v330, 16
      %v403 = vrot.slane %v401, 4
      %v404 = vor.u32 %v403, %v399
      %v405 = vrot.slane %v404, 4
      %v407 = vshll.u32 %v331, 16
      %v409 = vrot.slane %v407, 5
      %v410 = vsel %vm386, %v405, %v409
      %v412 = vshrl.u32 %v332, 16
      %v414 = vrot.slane %v412, 4
      %v415 = vshll.u32 %v332, 16
      %v417 = vrot.slane %v415, 5
      %v418 = vor.u32 %v414, %v417
      %v419 = vrot.slane %v418, 4
      %v421 = vshll.u32 %v333, 16
      %v423 = vrot.slane %v421, 5
      %v424 = vsel %vm386, %v419, %v423
      %v425 = vshrl.u32 %v333, 16
      %v427 = vrot.slane %v425, 4
      %v428 = vor.u32 %v427, %v423
      %v429 = vrot.slane %v428, 4
      %v431 = vshll.u32 %v334, 16
      %v433 = vrot.slane %v431, 5
      %v434 = vsel %vm386, %v429, %v433
      %v436 = vshrl.u32 %v335, 16
      %v438 = vrot.slane %v436, 4
      %v439 = vshll.u32 %v335, 16
      %v441 = vrot.slane %v439, 5
      %v442 = vor.u32 %v438, %v441
      %v443 = vrot.slane %v442, 4
      %v445 = vshll.u32 %v336, 16
      %v447 = vrot.slane %v445, 5
      %v448 = vsel %vm386, %v443, %v447
      %v449 = vshrl.u32 %v336, 16
      %v451 = vrot.slane %v449, 4
      %v452 = vor.u32 %v451, %v447
      %v453 = vrot.slane %v452, 4
      %v455 = vshll.u32 %v337, 16
      %v457 = vrot.slane %v455, 5
      %v458 = vsel %vm386, %v453, %v457
      %v460 = vshrl.u32 %v338, 16
      %v462 = vrot.slane %v460, 4
      %v463 = vshll.u32 %v338, 16
      %v465 = vrot.slane %v463, 5
      %v466 = vor.u32 %v462, %v465
      %v467 = vrot.slane %v466, 4
      %v469 = vshll.u32 %v339, 16
      %v471 = vrot.slane %v469, 5
      %v472 = vsel %vm386, %v467, %v471
      %v473 = vshrl.u32 %v339, 16
      %v475 = vrot.slane %v473, 4
      %v476 = vor.u32 %v475, %v471
      %v477 = vrot.slane %v476, 4
      %v479 = vshll.u32 %v340, 16
      %v481 = vrot.slane %v479, 5
      %v482 = vsel %vm386, %v477, %v481
      %v484 = vshrl.u32 %v341, 16
      %v486 = vrot.slane %v484, 4
      %v487 = vshll.u32 %v341, 16
      %v489 = vrot.slane %v487, 5
      %v490 = vor.u32 %v486, %v489
      %v491 = vrot.slane %v490, 4
      %v493 = vshll.u32 %v342, 16
      %v495 = vrot.slane %v493, 5
      %v496 = vsel %vm386, %v491, %v495
      %v497 = vshrl.u32 %v342, 16
      %v499 = vrot.slane %v497, 4
      %v500 = vor.u32 %v499, %v495
      %v501 = vrot.slane %v500, 4
      %v503 = vshll.u32 %v343, 16
      %v505 = vrot.slane %v503, 5
      %v506 = vsel %vm386, %v501, %v505
      %v508 = vshrl.u32 %v344, 16
      %v510 = vrot.slane %v508, 4
      %v511 = vshll.u32 %v344, 16
      %v513 = vrot.slane %v511, 5
      %v514 = vor.u32 %v510, %v513
      %v515 = vrot.slane %v514, 4
      %v517 = vshll.u32 %v345, 16
      %v519 = vrot.slane %v517, 5
      %v520 = vsel %vm386, %v515, %v519
      %v521 = vshrl.u32 %v345, 16
      %v523 = vrot.slane %v521, 4
      %v524 = vor.u32 %v523, %v519
      %v525 = vrot.slane %v524, 4
      %v527 = vshll.u32 %v346, 16
      %v529 = vrot.slane %v527, 5
      %v530 = vsel %vm386, %v525, %v529
      %v532 = vshrl.u32 %v347, 16
      %v534 = vrot.slane %v532, 4
      %v535 = vshll.u32 %v347, 16
      %v537 = vrot.slane %v535, 5
      %v538 = vor.u32 %v534, %v537
      %v539 = vrot.slane %v538, 4
      %v541 = vshll.u32 %v348, 16
      %v543 = vrot.slane %v541, 5
      %v544 = vsel %vm386, %v539, %v543
      %v545 = vshrl.u32 %v348, 16
      %v547 = vrot.slane %v545, 4
      %v548 = vor.u32 %v547, %v543
      %v549 = vrot.slane %v548, 4
      %v551 = vshll.u32 %v349, 16
      %v553 = vrot.slane %v551, 5
      %v554 = vsel %vm386, %v549, %v553
      %v556 = vshrl.u32 %v350, 16
      %v558 = vrot.slane %v556, 4
      %v559 = vshll.u32 %v350, 16
      %v561 = vrot.slane %v559, 5
      %v562 = vor.u32 %v558, %v561
      %v563 = vrot.slane %v562, 4
      %v565 = vshll.u32 %v351, 16
      %v567 = vrot.slane %v565, 5
      %v568 = vsel %vm386, %v563, %v567
      %v569 = vshrl.u32 %v351, 16
      %v571 = vrot.slane %v569, 4
      %v572 = vor.u32 %v571, %v567
      %v573 = vrot.slane %v572, 4
      %v575 = vshll.u32 %v352, 16
      %v577 = vrot.slane %v575, 5
      %v578 = vsel %vm386, %v573, %v577
      %v580 = vshrl.u32 %v353, 16
      %v582 = vrot.slane %v580, 4
      %v583 = vshll.u32 %v353, 16
      %v585 = vrot.slane %v583, 5
      %v586 = vor.u32 %v582, %v585
      %v587 = vrot.slane %v586, 4
      %v589 = vshll.u32 %v354, 16
      %v591 = vrot.slane %v589, 5
      %v592 = vsel %vm386, %v587, %v591
      %v593 = vshrl.u32 %v354, 16
      %v595 = vrot.slane %v593, 4
      %v596 = vor.u32 %v595, %v591
      %v597 = vrot.slane %v596, 4
      %v599 = vshll.u32 %v355, 16
      %v601 = vrot.slane %v599, 5
      %v602 = vsel %vm386, %v597, %v601
      %v604 = vshrl.u32 %v356, 16
      %v606 = vrot.slane %v604, 4
      %v607 = vshll.u32 %v356, 16
      %v609 = vrot.slane %v607, 5
      %v610 = vor.u32 %v606, %v609
      %v611 = vrot.slane %v610, 4
      %v613 = vshll.u32 %v357, 16
      %v615 = vrot.slane %v613, 5
      %v616 = vsel %vm386, %v611, %v615
      %v617 = vshrl.u32 %v357, 16
      %v619 = vrot.slane %v617, 4
      %v620 = vor.u32 %v619, %v615
      %v621 = vrot.slane %v620, 4
      %v623 = vshll.u32 %v358, 16
      %v625 = vrot.slane %v623, 5
      %v626 = vsel %vm386, %v621, %v625
      %v628 = vshrl.u32 %v359, 16
      %v630 = vrot.slane %v628, 4
      %v631 = vshll.u32 %v359, 16
      %v633 = vrot.slane %v631, 5
      %v634 = vor.u32 %v630, %v633
      %v635 = vrot.slane %v634, 4
      %v637 = vshll.u32 %v360, 16
      %v639 = vrot.slane %v637, 5
      %v640 = vsel %vm386, %v635, %v639
      %v641 = vshrl.u32 %v360, 16
      %v643 = vrot.slane %v641, 4
      %v644 = vor.u32 %v643, %v639
      %v645 = vrot.slane %v644, 4
      %v647 = vshll.u32 %v361, 16
      %v649 = vrot.slane %v647, 5
      %v650 = vsel %vm386, %v645, %v649
      %v652 = vshrl.u32 %v362, 16
      %v654 = vrot.slane %v652, 4
      %v655 = vshll.u32 %v362, 16
      %v657 = vrot.slane %v655, 5
      %v658 = vor.u32 %v654, %v657
      %v659 = vrot.slane %v658, 4
      %v661 = vshll.u32 %v363, 16
      %v663 = vrot.slane %v661, 5
      %v664 = vsel %vm386, %v659, %v663
      %v665 = vshrl.u32 %v363, 16
      %v667 = vrot.slane %v665, 4
      %v668 = vor.u32 %v667, %v663
      %v669 = vrot.slane %v668, 4
      %v671 = vshll.u32 %v364, 16
      %v673 = vrot.slane %v671, 5
      %v674 = vsel %vm386, %v669, %v673
      %v676 = vshrl.u32 %v365, 16
      %v678 = vrot.slane %v676, 4
      %v679 = vshll.u32 %v365, 16
      %v681 = vrot.slane %v679, 5
      %v682 = vor.u32 %v678, %v681
      %v683 = vrot.slane %v682, 4
      %v685 = vshll.u32 %v366, 16
      %v687 = vrot.slane %v685, 5
      %v688 = vsel %vm386, %v683, %v687
      %v689 = vshrl.u32 %v366, 16
      %v691 = vrot.slane %v689, 4
      %v692 = vor.u32 %v691, %v687
      %v693 = vrot.slane %v692, 4
      %v695 = vshll.u32 %v367, 16
      %v697 = vrot.slane %v695, 5
      %v698 = vsel %vm386, %v693, %v697
      %v700 = vshrl.u32 %v368, 16
      %v702 = vrot.slane %v700, 4
      %v703 = vshll.u32 %v368, 16
      %v705 = vrot.slane %v703, 5
      %v706 = vor.u32 %v702, %v705
      %v707 = vrot.slane %v706, 4
      %v709 = vshll.u32 %v369, 16
      %v711 = vrot.slane %v709, 5
      %v712 = vsel %vm386, %v707, %v711
      %v713 = vshrl.u32 %v369, 16
      %v715 = vrot.slane %v713, 4
      %v716 = vor.u32 %v715, %v711
      %v717 = vrot.slane %v716, 4
      %v719 = vshll.u32 %v370, 16
      %v721 = vrot.slane %v719, 5
      %v722 = vsel %vm386, %v717, %v721
      %v724 = vshrl.u32 %v371, 16
      %v726 = vrot.slane %v724, 4
      %v727 = vshll.u32 %v371, 16
      %v729 = vrot.slane %v727, 5
      %v730 = vor.u32 %v726, %v729
      %v731 = vrot.slane %v730, 4
      %v733 = vshll.u32 %v372, 16
      %v735 = vrot.slane %v733, 5
      %v736 = vsel %vm386, %v731, %v735
      %v737 = vshrl.u32 %v372, 16
      %v739 = vrot.slane %v737, 4
      %v740 = vor.u32 %v739, %v735
      %v741 = vrot.slane %v740, 4
      %v743 = vshll.u32 %v373, 16
      %v745 = vrot.slane %v743, 5
      %v746 = vsel %vm386, %v741, %v745
      %v748 = vshrl.u32 %v374, 16
      %v750 = vrot.slane %v748, 4
      %v751 = vshll.u32 %v374, 16
      %v753 = vrot.slane %v751, 5
      %v754 = vor.u32 %v750, %v753
      %v755 = vrot.slane %v754, 4
      %v757 = vshll.u32 %v375, 16
      %v759 = vrot.slane %v757, 5
      %v760 = vsel %vm386, %v755, %v759
      %v761 = vshrl.u32 %v375, 16
      %v763 = vrot.slane %v761, 4
      %v764 = vor.u32 %v763, %v759
      %v765 = vrot.slane %v764, 4
      %v767 = vshll.u32 %v376, 16
      %v769 = vrot.slane %v767, 5
      %v770 = vsel %vm386, %v765, %v769
      %s771 = scalar_lea.vmem %s2, 2
      %v772 = vld [vmem:[%s771] sm:$0x3]
      %v773 = vunpack.c.l.b16 %v400
      %v774 = vunpack.c.l.b16 %v410
      %v775 = vunpack.c.l.b16 %v424
      %v776 = vunpack.c.l.b16 %v434
      %v777 = vunpack.c.l.b16 %v448
      %v778 = vunpack.c.l.b16 %v458
      %v779 = vunpack.c.l.b16 %v472
      %v780 = vunpack.c.l.b16 %v482
      %v781 = vunpack.c.l.b16 %v496
      %v782 = vunpack.c.l.b16 %v506
      %v783 = vunpack.c.l.b16 %v520
      %v784 = vunpack.c.l.b16 %v530
      %v785 = vunpack.c.l.b16 %v544
      %v786 = vunpack.c.l.b16 %v554
      %v787 = vunpack.c.l.b16 %v568
      %v788 = vunpack.c.l.b16 %v578
      %v789 = vunpack.c.l.b16 %v592
      %v790 = vunpack.c.l.b16 %v602
      %v791 = vunpack.c.l.b16 %v616
      %v792 = vunpack.c.l.b16 %v626
      %v793 = vunpack.c.l.b16 %v640
      %v794 = vunpack.c.l.b16 %v650
      %v795 = vunpack.c.l.b16 %v664
      %v796 = vunpack.c.l.b16 %v674
      %v797 = vunpack.c.l.b16 %v688
      %v798 = vunpack.c.l.b16 %v698
      %v799 = vunpack.c.l.b16 %v712
      %v800 = vunpack.c.l.b16 %v722
      %v801 = vunpack.c.l.b16 %v736
      %v802 = vunpack.c.l.b16 %v746
      %v803 = vunpack.c.l.b16 %v760
      %v804 = vunpack.c.l.b16 %v770
      %v805 = vpack.c.b16 %v774, %v773
      %v806 = vpack.c.b16 %v776, %v775
      %v807 = vpack.c.b16 %v778, %v777
      %v808 = vpack.c.b16 %v780, %v779
      %v809 = vpack.c.b16 %v782, %v781
      %v810 = vpack.c.b16 %v784, %v783
      %v811 = vpack.c.b16 %v786, %v785
      %v812 = vpack.c.b16 %v788, %v787
      %v813 = vpack.c.b16 %v790, %v789
      %v814 = vpack.c.b16 %v792, %v791
      %v815 = vpack.c.b16 %v794, %v793
      %v816 = vpack.c.b16 %v796, %v795
      %v817 = vpack.c.b16 %v798, %v797
      %v818 = vpack.c.b16 %v800, %v799
      %v819 = vpack.c.b16 %v802, %v801
      %v820 = vpack.c.b16 %v804, %v803
      %vm821 = vcmask 31744
      %v823 = vsel %vm821, %v805, 0
      %v826 = vsel %vm821, %v806, 0
      %v829 = vsel %vm821, %v807, 0
      %v832 = vsel %vm821, %v808, 0
      %v835 = vsel %vm821, %v809, 0
      %v838 = vsel %vm821, %v810, 0
      %v841 = vsel %vm821, %v811, 0
      %v844 = vsel %vm821, %v812, 0
      %v847 = vsel %vm821, %v813, 0
      %v850 = vsel %vm821, %v814, 0
      %v853 = vsel %vm821, %v815, 0
      %v856 = vsel %vm821, %v816, 0
      %v859 = vsel %vm821, %v817, 0
      %v862 = vsel %vm821, %v818, 0
      %v865 = vsel %vm821, %v819, 0
      %v868 = vsel %vm821, %v820, 0
      %vm870 = vcmask 1041408
      %v872 = vsel %vm870, %v772, 0
      %874 = vmatprep.subr.bf16.mxu0 0
      %875 = vmatpush1.bf16.msra.mxu0 %v872
      %876 = vmatprep.subr.bf16.mxu0 0
      %877 = vmatpush1.bf16.msra.mxu0 0
      %878 = vmatprep.subr.bf16.mxu0 0
      %879 = vmatpush1.bf16.msra.mxu0 0
      %880 = vmatprep.subr.bf16.mxu0 0
      %881 = vmatpush1.bf16.msra.mxu0 0
      %882 = vmatprep.subr.bf16.mxu0 0
      %883 = vmatpush1.bf16.msra.mxu0 0
      %884 = vmatprep.subr.bf16.mxu0 0
      %885 = vmatpush1.bf16.msra.mxu0 0
      %886 = vmatprep.subr.bf16.mxu0 0
      %887 = vmatpush1.bf16.msra.mxu0 0
      %888 = vmatprep.subr.bf16.mxu0 0
      %889 = vmatpush1.bf16.msra.mxu0 0
      %890 = vmatprep.subr.bf16.mxu0 0
      %891 = vmatpush1.bf16.msra.mxu0 0
      %892 = vmatprep.subr.bf16.mxu0 0
      %893 = vmatpush1.bf16.msra.mxu0 0
      %894 = vmatprep.subr.bf16.mxu0 0
      %895 = vmatpush1.bf16.msra.mxu0 0
      %896 = vmatprep.subr.bf16.mxu0 0
      %897 = vmatpush1.bf16.msra.mxu0 0
      %898 = vmatprep.subr.bf16.mxu0 0
      %899 = vmatpush1.bf16.msra.mxu0 0
      %900 = vmatprep.subr.bf16.mxu0 0
      %901 = vmatpush1.bf16.msra.mxu0 0
      %902 = vmatprep.subr.bf16.mxu0 0
      %903 = vmatpush1.bf16.msra.mxu0 0
      %904 = vmatprep.subr.bf16.mxu0 0
      %905 = vmatpush1.bf16.msra.mxu0 0
      %906 = vmatprep.mubr.bf16.mxu0 0
      %907 = vmatmul.mubr.bf16.gmra.mrb[0].mxu0 %v823
      %v908 = vpop.f32.mrb[0].mxu0
      %v909 = vadd.f32 0.0, %v908
      %v910 = vpop.f32.mrb[0].mxu0
      %v911 = vpop.f32.mrb[0].mxu0
      %v912 = vadd.f32 0.0, %v911
      %v913 = vpop.f32.mrb[0].mxu0
      %914 = vmatprep.mubr.bf16.mxu0 0
      %915 = vmatmul.mubr.bf16.gmra.mrb[0].mxu0 %v826
      %v916 = vpop.f32.mrb[0].mxu0
      %v917 = vadd.f32 0.0, %v916
      %v918 = vpop.f32.mrb[0].mxu0
      %v919 = vpop.f32.mrb[0].mxu0
      %v920 = vadd.f32 0.0, %v919
      %v921 = vpop.f32.mrb[0].mxu0
      %922 = vmatprep.mubr.bf16.mxu0 0
      %923 = vmatmul.mubr.bf16.gmra.mrb[0].mxu0 %v829
      %v924 = vpop.f32.mrb[0].mxu0
      %v925 = vadd.f32 0.0, %v924
      %v926 = vpop.f32.mrb[0].mxu0
      %v927 = vpop.f32.mrb[0].mxu0
      %v928 = vadd.f32 0.0, %v927
      %v929 = vpop.f32.mrb[0].mxu0
      %930 = vmatprep.mubr.bf16.mxu0 0
      %931 = vmatmul.mubr.bf16.gmra.mrb[0].mxu0 %v832
      %v932 = vpop.f32.mrb[0].mxu0
      %v933 = vadd.f32 0.0, %v932
      %v934 = vpop.f32.mrb[0].mxu0
      %v935 = vpop.f32.mrb[0].mxu0
      %v936 = vadd.f32 0.0, %v935
      %v937 = vpop.f32.mrb[0].mxu0
      %938 = vmatprep.mubr.bf16.mxu0 0
      %939 = vmatmul.mubr.bf16.gmra.mrb[0].mxu0 %v835
      %v940 = vpop.f32.mrb[0].mxu0
      %v941 = vadd.f32 0.0, %v940
      %v942 = vpop.f32.mrb[0].mxu0
      %v943 = vpop.f32.mrb[0].mxu0
      %v944 = vadd.f32 0.0, %v943
      %v945 = vpop.f32.mrb[0].mxu0
      %946 = vmatprep.mubr.bf16.mxu0 0
      %947 = vmatmul.mubr.bf16.gmra.mrb[0].mxu0 %v838
      %v948 = vpop.f32.mrb[0].mxu0
      %v949 = vadd.f32 0.0, %v948
      %v950 = vpop.f32.mrb[0].mxu0
      %v951 = vpop.f32.mrb[0].mxu0
      %v952 = vadd.f32 0.0, %v951
      %v953 = vpop.f32.mrb[0].mxu0
      %954 = vmatprep.mubr.bf16.mxu0 0
      %955 = vmatmul.mubr.bf16.gmra.mrb[0].mxu0 %v841
      %v956 = vpop.f32.mrb[0].mxu0
      %v957 = vadd.f32 0.0, %v956
      %v958 = vpop.f32.mrb[0].mxu0
      %v959 = vpop.f32.mrb[0].mxu0
      %v960 = vadd.f32 0.0, %v959
      %v961 = vpop.f32.mrb[0].mxu0
      %962 = vmatprep.mubr.bf16.mxu0 0
      %963 = vmatmul.mubr.bf16.gmra.mrb[0].mxu0 %v844
      %v964 = vpop.f32.mrb[0].mxu0
      %v965 = vadd.f32 0.0, %v964
      %v966 = vpop.f32.mrb[0].mxu0
      %v967 = vpop.f32.mrb[0].mxu0
      %v968 = vadd.f32 0.0, %v967
      %v969 = vpop.f32.mrb[0].mxu0
      %970 = vmatprep.mubr.bf16.mxu0 0
      %971 = vmatmul.mubr.bf16.gmra.mrb[0].mxu0 %v847
      %v972 = vpop.f32.mrb[0].mxu0
      %v973 = vadd.f32 0.0, %v972
      %v974 = vpop.f32.mrb[0].mxu0
      %v975 = vpop.f32.mrb[0].mxu0
      %v976 = vadd.f32 0.0, %v975
      %v977 = vpop.f32.mrb[0].mxu0
      %978 = vmatprep.mubr.bf16.mxu0 0
      %979 = vmatmul.mubr.bf16.gmra.mrb[0].mxu0 %v850
      %v980 = vpop.f32.mrb[0].mxu0
      %v981 = vadd.f32 0.0, %v980
      %v982 = vpop.f32.mrb[0].mxu0
      %v983 = vpop.f32.mrb[0].mxu0
      %v984 = vadd.f32 0.0, %v983
      %v985 = vpop.f32.mrb[0].mxu0
      %986 = vmatprep.mubr.bf16.mxu0 0
      %987 = vmatmul.mubr.bf16.gmra.mrb[0].mxu0 %v853
      %v988 = vpop.f32.mrb[0].mxu0
      %v989 = vadd.f32 0.0, %v988
      %v990 = vpop.f32.mrb[0].mxu0
      %v991 = vpop.f32.mrb[0].mxu0
      %v992 = vadd.f32 0.0, %v991
      %v993 = vpop.f32.mrb[0].mxu0
      %994 = vmatprep.mubr.bf16.mxu0 0
      %995 = vmatmul.mubr.bf16.gmra.mrb[0].mxu0 %v856
      %v996 = vpop.f32.mrb[0].mxu0
      %v997 = vadd.f32 0.0, %v996
      %v998 = vpop.f32.mrb[0].mxu0
      %v999 = vpop.f32.mrb[0].mxu0
      %v1000 = vadd.f32 0.0, %v999
      %v1001 = vpop.f32.mrb[0].mxu0
      %1002 = vmatprep.mubr.bf16.mxu0 0
      %1003 = vmatmul.mubr.bf16.gmra.mrb[0].mxu0 %v859
      %v1004 = vpop.f32.mrb[0].mxu0
      %v1005 = vadd.f32 0.0, %v1004
      %v1006 = vpop.f32.mrb[0].mxu0
      %v1007 = vpop.f32.mrb[0].mxu0
      %v1008 = vadd.f32 0.0, %v1007
      %v1009 = vpop.f32.mrb[0].mxu0
      %1010 = vmatprep.mubr.bf16.mxu0 0
      %1011 = vmatmul.mubr.bf16.gmra.mrb[0].mxu0 %v862
      %v1012 = vpop.f32.mrb[0].mxu0
      %v1013 = vadd.f32 0.0, %v1012
      %v1014 = vpop.f32.mrb[0].mxu0
      %v1015 = vpop.f32.mrb[0].mxu0
      %v1016 = vadd.f32 0.0, %v1015
      %v1017 = vpop.f32.mrb[0].mxu0
      %1018 = vmatprep.mubr.bf16.mxu0 0
      %1019 = vmatmul.mubr.bf16.gmra.mrb[0].mxu0 %v865
      %v1020 = vpop.f32.mrb[0].mxu0
      %v1021 = vadd.f32 0.0, %v1020
      %v1022 = vpop.f32.mrb[0].mxu0
      %v1023 = vpop.f32.mrb[0].mxu0
      %v1024 = vadd.f32 0.0, %v1023
      %v1025 = vpop.f32.mrb[0].mxu0
      %1026 = vmatprep.mubr.bf16.mxu0 0
      %1027 = vmatmul.mubr.bf16.gmra.mrb[0].mxu0 %v868
      %v1028 = vpop.f32.mrb[0].mxu0
      %v1029 = vadd.f32 0.0, %v1028
      %v1030 = vpop.f32.mrb[0].mxu0
      %v1031 = vpop.f32.mrb[0].mxu0
      %v1032 = vadd.f32 0.0, %v1031
      %v1033 = vpop.f32.mrb[0].mxu0
      %1034 = vdwg.mxu0
      %v1067 = vunpack.c.l.b16 %v329
      %v1068 = vunpack.c.l.b16 %v330
      %v1069 = vunpack.c.l.b16 %v332
      %v1070 = vunpack.c.l.b16 %v333
      %v1071 = vunpack.c.l.b16 %v335
      %v1072 = vunpack.c.l.b16 %v336
      %v1073 = vunpack.c.l.b16 %v338
      %v1074 = vunpack.c.l.b16 %v339
      %v1075 = vunpack.c.l.b16 %v341
      %v1076 = vunpack.c.l.b16 %v342
      %v1077 = vunpack.c.l.b16 %v344
      %v1078 = vunpack.c.l.b16 %v345
      %v1079 = vunpack.c.l.b16 %v347
      %v1080 = vunpack.c.l.b16 %v348
      %v1081 = vunpack.c.l.b16 %v350
      %v1082 = vunpack.c.l.b16 %v351
      %v1083 = vunpack.c.l.b16 %v353
      %v1084 = vunpack.c.l.b16 %v354
      %v1085 = vunpack.c.l.b16 %v356
      %v1086 = vunpack.c.l.b16 %v357
      %v1087 = vunpack.c.l.b16 %v359
      %v1088 = vunpack.c.l.b16 %v360
      %v1089 = vunpack.c.l.b16 %v362
      %v1090 = vunpack.c.l.b16 %v363
      %v1091 = vunpack.c.l.b16 %v365
      %v1092 = vunpack.c.l.b16 %v366
      %v1093 = vunpack.c.l.b16 %v368
      %v1094 = vunpack.c.l.b16 %v369
      %v1095 = vunpack.c.l.b16 %v371
      %v1096 = vunpack.c.l.b16 %v372
      %v1097 = vunpack.c.l.b16 %v374
      %v1098 = vunpack.c.l.b16 %v375
      %v1099 = vpack.c.b16 %v1068, %v1067
      %v1100 = vpack.c.b16 %v1070, %v1069
      %v1101 = vpack.c.b16 %v1072, %v1071
      %v1102 = vpack.c.b16 %v1074, %v1073
      %v1103 = vpack.c.b16 %v1076, %v1075
      %v1104 = vpack.c.b16 %v1078, %v1077
      %v1105 = vpack.c.b16 %v1080, %v1079
      %v1106 = vpack.c.b16 %v1082, %v1081
      %v1107 = vpack.c.b16 %v1084, %v1083
      %v1108 = vpack.c.b16 %v1086, %v1085
      %v1109 = vpack.c.b16 %v1088, %v1087
      %v1110 = vpack.c.b16 %v1090, %v1089
      %v1111 = vpack.c.b16 %v1092, %v1091
      %v1112 = vpack.c.b16 %v1094, %v1093
      %v1113 = vpack.c.b16 %v1096, %v1095
      %v1114 = vpack.c.b16 %v1098, %v1097
      %v1116 = vsel %vm821, %v1099, 0
      %v1119 = vsel %vm821, %v1100, 0
      %v1122 = vsel %vm821, %v1101, 0
      %v1125 = vsel %vm821, %v1102, 0
      %v1128 = vsel %vm821, %v1103, 0
      %v1131 = vsel %vm821, %v1104, 0
      %v1134 = vsel %vm821, %v1105, 0
      %v1137 = vsel %vm821, %v1106, 0
      %v1140 = vsel %vm821, %v1107, 0
      %v1143 = vsel %vm821, %v1108, 0
      %v1146 = vsel %vm821, %v1109, 0
      %v1149 = vsel %vm821, %v1110, 0
      %v1152 = vsel %vm821, %v1111, 0
      %v1155 = vsel %vm821, %v1112, 0
      %v1158 = vsel %vm821, %v1113, 0
      %v1161 = vsel %vm821, %v1114, 0
      %v1164 = vsel %vm870, %v383, 0
      %1166 = vmatprep.subr.bf16.mxu0 0
      %1167 = vmatpush1.bf16.msra.mxu0 %v1164
      %1168 = vmatprep.subr.bf16.mxu0 0
      %1169 = vmatpush1.bf16.msra.mxu0 0
      %1170 = vmatprep.subr.bf16.mxu0 0
      %1171 = vmatpush1.bf16.msra.mxu0 0
      %1172 = vmatprep.subr.bf16.mxu0 0
      %1173 = vmatpush1.bf16.msra.mxu0 0
      %1174 = vmatprep.subr.bf16.mxu0 0
      %1175 = vmatpush1.bf16.msra.mxu0 0
      %1176 = vmatprep.subr.bf16.mxu0 0
      %1177 = vmatpush1.bf16.msra.mxu0 0
      %1178 = vmatprep.subr.bf16.mxu0 0
      %1179 = vmatpush1.bf16.msra.mxu0 0
      %1180 = vmatprep.subr.bf16.mxu0 0
      %1181 = vmatpush1.bf16.msra.mxu0 0
      %1182 = vmatprep.subr.bf16.mxu0 0
      %1183 = vmatpush1.bf16.msra.mxu0 0
      %1184 = vmatprep.subr.bf16.mxu0 0
      %1185 = vmatpush1.bf16.msra.mxu0 0
      %1186 = vmatprep.subr.bf16.mxu0 0
      %1187 = vmatpush1.bf16.msra.mxu0 0
      %1188 = vmatprep.subr.bf16.mxu0 0
      %1189 = vmatpush1.bf16.msra.mxu0 0
      %1190 = vmatprep.subr.bf16.mxu0 0
      %1191 = vmatpush1.bf16.msra.mxu0 0
      %1192 = vmatprep.subr.bf16.mxu0 0
      %1193 = vmatpush1.bf16.msra.mxu0 0
      %1194 = vmatprep.subr.bf16.mxu0 0
      %1195 = vmatpush1.bf16.msra.mxu0 0
      %1196 = vmatprep.subr.bf16.mxu0 0
      %1197 = vmatpush1.bf16.msra.mxu0 0
      %1198 = vmatprep.mubr.bf16.mxu0 0
      %1199 = vmatmul.mubr.bf16.gmra.mrb[0].mxu0 %v1116
      %v1200 = vpop.f32.mrb[0].mxu0
      %v1201 = vadd.f32 %v909, %v1200
      %v1202 = vpop.f32.mrb[0].mxu0
      %v1203 = vpop.f32.mrb[0].mxu0
      %v1204 = vadd.f32 %v912, %v1203
      %v1205 = vpop.f32.mrb[0].mxu0
      %1206 = vmatprep.mubr.bf16.mxu0 0
      %1207 = vmatmul.mubr.bf16.gmra.mrb[0].mxu0 %v1119
      %v1208 = vpop.f32.mrb[0].mxu0
      %v1209 = vadd.f32 %v917, %v1208
      %v1210 = vpop.f32.mrb[0].mxu0
      %v1211 = vpop.f32.mrb[0].mxu0
      %v1212 = vadd.f32 %v920, %v1211
      %v1213 = vpop.f32.mrb[0].mxu0
      %1214 = vmatprep.mubr.bf16.mxu0 0
      %1215 = vmatmul.mubr.bf16.gmra.mrb[0].mxu0 %v1122
      %v1216 = vpop.f32.mrb[0].mxu0
      %v1217 = vadd.f32 %v925, %v1216
      %v1218 = vpop.f32.mrb[0].mxu0
      %v1219 = vpop.f32.mrb[0].mxu0
      %v1220 = vadd.f32 %v928, %v1219
      %v1221 = vpop.f32.mrb[0].mxu0
      %1222 = vmatprep.mubr.bf16.mxu0 0
      %1223 = vmatmul.mubr.bf16.gmra.mrb[0].mxu0 %v1125
      %v1224 = vpop.f32.mrb[0].mxu0
      %v1225 = vadd.f32 %v933, %v1224
      %v1226 = vpop.f32.mrb[0].mxu0
      %v1227 = vpop.f32.mrb[0].mxu0
      %v1228 = vadd.f32 %v936, %v1227
      %v1229 = vpop.f32.mrb[0].mxu0
      %1230 = vmatprep.mubr.bf16.mxu0 0
      %1231 = vmatmul.mubr.bf16.gmra.mrb[0].mxu0 %v1128
      %v1232 = vpop.f32.mrb[0].mxu0
      %v1233 = vadd.f32 %v941, %v1232
      %v1234 = vpop.f32.mrb[0].mxu0
      %v1235 = vpop.f32.mrb[0].mxu0
      %v1236 = vadd.f32 %v944, %v1235
      %v1237 = vpop.f32.mrb[0].mxu0
      %1238 = vmatprep.mubr.bf16.mxu0 0
      %1239 = vmatmul.mubr.bf16.gmra.mrb[0].mxu0 %v1131
      %v1240 = vpop.f32.mrb[0].mxu0
      %v1241 = vadd.f32 %v949, %v1240
      %v1242 = vpop.f32.mrb[0].mxu0
      %v1243 = vpop.f32.mrb[0].mxu0
      %v1244 = vadd.f32 %v952, %v1243
      %v1245 = vpop.f32.mrb[0].mxu0
      %1246 = vmatprep.mubr.bf16.mxu0 0
      %1247 = vmatmul.mubr.bf16.gmra.mrb[0].mxu0 %v1134
      %v1248 = vpop.f32.mrb[0].mxu0
      %v1249 = vadd.f32 %v957, %v1248
      %v1250 = vpop.f32.mrb[0].mxu0
      %v1251 = vpop.f32.mrb[0].mxu0
      %v1252 = vadd.f32 %v960, %v1251
      %v1253 = vpop.f32.mrb[0].mxu0
      %1254 = vmatprep.mubr.bf16.mxu0 0
      %1255 = vmatmul.mubr.bf16.gmra.mrb[0].mxu0 %v1137
      %v1256 = vpop.f32.mrb[0].mxu0
      %v1257 = vadd.f32 %v965, %v1256
      %v1258 = vpop.f32.mrb[0].mxu0
      %v1259 = vpop.f32.mrb[0].mxu0
      %v1260 = vadd.f32 %v968, %v1259
      %v1261 = vpop.f32.mrb[0].mxu0
      %1262 = vmatprep.mubr.bf16.mxu0 0
      %1263 = vmatmul.mubr.bf16.gmra.mrb[0].mxu0 %v1140
      %v1264 = vpop.f32.mrb[0].mxu0
      %v1265 = vadd.f32 %v973, %v1264
      %v1266 = vpop.f32.mrb[0].mxu0
      %v1267 = vpop.f32.mrb[0].mxu0
      %v1268 = vadd.f32 %v976, %v1267
      %v1269 = vpop.f32.mrb[0].mxu0
      %1270 = vmatprep.mubr.bf16.mxu0 0
      %1271 = vmatmul.mubr.bf16.gmra.mrb[0].mxu0 %v1143
      %v1272 = vpop.f32.mrb[0].mxu0
      %v1273 = vadd.f32 %v981, %v1272
      %v1274 = vpop.f32.mrb[0].mxu0
      %v1275 = vpop.f32.mrb[0].mxu0
      %v1276 = vadd.f32 %v984, %v1275
      %v1277 = vpop.f32.mrb[0].mxu0
      %1278 = vmatprep.mubr.bf16.mxu0 0
      %1279 = vmatmul.mubr.bf16.gmra.mrb[0].mxu0 %v1146
      %v1280 = vpop.f32.mrb[0].mxu0
      %v1281 = vadd.f32 %v989, %v1280
      %v1282 = vpop.f32.mrb[0].mxu0
      %v1283 = vpop.f32.mrb[0].mxu0
      %v1284 = vadd.f32 %v992, %v1283
      %v1285 = vpop.f32.mrb[0].mxu0
      %1286 = vmatprep.mubr.bf16.mxu0 0
      %1287 = vmatmul.mubr.bf16.gmra.mrb[0].mxu0 %v1149
      %v1288 = vpop.f32.mrb[0].mxu0
      %v1289 = vadd.f32 %v997, %v1288
      %v1290 = vpop.f32.mrb[0].mxu0
      %v1291 = vpop.f32.mrb[0].mxu0
      %v1292 = vadd.f32 %v1000, %v1291
      %v1293 = vpop.f32.mrb[0].mxu0
      %1294 = vmatprep.mubr.bf16.mxu0 0
      %1295 = vmatmul.mubr.bf16.gmra.mrb[0].mxu0 %v1152
      %v1296 = vpop.f32.mrb[0].mxu0
      %v1297 = vadd.f32 %v1005, %v1296
      %v1298 = vpop.f32.mrb[0].mxu0
      %v1299 = vpop.f32.mrb[0].mxu0
      %v1300 = vadd.f32 %v1008, %v1299
      %v1301 = vpop.f32.mrb[0].mxu0
      %1302 = vmatprep.mubr.bf16.mxu0 0
      %1303 = vmatmul.mubr.bf16.gmra.mrb[0].mxu0 %v1155
      %v1304 = vpop.f32.mrb[0].mxu0
      %v1305 = vadd.f32 %v1013, %v1304
      %v1306 = vpop.f32.mrb[0].mxu0
      %v1307 = vpop.f32.mrb[0].mxu0
      %v1308 = vadd.f32 %v1016, %v1307
      %v1309 = vpop.f32.mrb[0].mxu0
      %1310 = vmatprep.mubr.bf16.mxu0 0
      %1311 = vmatmul.mubr.bf16.gmra.mrb[0].mxu0 %v1158
      %v1312 = vpop.f32.mrb[0].mxu0
      %v1313 = vadd.f32 %v1021, %v1312
      %v1314 = vpop.f32.mrb[0].mxu0
      %v1315 = vpop.f32.mrb[0].mxu0
      %v1316 = vadd.f32 %v1024, %v1315
      %v1317 = vpop.f32.mrb[0].mxu0
      %1318 = vmatprep.mubr.bf16.mxu0 0
      %1319 = vmatmul.mubr.bf16.gmra.mrb[0].mxu0 %v1161
      %v1320 = vpop.f32.mrb[0].mxu0
      %v1321 = vadd.f32 %v1029, %v1320
      %v1322 = vpop.f32.mrb[0].mxu0
      %v1323 = vpop.f32.mrb[0].mxu0
      %v1324 = vadd.f32 %v1032, %v1323
      %v1325 = vpop.f32.mrb[0].mxu0
      %1326 = vdwg.mxu0
      %vm1343 = vcmask 1042432
      %vm1344 = vcmask 1046532
      %vm1345 = vmor %vm1343, %vm1344
      %v1346 = vrot.slane %v329, 5
      %v1347 = vrot.slane %v1346, 4
      %v1348 = vrot.slane %v330, 5
      %v1349 = vsel %vm1345, %v1347, %v1348
      %v1350 = vrot.slane %v1348, 4
      %v1351 = vrot.slane %v331, 5
      %v1352 = vsel %vm1345, %v1350, %v1351
      %v1353 = vrot.slane %v332, 5
      %v1354 = vrot.slane %v1353, 4
      %v1355 = vrot.slane %v333, 5
      %v1356 = vsel %vm1345, %v1354, %v1355
      %v1357 = vrot.slane %v1355, 4
      %v1358 = vrot.slane %v334, 5
      %v1359 = vsel %vm1345, %v1357, %v1358
      %v1360 = vrot.slane %v335, 5
      %v1361 = vrot.slane %v1360, 4
      %v1362 = vrot.slane %v336, 5
      %v1363 = vsel %vm1345, %v1361, %v1362
      %v1364 = vrot.slane %v1362, 4
      %v1365 = vrot.slane %v337, 5
      %v1366 = vsel %vm1345, %v1364, %v1365
      %v1367 = vrot.slane %v338, 5
      %v1368 = vrot.slane %v1367, 4
      %v1369 = vrot.slane %v339, 5
      %v1370 = vsel %vm1345, %v1368, %v1369
      %v1371 = vrot.slane %v1369, 4
      %v1372 = vrot.slane %v340, 5
      %v1373 = vsel %vm1345, %v1371, %v1372
      %v1374 = vrot.slane %v341, 5
      %v1375 = vrot.slane %v1374, 4
      %v1376 = vrot.slane %v342, 5
      %v1377 = vsel %vm1345, %v1375, %v1376
      %v1378 = vrot.slane %v1376, 4
      %v1379 = vrot.slane %v343, 5
      %v1380 = vsel %vm1345, %v1378, %v1379
      %v1381 = vrot.slane %v344, 5
      %v1382 = vrot.slane %v1381, 4
      %v1383 = vrot.slane %v345, 5
      %v1384 = vsel %vm1345, %v1382, %v1383
      %v1385 = vrot.slane %v1383, 4
      %v1386 = vrot.slane %v346, 5
      %v1387 = vsel %vm1345, %v1385, %v1386
      %v1388 = vrot.slane %v347, 5
      %v1389 = vrot.slane %v1388, 4
      %v1390 = vrot.slane %v348, 5
      %v1391 = vsel %vm1345, %v1389, %v1390
      %v1392 = vrot.slane %v1390, 4
      %v1393 = vrot.slane %v349, 5
      %v1394 = vsel %vm1345, %v1392, %v1393
      %v1395 = vrot.slane %v350, 5
      %v1396 = vrot.slane %v1395, 4
      %v1397 = vrot.slane %v351, 5
      %v1398 = vsel %vm1345, %v1396, %v1397
      %v1399 = vrot.slane %v1397, 4
      %v1400 = vrot.slane %v352, 5
      %v1401 = vsel %vm1345, %v1399, %v1400
      %v1402 = vrot.slane %v353, 5
      %v1403 = vrot.slane %v1402, 4
      %v1404 = vrot.slane %v354, 5
      %v1405 = vsel %vm1345, %v1403, %v1404
      %v1406 = vrot.slane %v1404, 4
      %v1407 = vrot.slane %v355, 5
      %v1408 = vsel %vm1345, %v1406, %v1407
      %v1409 = vrot.slane %v356, 5
      %v1410 = vrot.slane %v1409, 4
      %v1411 = vrot.slane %v357, 5
      %v1412 = vsel %vm1345, %v1410, %v1411
      %v1413 = vrot.slane %v1411, 4
      %v1414 = vrot.slane %v358, 5
      %v1415 = vsel %vm1345, %v1413, %v1414
      %v1416 = vrot.slane %v359, 5
      %v1417 = vrot.slane %v1416, 4
      %v1418 = vrot.slane %v360, 5
      %v1419 = vsel %vm1345, %v1417, %v1418
      %v1420 = vrot.slane %v1418, 4
      %v1421 = vrot.slane %v361, 5
      %v1422 = vsel %vm1345, %v1420, %v1421
      %v1423 = vrot.slane %v362, 5
      %v1424 = vrot.slane %v1423, 4
      %v1425 = vrot.slane %v363, 5
      %v1426 = vsel %vm1345, %v1424, %v1425
      %v1427 = vrot.slane %v1425, 4
      %v1428 = vrot.slane %v364, 5
      %v1429 = vsel %vm1345, %v1427, %v1428
      %v1430 = vrot.slane %v365, 5
      %v1431 = vrot.slane %v1430, 4
      %v1432 = vrot.slane %v366, 5
      %v1433 = vsel %vm1345, %v1431, %v1432
      %v1434 = vrot.slane %v1432, 4
      %v1435 = vrot.slane %v367, 5
      %v1436 = vsel %vm1345, %v1434, %v1435
      %v1437 = vrot.slane %v368, 5
      %v1438 = vrot.slane %v1437, 4
      %v1439 = vrot.slane %v369, 5
      %v1440 = vsel %vm1345, %v1438, %v1439
      %v1441 = vrot.slane %v1439, 4
      %v1442 = vrot.slane %v370, 5
      %v1443 = vsel %vm1345, %v1441, %v1442
      %v1444 = vrot.slane %v371, 5
      %v1445 = vrot.slane %v1444, 4
      %v1446 = vrot.slane %v372, 5
      %v1447 = vsel %vm1345, %v1445, %v1446
      %v1448 = vrot.slane %v1446, 4
      %v1449 = vrot.slane %v373, 5
      %v1450 = vsel %vm1345, %v1448, %v1449
      %v1451 = vrot.slane %v374, 5
      %v1452 = vrot.slane %v1451, 4
      %v1453 = vrot.slane %v375, 5
      %v1454 = vsel %vm1345, %v1452, %v1453
      %v1455 = vrot.slane %v1453, 4
      %v1456 = vrot.slane %v376, 5
      %v1457 = vsel %vm1345, %v1455, %v1456
      %s1458 = scalar_lea.vmem %s2, 4
      %v1459 = vld [vmem:[%s1458] sm:$0x3]
      %v1460 = vunpack.c.l.b16 %v1349
      %v1461 = vunpack.c.l.b16 %v1352
      %v1462 = vunpack.c.l.b16 %v1356
      %v1463 = vunpack.c.l.b16 %v1359
      %v1464 = vunpack.c.l.b16 %v1363
      %v1465 = vunpack.c.l.b16 %v1366
      %v1466 = vunpack.c.l.b16 %v1370
      %v1467 = vunpack.c.l.b16 %v1373
      %v1468 = vunpack.c.l.b16 %v1377
      %v1469 = vunpack.c.l.b16 %v1380
      %v1470 = vunpack.c.l.b16 %v1384
      %v1471 = vunpack.c.l.b16 %v1387
      %v1472 = vunpack.c.l.b16 %v1391
      %v1473 = vunpack.c.l.b16 %v1394
      %v1474 = vunpack.c.l.b16 %v1398
      %v1475 = vunpack.c.l.b16 %v1401
      %v1476 = vunpack.c.l.b16 %v1405
      %v1477 = vunpack.c.l.b16 %v1408
      %v1478 = vunpack.c.l.b16 %v1412
      %v1479 = vunpack.c.l.b16 %v1415
      %v1480 = vunpack.c.l.b16 %v1419
      %v1481 = vunpack.c.l.b16 %v1422
      %v1482 = vunpack.c.l.b16 %v1426
      %v1483 = vunpack.c.l.b16 %v1429
      %v1484 = vunpack.c.l.b16 %v1433
      %v1485 = vunpack.c.l.b16 %v1436
      %v1486 = vunpack.c.l.b16 %v1440
      %v1487 = vunpack.c.l.b16 %v1443
      %v1488 = vunpack.c.l.b16 %v1447
      %v1489 = vunpack.c.l.b16 %v1450
      %v1490 = vunpack.c.l.b16 %v1454
      %v1491 = vunpack.c.l.b16 %v1457
      %v1492 = vpack.c.b16 %v1461, %v1460
      %v1493 = vpack.c.b16 %v1463, %v1462
      %v1494 = vpack.c.b16 %v1465, %v1464
      %v1495 = vpack.c.b16 %v1467, %v1466
      %v1496 = vpack.c.b16 %v1469, %v1468
      %v1497 = vpack.c.b16 %v1471, %v1470
      %v1498 = vpack.c.b16 %v1473, %v1472
      %v1499 = vpack.c.b16 %v1475, %v1474
      %v1500 = vpack.c.b16 %v1477, %v1476
      %v1501 = vpack.c.b16 %v1479, %v1478
      %v1502 = vpack.c.b16 %v1481, %v1480
      %v1503 = vpack.c.b16 %v1483, %v1482
      %v1504 = vpack.c.b16 %v1485, %v1484
      %v1505 = vpack.c.b16 %v1487, %v1486
      %v1506 = vpack.c.b16 %v1489, %v1488
      %v1507 = vpack.c.b16 %v1491, %v1490
      %v1509 = vsel %vm821, %v1492, 0
      %v1512 = vsel %vm821, %v1493, 0
      %v1515 = vsel %vm821, %v1494, 0
      %v1518 = vsel %vm821, %v1495, 0
      %v1521 = vsel %vm821, %v1496, 0
      %v1524 = vsel %vm821, %v1497, 0
      %v1527 = vsel %vm821, %v1498, 0
      %v1530 = vsel %vm821, %v1499, 0
      %v1533 = vsel %vm821, %v1500, 0
      %v1536 = vsel %vm821, %v1501, 0
      %v1539 = vsel %vm821, %v1502, 0
      %v1542 = vsel %vm821, %v1503, 0
      %v1545 = vsel %vm821, %v1504, 0
      %v1548 = vsel %vm821, %v1505, 0
      %v1551 = vsel %vm821, %v1506, 0
      %v1554 = vsel %vm821, %v1507, 0
      %v1557 = vsel %vm870, %v1459, 0
      %1559 = vmatprep.subr.bf16.mxu0 0
      %1560 = vmatpush1.bf16.msra.mxu0 %v1557
      %1561 = vmatprep.subr.bf16.mxu0 0
      %1562 = vmatpush1.bf16.msra.mxu0 0
      %1563 = vmatprep.subr.bf16.mxu0 0
      %1564 = vmatpush1.bf16.msra.mxu0 0
      %1565 = vmatprep.subr.bf16.mxu0 0
      %1566 = vmatpush1.bf16.msra.mxu0 0
      %1567 = vmatprep.subr.bf16.mxu0 0
      %1568 = vmatpush1.bf16.msra.mxu0 0
      %1569 = vmatprep.subr.bf16.mxu0 0
      %1570 = vmatpush1.bf16.msra.mxu0 0
      %1571 = vmatprep.subr.bf16.mxu0 0
      %1572 = vmatpush1.bf16.msra.mxu0 0
      %1573 = vmatprep.subr.bf16.mxu0 0
      %1574 = vmatpush1.bf16.msra.mxu0 0
      %1575 = vmatprep.subr.bf16.mxu0 0
      %1576 = vmatpush1.bf16.msra.mxu0 0
      %1577 = vmatprep.subr.bf16.mxu0 0
      %1578 = vmatpush1.bf16.msra.mxu0 0
      %1579 = vmatprep.subr.bf16.mxu0 0
      %1580 = vmatpush1.bf16.msra.mxu0 0
      %1581 = vmatprep.subr.bf16.mxu0 0
      %1582 = vmatpush1.bf16.msra.mxu0 0
      %1583 = vmatprep.subr.bf16.mxu0 0
      %1584 = vmatpush1.bf16.msra.mxu0 0
      %1585 = vmatprep.subr.bf16.mxu0 0
      %1586 = vmatpush1.bf16.msra.mxu0 0
      %1587 = vmatprep.subr.bf16.mxu0 0
      %1588 = vmatpush1.bf16.msra.mxu0 0
      %1589 = vmatprep.subr.bf16.mxu0 0
      %1590 = vmatpush1.bf16.msra.mxu0 0
      %1591 = vmatprep.mubr.bf16.mxu0 0
      %1592 = vmatmul.mubr.bf16.gmra.mrb[0].mxu0 %v1509
      %v1593 = vpop.f32.mrb[0].mxu0
      %v1594 = vadd.f32 0.0, %v1593
      %v1595 = vpop.f32.mrb[0].mxu0
      %v1596 = vpop.f32.mrb[0].mxu0
      %v1597 = vadd.f32 0.0, %v1596
      %v1598 = vpop.f32.mrb[0].mxu0
      %1599 = vmatprep.mubr.bf16.mxu0 0
      %1600 = vmatmul.mubr.bf16.gmra.mrb[0].mxu0 %v1512
      %v1601 = vpop.f32.mrb[0].mxu0
      %v1602 = vadd.f32 0.0, %v1601
      %v1603 = vpop.f32.mrb[0].mxu0
      %v1604 = vpop.f32.mrb[0].mxu0
      %v1605 = vadd.f32 0.0, %v1604
      %v1606 = vpop.f32.mrb[0].mxu0
      %1607 = vmatprep.mubr.bf16.mxu0 0
      %1608 = vmatmul.mubr.bf16.gmra.mrb[0].mxu0 %v1515
      %v1609 = vpop.f32.mrb[0].mxu0
      %v1610 = vadd.f32 0.0, %v1609
      %v1611 = vpop.f32.mrb[0].mxu0
      %v1612 = vpop.f32.mrb[0].mxu0
      %v1613 = vadd.f32 0.0, %v1612
      %v1614 = vpop.f32.mrb[0].mxu0
      %1615 = vmatprep.mubr.bf16.mxu0 0
      %1616 = vmatmul.mubr.bf16.gmra.mrb[0].mxu0 %v1518
      %v1617 = vpop.f32.mrb[0].mxu0
      %v1618 = vadd.f32 0.0, %v1617
      %v1619 = vpop.f32.mrb[0].mxu0
      %v1620 = vpop.f32.mrb[0].mxu0
      %v1621 = vadd.f32 0.0, %v1620
      %v1622 = vpop.f32.mrb[0].mxu0
      %1623 = vmatprep.mubr.bf16.mxu0 0
      %1624 = vmatmul.mubr.bf16.gmra.mrb[0].mxu0 %v1521
      %v1625 = vpop.f32.mrb[0].mxu0
      %v1626 = vadd.f32 0.0, %v1625
      %v1627 = vpop.f32.mrb[0].mxu0
      %v1628 = vpop.f32.mrb[0].mxu0
      %v1629 = vadd.f32 0.0, %v1628
      %v1630 = vpop.f32.mrb[0].mxu0
      %1631 = vmatprep.mubr.bf16.mxu0 0
      %1632 = vmatmul.mubr.bf16.gmra.mrb[0].mxu0 %v1524
      %v1633 = vpop.f32.mrb[0].mxu0
      %v1634 = vadd.f32 0.0, %v1633
      %v1635 = vpop.f32.mrb[0].mxu0
      %v1636 = vpop.f32.mrb[0].mxu0
      %v1637 = vadd.f32 0.0, %v1636
      %v1638 = vpop.f32.mrb[0].mxu0
      %1639 = vmatprep.mubr.bf16.mxu0 0
      %1640 = vmatmul.mubr.bf16.gmra.mrb[0].mxu0 %v1527
      %v1641 = vpop.f32.mrb[0].mxu0
      %v1642 = vadd.f32 0.0, %v1641
      %v1643 = vpop.f32.mrb[0].mxu0
      %v1644 = vpop.f32.mrb[0].mxu0
      %v1645 = vadd.f32 0.0, %v1644
      %v1646 = vpop.f32.mrb[0].mxu0
      %1647 = vmatprep.mubr.bf16.mxu0 0
      %1648 = vmatmul.mubr.bf16.gmra.mrb[0].mxu0 %v1530
      %v1649 = vpop.f32.mrb[0].mxu0
      %v1650 = vadd.f32 0.0, %v1649
      %v1651 = vpop.f32.mrb[0].mxu0
      %v1652 = vpop.f32.mrb[0].mxu0
      %v1653 = vadd.f32 0.0, %v1652
      %v1654 = vpop.f32.mrb[0].mxu0
      %1655 = vmatprep.mubr.bf16.mxu0 0
      %1656 = vmatmul.mubr.bf16.gmra.mrb[0].mxu0 %v1533
      %v1657 = vpop.f32.mrb[0].mxu0
      %v1658 = vadd.f32 0.0, %v1657
      %v1659 = vpop.f32.mrb[0].mxu0
      %v1660 = vpop.f32.mrb[0].mxu0
      %v1661 = vadd.f32 0.0, %v1660
      %v1662 = vpop.f32.mrb[0].mxu0
      %1663 = vmatprep.mubr.bf16.mxu0 0
      %1664 = vmatmul.mubr.bf16.gmra.mrb[0].mxu0 %v1536
      %v1665 = vpop.f32.mrb[0].mxu0
      %v1666 = vadd.f32 0.0, %v1665
      %v1667 = vpop.f32.mrb[0].mxu0
      %v1668 = vpop.f32.mrb[0].mxu0
      %v1669 = vadd.f32 0.0, %v1668
      %v1670 = vpop.f32.mrb[0].mxu0
      %1671 = vmatprep.mubr.bf16.mxu0 0
      %1672 = vmatmul.mubr.bf16.gmra.mrb[0].mxu0 %v1539
      %v1673 = vpop.f32.mrb[0].mxu0
      %v1674 = vadd.f32 0.0, %v1673
      %v1675 = vpop.f32.mrb[0].mxu0
      %v1676 = vpop.f32.mrb[0].mxu0
      %v1677 = vadd.f32 0.0, %v1676
      %v1678 = vpop.f32.mrb[0].mxu0
      %1679 = vmatprep.mubr.bf16.mxu0 0
      %1680 = vmatmul.mubr.bf16.gmra.mrb[0].mxu0 %v1542
      %v1681 = vpop.f32.mrb[0].mxu0
      %v1682 = vadd.f32 0.0, %v1681
      %v1683 = vpop.f32.mrb[0].mxu0
      %v1684 = vpop.f32.mrb[0].mxu0
      %v1685 = vadd.f32 0.0, %v1684
      %v1686 = vpop.f32.mrb[0].mxu0
      %1687 = vmatprep.mubr.bf16.mxu0 0
      %1688 = vmatmul.mubr.bf16.gmra.mrb[0].mxu0 %v1545
      %v1689 = vpop.f32.mrb[0].mxu0
      %v1690 = vadd.f32 0.0, %v1689
      %v1691 = vpop.f32.mrb[0].mxu0
      %v1692 = vpop.f32.mrb[0].mxu0
      %v1693 = vadd.f32 0.0, %v1692
      %v1694 = vpop.f32.mrb[0].mxu0
      %1695 = vmatprep.mubr.bf16.mxu0 0
      %1696 = vmatmul.mubr.bf16.gmra.mrb[0].mxu0 %v1548
      %v1697 = vpop.f32.mrb[0].mxu0
      %v1698 = vadd.f32 0.0, %v1697
      %v1699 = vpop.f32.mrb[0].mxu0
      %v1700 = vpop.f32.mrb[0].mxu0
      %v1701 = vadd.f32 0.0, %v1700
      %v1702 = vpop.f32.mrb[0].mxu0
      %1703 = vmatprep.mubr.bf16.mxu0 0
      %1704 = vmatmul.mubr.bf16.gmra.mrb[0].mxu0 %v1551
      %v1705 = vpop.f32.mrb[0].mxu0
      %v1706 = vadd.f32 0.0, %v1705
      %v1707 = vpop.f32.mrb[0].mxu0
      %v1708 = vpop.f32.mrb[0].mxu0
      %v1709 = vadd.f32 0.0, %v1708
      %v1710 = vpop.f32.mrb[0].mxu0
      %1711 = vmatprep.mubr.bf16.mxu0 0
      %1712 = vmatmul.mubr.bf16.gmra.mrb[0].mxu0 %v1554
      %v1713 = vpop.f32.mrb[0].mxu0
      %v1714 = vadd.f32 0.0, %v1713
      %v1715 = vpop.f32.mrb[0].mxu0
      %v1716 = vpop.f32.mrb[0].mxu0
      %v1717 = vadd.f32 0.0, %v1716
      %v1718 = vpop.f32.mrb[0].mxu0
      %1719 = vdwg.mxu0
      %v1720 = vadd.f32 %v1201, %v1594
      %v1721 = vadd.f32 %v1204, %v1597
      %v1722 = vadd.f32 %v1209, %v1602
      %v1723 = vadd.f32 %v1212, %v1605
      %v1724 = vadd.f32 %v1217, %v1610
      %v1725 = vadd.f32 %v1220, %v1613
      %v1726 = vadd.f32 %v1225, %v1618
      %v1727 = vadd.f32 %v1228, %v1621
      %v1728 = vadd.f32 %v1233, %v1626
      %v1729 = vadd.f32 %v1236, %v1629
      %v1730 = vadd.f32 %v1241, %v1634
      %v1731 = vadd.f32 %v1244, %v1637
      %v1732 = vadd.f32 %v1249, %v1642
      %v1733 = vadd.f32 %v1252, %v1645
      %v1734 = vadd.f32 %v1257, %v1650
      %v1735 = vadd.f32 %v1260, %v1653
      %v1736 = vadd.f32 %v1265, %v1658
      %v1737 = vadd.f32 %v1268, %v1661
      %v1738 = vadd.f32 %v1273, %v1666
      %v1739 = vadd.f32 %v1276, %v1669
      %v1740 = vadd.f32 %v1281, %v1674
      %v1741 = vadd.f32 %v1284, %v1677
      %v1742 = vadd.f32 %v1289, %v1682
      %v1743 = vadd.f32 %v1292, %v1685
      %v1744 = vadd.f32 %v1297, %v1690
      %v1745 = vadd.f32 %v1300, %v1693
      %v1746 = vadd.f32 %v1305, %v1698
      %v1747 = vadd.f32 %v1308, %v1701
      %v1748 = vadd.f32 %v1313, %v1706
      %v1749 = vadd.f32 %v1316, %v1709
      %v1750 = vadd.f32 %v1321, %v1714
      %v1751 = vadd.f32 %v1324, %v1717
      %s1752 = scalar_lea.vmem %s2, 6
      %v1753 = vld [vmem:[%s1752] sm:$0x3]
      %v1756 = vunpack.c.l.b16 %v377
      %v1757 = vunpack.c.l.b16 %v378
      %v1758 = vpack.c.b16 %v1757, %v1756
      %v1760 = vsel %vm821, %v1758, 0
      %v1763 = vsel %vm870, %v1753, 0
      %1765 = vmatprep.subr.bf16.mxu0 0
      %1766 = vmatpush1.bf16.msra.mxu0 %v1763
      %1767 = vmatprep.subr.bf16.mxu0 0
      %1768 = vmatpush1.bf16.msra.mxu0 0
      %1769 = vmatprep.subr.bf16.mxu0 0
      %1770 = vmatpush1.bf16.msra.mxu0 0
      %1771 = vmatprep.subr.bf16.mxu0 0
      %1772 = vmatpush1.bf16.msra.mxu0 0
      %1773 = vmatprep.subr.bf16.mxu0 0
      %1774 = vmatpush1.bf16.msra.mxu0 0
      %1775 = vmatprep.subr.bf16.mxu0 0
      %1776 = vmatpush1.bf16.msra.mxu0 0
      %1777 = vmatprep.subr.bf16.mxu0 0
      %1778 = vmatpush1.bf16.msra.mxu0 0
      %1779 = vmatprep.subr.bf16.mxu0 0
      %1780 = vmatpush1.bf16.msra.mxu0 0
      %1781 = vmatprep.subr.bf16.mxu0 0
      %1782 = vmatpush1.bf16.msra.mxu0 0
      %1783 = vmatprep.subr.bf16.mxu0 0
      %1784 = vmatpush1.bf16.msra.mxu0 0
      %1785 = vmatprep.subr.bf16.mxu0 0
      %1786 = vmatpush1.bf16.msra.mxu0 0
      %1787 = vmatprep.subr.bf16.mxu0 0
      %1788 = vmatpush1.bf16.msra.mxu0 0
      %1789 = vmatprep.subr.bf16.mxu0 0
      %1790 = vmatpush1.bf16.msra.mxu0 0
      %1791 = vmatprep.subr.bf16.mxu0 0
      %1792 = vmatpush1.bf16.msra.mxu0 0
      %1793 = vmatprep.subr.bf16.mxu0 0
      %1794 = vmatpush1.bf16.msra.mxu0 0
      %1795 = vmatprep.subr.bf16.mxu0 0
      %1796 = vmatpush1.bf16.msra.mxu0 0
      %1797 = vmatprep.mubr.bf16.mxu0 0
      %1798 = vmatmul.mubr.bf16.gmra.mrb[0].mxu0 %v1119
      %v1799 = vpop.f32.mrb[0].mxu0
      %v1800 = vadd.f32 0.0, %v1799
      %v1801 = vpop.f32.mrb[0].mxu0
      %v1802 = vpop.f32.mrb[0].mxu0
      %v1803 = vadd.f32 0.0, %v1802
      %v1804 = vpop.f32.mrb[0].mxu0
      %1805 = vmatprep.mubr.bf16.mxu0 0
      %1806 = vmatmul.mubr.bf16.gmra.mrb[0].mxu0 %v1122
      %v1807 = vpop.f32.mrb[0].mxu0
      %v1808 = vadd.f32 0.0, %v1807
      %v1809 = vpop.f32.mrb[0].mxu0
      %v1810 = vpop.f32.mrb[0].mxu0
      %v1811 = vadd.f32 0.0, %v1810
      %v1812 = vpop.f32.mrb[0].mxu0
      %1813 = vmatprep.mubr.bf16.mxu0 0
      %1814 = vmatmul.mubr.bf16.gmra.mrb[0].mxu0 %v1125
      %v1815 = vpop.f32.mrb[0].mxu0
      %v1816 = vadd.f32 0.0, %v1815
      %v1817 = vpop.f32.mrb[0].mxu0
      %v1818 = vpop.f32.mrb[0].mxu0
      %v1819 = vadd.f32 0.0, %v1818
      %v1820 = vpop.f32.mrb[0].mxu0
      %1821 = vmatprep.mubr.bf16.mxu0 0
      %1822 = vmatmul.mubr.bf16.gmra.mrb[0].mxu0 %v1128
      %v1823 = vpop.f32.mrb[0].mxu0
      %v1824 = vadd.f32 0.0, %v1823
      %v1825 = vpop.f32.mrb[0].mxu0
      %v1826 = vpop.f32.mrb[0].mxu0
      %v1827 = vadd.f32 0.0, %v1826
      %v1828 = vpop.f32.mrb[0].mxu0
      %1829 = vmatprep.mubr.bf16.mxu0 0
      %1830 = vmatmul.mubr.bf16.gmra.mrb[0].mxu0 %v1131
      %v1831 = vpop.f32.mrb[0].mxu0
      %v1832 = vadd.f32 0.0, %v1831
      %v1833 = vpop.f32.mrb[0].mxu0
      %v1834 = vpop.f32.mrb[0].mxu0
      %v1835 = vadd.f32 0.0, %v1834
      %v1836 = vpop.f32.mrb[0].mxu0
      %1837 = vmatprep.mubr.bf16.mxu0 0
      %1838 = vmatmul.mubr.bf16.gmra.mrb[0].mxu0 %v1134
      %v1839 = vpop.f32.mrb[0].mxu0
      %v1840 = vadd.f32 0.0, %v1839
      %v1841 = vpop.f32.mrb[0].mxu0
      %v1842 = vpop.f32.mrb[0].mxu0
      %v1843 = vadd.f32 0.0, %v1842
      %v1844 = vpop.f32.mrb[0].mxu0
      %1845 = vmatprep.mubr.bf16.mxu0 0
      %1846 = vmatmul.mubr.bf16.gmra.mrb[0].mxu0 %v1137
      %v1847 = vpop.f32.mrb[0].mxu0
      %v1848 = vadd.f32 0.0, %v1847
      %v1849 = vpop.f32.mrb[0].mxu0
      %v1850 = vpop.f32.mrb[0].mxu0
      %v1851 = vadd.f32 0.0, %v1850
      %v1852 = vpop.f32.mrb[0].mxu0
      %1853 = vmatprep.mubr.bf16.mxu0 0
      %1854 = vmatmul.mubr.bf16.gmra.mrb[0].mxu0 %v1140
      %v1855 = vpop.f32.mrb[0].mxu0
      %v1856 = vadd.f32 0.0, %v1855
      %v1857 = vpop.f32.mrb[0].mxu0
      %v1858 = vpop.f32.mrb[0].mxu0
      %v1859 = vadd.f32 0.0, %v1858
      %v1860 = vpop.f32.mrb[0].mxu0
      %1861 = vmatprep.mubr.bf16.mxu0 0
      %1862 = vmatmul.mubr.bf16.gmra.mrb[0].mxu0 %v1143
      %v1863 = vpop.f32.mrb[0].mxu0
      %v1864 = vadd.f32 0.0, %v1863
      %v1865 = vpop.f32.mrb[0].mxu0
      %v1866 = vpop.f32.mrb[0].mxu0
      %v1867 = vadd.f32 0.0, %v1866
      %v1868 = vpop.f32.mrb[0].mxu0
      %1869 = vmatprep.mubr.bf16.mxu0 0
      %1870 = vmatmul.mubr.bf16.gmra.mrb[0].mxu0 %v1146
      %v1871 = vpop.f32.mrb[0].mxu0
      %v1872 = vadd.f32 0.0, %v1871
      %v1873 = vpop.f32.mrb[0].mxu0
      %v1874 = vpop.f32.mrb[0].mxu0
      %v1875 = vadd.f32 0.0, %v1874
      %v1876 = vpop.f32.mrb[0].mxu0
      %1877 = vmatprep.mubr.bf16.mxu0 0
      %1878 = vmatmul.mubr.bf16.gmra.mrb[0].mxu0 %v1149
      %v1879 = vpop.f32.mrb[0].mxu0
      %v1880 = vadd.f32 0.0, %v1879
      %v1881 = vpop.f32.mrb[0].mxu0
      %v1882 = vpop.f32.mrb[0].mxu0
      %v1883 = vadd.f32 0.0, %v1882
      %v1884 = vpop.f32.mrb[0].mxu0
      %1885 = vmatprep.mubr.bf16.mxu0 0
      %1886 = vmatmul.mubr.bf16.gmra.mrb[0].mxu0 %v1152
      %v1887 = vpop.f32.mrb[0].mxu0
      %v1888 = vadd.f32 0.0, %v1887
      %v1889 = vpop.f32.mrb[0].mxu0
      %v1890 = vpop.f32.mrb[0].mxu0
      %v1891 = vadd.f32 0.0, %v1890
      %v1892 = vpop.f32.mrb[0].mxu0
      %1893 = vmatprep.mubr.bf16.mxu0 0
      %1894 = vmatmul.mubr.bf16.gmra.mrb[0].mxu0 %v1155
      %v1895 = vpop.f32.mrb[0].mxu0
      %v1896 = vadd.f32 0.0, %v1895
      %v1897 = vpop.f32.mrb[0].mxu0
      %v1898 = vpop.f32.mrb[0].mxu0
      %v1899 = vadd.f32 0.0, %v1898
      %v1900 = vpop.f32.mrb[0].mxu0
      %1901 = vmatprep.mubr.bf16.mxu0 0
      %1902 = vmatmul.mubr.bf16.gmra.mrb[0].mxu0 %v1158
      %v1903 = vpop.f32.mrb[0].mxu0
      %v1904 = vadd.f32 0.0, %v1903
      %v1905 = vpop.f32.mrb[0].mxu0
      %v1906 = vpop.f32.mrb[0].mxu0
      %v1907 = vadd.f32 0.0, %v1906
      %v1908 = vpop.f32.mrb[0].mxu0
      %1909 = vmatprep.mubr.bf16.mxu0 0
      %1910 = vmatmul.mubr.bf16.gmra.mrb[0].mxu0 %v1161
      %v1911 = vpop.f32.mrb[0].mxu0
      %v1912 = vadd.f32 0.0, %v1911
      %v1913 = vpop.f32.mrb[0].mxu0
      %v1914 = vpop.f32.mrb[0].mxu0
      %v1915 = vadd.f32 0.0, %v1914
      %v1916 = vpop.f32.mrb[0].mxu0
      %1917 = vmatprep.mubr.bf16.mxu0 0
      %1918 = vmatmul.mubr.bf16.gmra.mrb[0].mxu0 %v1760
      %v1919 = vpop.f32.mrb[0].mxu0
      %v1920 = vadd.f32 0.0, %v1919
      %v1921 = vpop.f32.mrb[0].mxu0
      %v1922 = vpop.f32.mrb[0].mxu0
      %v1923 = vadd.f32 0.0, %v1922
      %v1924 = vpop.f32.mrb[0].mxu0
      %1925 = vdwg.mxu0
      %v1926 = vadd.f32 %v1720, %v1800
      %v1927 = vadd.f32 %v1721, %v1803
      %v1928 = vadd.f32 %v1722, %v1808
      %v1929 = vadd.f32 %v1723, %v1811
      %v1930 = vadd.f32 %v1724, %v1816
      %v1931 = vadd.f32 %v1725, %v1819
      %v1932 = vadd.f32 %v1726, %v1824
      %v1933 = vadd.f32 %v1727, %v1827
      %v1934 = vadd.f32 %v1728, %v1832
      %v1935 = vadd.f32 %v1729, %v1835
      %v1936 = vadd.f32 %v1730, %v1840
      %v1937 = vadd.f32 %v1731, %v1843
      %v1938 = vadd.f32 %v1732, %v1848
      %v1939 = vadd.f32 %v1733, %v1851
      %v1940 = vadd.f32 %v1734, %v1856
      %v1941 = vadd.f32 %v1735, %v1859
      %v1942 = vadd.f32 %v1736, %v1864
      %v1943 = vadd.f32 %v1737, %v1867
      %v1944 = vadd.f32 %v1738, %v1872
      %v1945 = vadd.f32 %v1739, %v1875
      %v1946 = vadd.f32 %v1740, %v1880
      %v1947 = vadd.f32 %v1741, %v1883
      %v1948 = vadd.f32 %v1742, %v1888
      %v1949 = vadd.f32 %v1743, %v1891
      %v1950 = vadd.f32 %v1744, %v1896
      %v1951 = vadd.f32 %v1745, %v1899
      %v1952 = vadd.f32 %v1746, %v1904
      %v1953 = vadd.f32 %v1747, %v1907
      %v1954 = vadd.f32 %v1748, %v1912
      %v1955 = vadd.f32 %v1749, %v1915
      %v1956 = vadd.f32 %v1750, %v1920
      %v1957 = vadd.f32 %v1751, %v1923
      %v1959 = vshrl.u32 %v377, 16
      %v1961 = vrot.slane %v1959, 4
      %v1962 = vshll.u32 %v377, 16
      %v1964 = vrot.slane %v1962, 5
      %v1965 = vor.u32 %v1961, %v1964
      %v1966 = vrot.slane %v1965, 4
      %v1968 = vshll.u32 %v378, 16
      %v1970 = vrot.slane %v1968, 5
      %v1971 = vsel %vm386, %v1966, %v1970
      %v1972 = vshrl.u32 %v378, 16
      %v1974 = vrot.slane %v1972, 4
      %v1975 = vor.u32 %v1974, %v1970
      %v1976 = vrot.slane %v1975, 4
      %v1978 = vshll.u32 %v379, 16
      %v1980 = vrot.slane %v1978, 5
      %v1981 = vsel %vm386, %v1976, %v1980
      %s1982 = scalar_lea.vmem %s2, 8
      %v1983 = vld [vmem:[%s1982] sm:$0x3]
      %v1984 = vunpack.c.l.b16 %v1971
      %v1985 = vunpack.c.l.b16 %v1981
      %v1986 = vpack.c.b16 %v1985, %v1984
      %v1988 = vsel %vm821, %v1986, 0
      %v1991 = vsel %vm870, %v1983, 0
      %1993 = vmatprep.subr.bf16.mxu0 0
      %1994 = vmatpush1.bf16.msra.mxu0 %v1991
      %1995 = vmatprep.subr.bf16.mxu0 0
      %1996 = vmatpush1.bf16.msra.mxu0 0
      %1997 = vmatprep.subr.bf16.mxu0 0
      %1998 = vmatpush1.bf16.msra.mxu0 0
      %1999 = vmatprep.subr.bf16.mxu0 0
      %2000 = vmatpush1.bf16.msra.mxu0 0
      %2001 = vmatprep.subr.bf16.mxu0 0
      %2002 = vmatpush1.bf16.msra.mxu0 0
      %2003 = vmatprep.subr.bf16.mxu0 0
      %2004 = vmatpush1.bf16.msra.mxu0 0
      %2005 = vmatprep.subr.bf16.mxu0 0
      %2006 = vmatpush1.bf16.msra.mxu0 0
      %2007 = vmatprep.subr.bf16.mxu0 0
      %2008 = vmatpush1.bf16.msra.mxu0 0
      %2009 = vmatprep.subr.bf16.mxu0 0
      %2010 = vmatpush1.bf16.msra.mxu0 0
      %2011 = vmatprep.subr.bf16.mxu0 0
      %2012 = vmatpush1.bf16.msra.mxu0 0
      %2013 = vmatprep.subr.bf16.mxu0 0
      %2014 = vmatpush1.bf16.msra.mxu0 0
      %2015 = vmatprep.subr.bf16.mxu0 0
      %2016 = vmatpush1.bf16.msra.mxu0 0
      %2017 = vmatprep.subr.bf16.mxu0 0
      %2018 = vmatpush1.bf16.msra.mxu0 0
      %2019 = vmatprep.subr.bf16.mxu0 0
      %2020 = vmatpush1.bf16.msra.mxu0 0
      %2021 = vmatprep.subr.bf16.mxu0 0
      %2022 = vmatpush1.bf16.msra.mxu0 0
      %2023 = vmatprep.subr.bf16.mxu0 0
      %2024 = vmatpush1.bf16.msra.mxu0 0
      %2025 = vmatprep.mubr.bf16.mxu0 0
      %2026 = vmatmul.mubr.bf16.gmra.mrb[0].mxu0 %v826
      %v2027 = vpop.f32.mrb[0].mxu0
      %v2028 = vadd.f32 0.0, %v2027
      %v2029 = vpop.f32.mrb[0].mxu0
      %v2030 = vpop.f32.mrb[0].mxu0
      %v2031 = vadd.f32 0.0, %v2030
      %v2032 = vpop.f32.mrb[0].mxu0
      %2033 = vmatprep.mubr.bf16.mxu0 0
      %2034 = vmatmul.mubr.bf16.gmra.mrb[0].mxu0 %v829
      %v2035 = vpop.f32.mrb[0].mxu0
      %v2036 = vadd.f32 0.0, %v2035
      %v2037 = vpop.f32.mrb[0].mxu0
      %v2038 = vpop.f32.mrb[0].mxu0
      %v2039 = vadd.f32 0.0, %v2038
      %v2040 = vpop.f32.mrb[0].mxu0
      %2041 = vmatprep.mubr.bf16.mxu0 0
      %2042 = vmatmul.mubr.bf16.gmra.mrb[0].mxu0 %v832
      %v2043 = vpop.f32.mrb[0].mxu0
      %v2044 = vadd.f32 0.0, %v2043
      %v2045 = vpop.f32.mrb[0].mxu0
      %v2046 = vpop.f32.mrb[0].mxu0
      %v2047 = vadd.f32 0.0, %v2046
      %v2048 = vpop.f32.mrb[0].mxu0
      %2049 = vmatprep.mubr.bf16.mxu0 0
      %2050 = vmatmul.mubr.bf16.gmra.mrb[0].mxu0 %v835
      %v2051 = vpop.f32.mrb[0].mxu0
      %v2052 = vadd.f32 0.0, %v2051
      %v2053 = vpop.f32.mrb[0].mxu0
      %v2054 = vpop.f32.mrb[0].mxu0
      %v2055 = vadd.f32 0.0, %v2054
      %v2056 = vpop.f32.mrb[0].mxu0
      %2057 = vmatprep.mubr.bf16.mxu0 0
      %2058 = vmatmul.mubr.bf16.gmra.mrb[0].mxu0 %v838
      %v2059 = vpop.f32.mrb[0].mxu0
      %v2060 = vadd.f32 0.0, %v2059
      %v2061 = vpop.f32.mrb[0].mxu0
      %v2062 = vpop.f32.mrb[0].mxu0
      %v2063 = vadd.f32 0.0, %v2062
      %v2064 = vpop.f32.mrb[0].mxu0
      %2065 = vmatprep.mubr.bf16.mxu0 0
      %2066 = vmatmul.mubr.bf16.gmra.mrb[0].mxu0 %v841
      %v2067 = vpop.f32.mrb[0].mxu0
      %v2068 = vadd.f32 0.0, %v2067
      %v2069 = vpop.f32.mrb[0].mxu0
      %v2070 = vpop.f32.mrb[0].mxu0
      %v2071 = vadd.f32 0.0, %v2070
      %v2072 = vpop.f32.mrb[0].mxu0
      %2073 = vmatprep.mubr.bf16.mxu0 0
      %2074 = vmatmul.mubr.bf16.gmra.mrb[0].mxu0 %v844
      %v2075 = vpop.f32.mrb[0].mxu0
      %v2076 = vadd.f32 0.0, %v2075
      %v2077 = vpop.f32.mrb[0].mxu0
      %v2078 = vpop.f32.mrb[0].mxu0
      %v2079 = vadd.f32 0.0, %v2078
      %v2080 = vpop.f32.mrb[0].mxu0
      %2081 = vmatprep.mubr.bf16.mxu0 0
      %2082 = vmatmul.mubr.bf16.gmra.mrb[0].mxu0 %v847
      %v2083 = vpop.f32.mrb[0].mxu0
      %v2084 = vadd.f32 0.0, %v2083
      %v2085 = vpop.f32.mrb[0].mxu0
      %v2086 = vpop.f32.mrb[0].mxu0
      %v2087 = vadd.f32 0.0, %v2086
      %v2088 = vpop.f32.mrb[0].mxu0
      %2089 = vmatprep.mubr.bf16.mxu0 0
      %2090 = vmatmul.mubr.bf16.gmra.mrb[0].mxu0 %v850
      %v2091 = vpop.f32.mrb[0].mxu0
      %v2092 = vadd.f32 0.0, %v2091
      %v2093 = vpop.f32.mrb[0].mxu0
      %v2094 = vpop.f32.mrb[0].mxu0
      %v2095 = vadd.f32 0.0, %v2094
      %v2096 = vpop.f32.mrb[0].mxu0
      %2097 = vmatprep.mubr.bf16.mxu0 0
      %2098 = vmatmul.mubr.bf16.gmra.mrb[0].mxu0 %v853
      %v2099 = vpop.f32.mrb[0].mxu0
      %v2100 = vadd.f32 0.0, %v2099
      %v2101 = vpop.f32.mrb[0].mxu0
      %v2102 = vpop.f32.mrb[0].mxu0
      %v2103 = vadd.f32 0.0, %v2102
      %v2104 = vpop.f32.mrb[0].mxu0
      %2105 = vmatprep.mubr.bf16.mxu0 0
      %2106 = vmatmul.mubr.bf16.gmra.mrb[0].mxu0 %v856
      %v2107 = vpop.f32.mrb[0].mxu0
      %v2108 = vadd.f32 0.0, %v2107
      %v2109 = vpop.f32.mrb[0].mxu0
      %v2110 = vpop.f32.mrb[0].mxu0
      %v2111 = vadd.f32 0.0, %v2110
      %v2112 = vpop.f32.mrb[0].mxu0
      %2113 = vmatprep.mubr.bf16.mxu0 0
      %2114 = vmatmul.mubr.bf16.gmra.mrb[0].mxu0 %v859
      %v2115 = vpop.f32.mrb[0].mxu0
      %v2116 = vadd.f32 0.0, %v2115
      %v2117 = vpop.f32.mrb[0].mxu0
      %v2118 = vpop.f32.mrb[0].mxu0
      %v2119 = vadd.f32 0.0, %v2118
      %v2120 = vpop.f32.mrb[0].mxu0
      %2121 = vmatprep.mubr.bf16.mxu0 0
      %2122 = vmatmul.mubr.bf16.gmra.mrb[0].mxu0 %v862
      %v2123 = vpop.f32.mrb[0].mxu0
      %v2124 = vadd.f32 0.0, %v2123
      %v2125 = vpop.f32.mrb[0].mxu0
      %v2126 = vpop.f32.mrb[0].mxu0
      %v2127 = vadd.f32 0.0, %v2126
      %v2128 = vpop.f32.mrb[0].mxu0
      %2129 = vmatprep.mubr.bf16.mxu0 0
      %2130 = vmatmul.mubr.bf16.gmra.mrb[0].mxu0 %v865
      %v2131 = vpop.f32.mrb[0].mxu0
      %v2132 = vadd.f32 0.0, %v2131
      %v2133 = vpop.f32.mrb[0].mxu0
      %v2134 = vpop.f32.mrb[0].mxu0
      %v2135 = vadd.f32 0.0, %v2134
      %v2136 = vpop.f32.mrb[0].mxu0
      %2137 = vmatprep.mubr.bf16.mxu0 0
      %2138 = vmatmul.mubr.bf16.gmra.mrb[0].mxu0 %v868
      %v2139 = vpop.f32.mrb[0].mxu0
      %v2140 = vadd.f32 0.0, %v2139
      %v2141 = vpop.f32.mrb[0].mxu0
      %v2142 = vpop.f32.mrb[0].mxu0
      %v2143 = vadd.f32 0.0, %v2142
      %v2144 = vpop.f32.mrb[0].mxu0
      %2145 = vmatprep.mubr.bf16.mxu0 0
      %2146 = vmatmul.mubr.bf16.gmra.mrb[0].mxu0 %v1988
      %v2147 = vpop.f32.mrb[0].mxu0
      %v2148 = vadd.f32 0.0, %v2147
      %v2149 = vpop.f32.mrb[0].mxu0
      %v2150 = vpop.f32.mrb[0].mxu0
      %v2151 = vadd.f32 0.0, %v2150
      %v2152 = vpop.f32.mrb[0].mxu0
      %2153 = vdwg.mxu0
      %v2154 = vadd.f32 %v1926, %v2028
      %v2155 = vadd.f32 %v1927, %v2031
      %v2156 = vadd.f32 %v1928, %v2036
      %v2157 = vadd.f32 %v1929, %v2039
      %v2158 = vadd.f32 %v1930, %v2044
      %v2159 = vadd.f32 %v1931, %v2047
      %v2160 = vadd.f32 %v1932, %v2052
      %v2161 = vadd.f32 %v1933, %v2055
      %v2162 = vadd.f32 %v1934, %v2060
      %v2163 = vadd.f32 %v1935, %v2063
      %v2164 = vadd.f32 %v1936, %v2068
      %v2165 = vadd.f32 %v1937, %v2071
      %v2166 = vadd.f32 %v1938, %v2076
      %v2167 = vadd.f32 %v1939, %v2079
      %v2168 = vadd.f32 %v1940, %v2084
      %v2169 = vadd.f32 %v1941, %v2087
      %v2170 = vadd.f32 %v1942, %v2092
      %v2171 = vadd.f32 %v1943, %v2095
      %v2172 = vadd.f32 %v1944, %v2100
      %v2173 = vadd.f32 %v1945, %v2103
      %v2174 = vadd.f32 %v1946, %v2108
      %v2175 = vadd.f32 %v1947, %v2111
      %v2176 = vadd.f32 %v1948, %v2116
      %v2177 = vadd.f32 %v1949, %v2119
      %v2178 = vadd.f32 %v1950, %v2124
      %v2179 = vadd.f32 %v1951, %v2127
      %v2180 = vadd.f32 %v1952, %v2132
      %v2181 = vadd.f32 %v1953, %v2135
      %v2182 = vadd.f32 %v1954, %v2140
      %v2183 = vadd.f32 %v1955, %v2143
      %v2184 = vadd.f32 %v1956, %v2148
      %v2185 = vadd.f32 %v1957, %v2151
      %v2187 = vrot.slane %v377, 5
      %v2188 = vrot.slane %v2187, 4
      %v2189 = vrot.slane %v378, 5
      %v2190 = vsel %vm1345, %v2188, %v2189
      %v2191 = vrot.slane %v2189, 4
      %v2192 = vrot.slane %v379, 5
      %v2193 = vsel %vm1345, %v2191, %v2192
      %s2194 = scalar_lea.vmem %s2, 10
      %v2195 = vld [vmem:[%s2194] sm:$0x3]
      %v2196 = vunpack.c.l.b16 %v2190
      %v2197 = vunpack.c.l.b16 %v2193
      %v2198 = vpack.c.b16 %v2197, %v2196
      %v2200 = vsel %vm821, %v2198, 0
      %v2203 = vsel %vm870, %v2195, 0
      %2205 = vmatprep.subr.bf16.mxu0 0
      %2206 = vmatpush1.bf16.msra.mxu0 %v2203
      %2207 = vmatprep.subr.bf16.mxu0 0
      %2208 = vmatpush1.bf16.msra.mxu0 0
      %2209 = vmatprep.subr.bf16.mxu0 0
      %2210 = vmatpush1.bf16.msra.mxu0 0
      %2211 = vmatprep.subr.bf16.mxu0 0
      %2212 = vmatpush1.bf16.msra.mxu0 0
      %2213 = vmatprep.subr.bf16.mxu0 0
      %2214 = vmatpush1.bf16.msra.mxu0 0
      %2215 = vmatprep.subr.bf16.mxu0 0
      %2216 = vmatpush1.bf16.msra.mxu0 0
      %2217 = vmatprep.subr.bf16.mxu0 0
      %2218 = vmatpush1.bf16.msra.mxu0 0
      %2219 = vmatprep.subr.bf16.mxu0 0
      %2220 = vmatpush1.bf16.msra.mxu0 0
      %2221 = vmatprep.subr.bf16.mxu0 0
      %2222 = vmatpush1.bf16.msra.mxu0 0
      %2223 = vmatprep.subr.bf16.mxu0 0
      %2224 = vmatpush1.bf16.msra.mxu0 0
      %2225 = vmatprep.subr.bf16.mxu0 0
      %2226 = vmatpush1.bf16.msra.mxu0 0
      %2227 = vmatprep.subr.bf16.mxu0 0
      %2228 = vmatpush1.bf16.msra.mxu0 0
      %2229 = vmatprep.subr.bf16.mxu0 0
      %2230 = vmatpush1.bf16.msra.mxu0 0
      %2231 = vmatprep.subr.bf16.mxu0 0
      %2232 = vmatpush1.bf16.msra.mxu0 0
      %2233 = vmatprep.subr.bf16.mxu0 0
      %2234 = vmatpush1.bf16.msra.mxu0 0
      %2235 = vmatprep.subr.bf16.mxu0 0
      %2236 = vmatpush1.bf16.msra.mxu0 0
      %2237 = vmatprep.mubr.bf16.mxu0 0
      %2238 = vmatmul.mubr.bf16.gmra.mrb[0].mxu0 %v1512
      %v2239 = vpop.f32.mrb[0].mxu0
      %v2240 = vadd.f32 0.0, %v2239
      %v2241 = vpop.f32.mrb[0].mxu0
      %v2242 = vpop.f32.mrb[0].mxu0
      %v2243 = vadd.f32 0.0, %v2242
      %v2244 = vpop.f32.mrb[0].mxu0
      %2245 = vmatprep.mubr.bf16.mxu0 0
      %2246 = vmatmul.mubr.bf16.gmra.mrb[0].mxu0 %v1515
      %v2247 = vpop.f32.mrb[0].mxu0
      %v2248 = vadd.f32 0.0, %v2247
      %v2249 = vpop.f32.mrb[0].mxu0
      %v2250 = vpop.f32.mrb[0].mxu0
      %v2251 = vadd.f32 0.0, %v2250
      %v2252 = vpop.f32.mrb[0].mxu0
      %2253 = vmatprep.mubr.bf16.mxu0 0
      %2254 = vmatmul.mubr.bf16.gmra.mrb[0].mxu0 %v1518
      %v2255 = vpop.f32.mrb[0].mxu0
      %v2256 = vadd.f32 0.0, %v2255
      %v2257 = vpop.f32.mrb[0].mxu0
      %v2258 = vpop.f32.mrb[0].mxu0
      %v2259 = vadd.f32 0.0, %v2258
      %v2260 = vpop.f32.mrb[0].mxu0
      %2261 = vmatprep.mubr.bf16.mxu0 0
      %2262 = vmatmul.mubr.bf16.gmra.mrb[0].mxu0 %v1521
      %v2263 = vpop.f32.mrb[0].mxu0
      %v2264 = vadd.f32 0.0, %v2263
      %v2265 = vpop.f32.mrb[0].mxu0
      %v2266 = vpop.f32.mrb[0].mxu0
      %v2267 = vadd.f32 0.0, %v2266
      %v2268 = vpop.f32.mrb[0].mxu0
      %2269 = vmatprep.mubr.bf16.mxu0 0
      %2270 = vmatmul.mubr.bf16.gmra.mrb[0].mxu0 %v1524
      %v2271 = vpop.f32.mrb[0].mxu0
      %v2272 = vadd.f32 0.0, %v2271
      %v2273 = vpop.f32.mrb[0].mxu0
      %v2274 = vpop.f32.mrb[0].mxu0
      %v2275 = vadd.f32 0.0, %v2274
      %v2276 = vpop.f32.mrb[0].mxu0
      %2277 = vmatprep.mubr.bf16.mxu0 0
      %2278 = vmatmul.mubr.bf16.gmra.mrb[0].mxu0 %v1527
      %v2279 = vpop.f32.mrb[0].mxu0
      %v2280 = vadd.f32 0.0, %v2279
      %v2281 = vpop.f32.mrb[0].mxu0
      %v2282 = vpop.f32.mrb[0].mxu0
      %v2283 = vadd.f32 0.0, %v2282
      %v2284 = vpop.f32.mrb[0].mxu0
      %2285 = vmatprep.mubr.bf16.mxu0 0
      %2286 = vmatmul.mubr.bf16.gmra.mrb[0].mxu0 %v1530
      %v2287 = vpop.f32.mrb[0].mxu0
      %v2288 = vadd.f32 0.0, %v2287
      %v2289 = vpop.f32.mrb[0].mxu0
      %v2290 = vpop.f32.mrb[0].mxu0
      %v2291 = vadd.f32 0.0, %v2290
      %v2292 = vpop.f32.mrb[0].mxu0
      %2293 = vmatprep.mubr.bf16.mxu0 0
      %2294 = vmatmul.mubr.bf16.gmra.mrb[0].mxu0 %v1533
      %v2295 = vpop.f32.mrb[0].mxu0
      %v2296 = vadd.f32 0.0, %v2295
      %v2297 = vpop.f32.mrb[0].mxu0
      %v2298 = vpop.f32.mrb[0].mxu0
      %v2299 = vadd.f32 0.0, %v2298
      %v2300 = vpop.f32.mrb[0].mxu0
      %2301 = vmatprep.mubr.bf16.mxu0 0
      %2302 = vmatmul.mubr.bf16.gmra.mrb[0].mxu0 %v1536
      %v2303 = vpop.f32.mrb[0].mxu0
      %v2304 = vadd.f32 0.0, %v2303
      %v2305 = vpop.f32.mrb[0].mxu0
      %v2306 = vpop.f32.mrb[0].mxu0
      %v2307 = vadd.f32 0.0, %v2306
      %v2308 = vpop.f32.mrb[0].mxu0
      %2309 = vmatprep.mubr.bf16.mxu0 0
      %2310 = vmatmul.mubr.bf16.gmra.mrb[0].mxu0 %v1539
      %v2311 = vpop.f32.mrb[0].mxu0
      %v2312 = vadd.f32 0.0, %v2311
      %v2313 = vpop.f32.mrb[0].mxu0
      %v2314 = vpop.f32.mrb[0].mxu0
      %v2315 = vadd.f32 0.0, %v2314
      %v2316 = vpop.f32.mrb[0].mxu0
      %2317 = vmatprep.mubr.bf16.mxu0 0
      %2318 = vmatmul.mubr.bf16.gmra.mrb[0].mxu0 %v1542
      %v2319 = vpop.f32.mrb[0].mxu0
      %v2320 = vadd.f32 0.0, %v2319
      %v2321 = vpop.f32.mrb[0].mxu0
      %v2322 = vpop.f32.mrb[0].mxu0
      %v2323 = vadd.f32 0.0, %v2322
      %v2324 = vpop.f32.mrb[0].mxu0
      %2325 = vmatprep.mubr.bf16.mxu0 0
      %2326 = vmatmul.mubr.bf16.gmra.mrb[0].mxu0 %v1545
      %v2327 = vpop.f32.mrb[0].mxu0
      %v2328 = vadd.f32 0.0, %v2327
      %v2329 = vpop.f32.mrb[0].mxu0
      %v2330 = vpop.f32.mrb[0].mxu0
      %v2331 = vadd.f32 0.0, %v2330
      %v2332 = vpop.f32.mrb[0].mxu0
      %2333 = vmatprep.mubr.bf16.mxu0 0
      %2334 = vmatmul.mubr.bf16.gmra.mrb[0].mxu0 %v1548
      %v2335 = vpop.f32.mrb[0].mxu0
      %v2336 = vadd.f32 0.0, %v2335
      %v2337 = vpop.f32.mrb[0].mxu0
      %v2338 = vpop.f32.mrb[0].mxu0
      %v2339 = vadd.f32 0.0, %v2338
      %v2340 = vpop.f32.mrb[0].mxu0
      %2341 = vmatprep.mubr.bf16.mxu0 0
      %2342 = vmatmul.mubr.bf16.gmra.mrb[0].mxu0 %v1551
      %v2343 = vpop.f32.mrb[0].mxu0
      %v2344 = vadd.f32 0.0, %v2343
      %v2345 = vpop.f32.mrb[0].mxu0
      %v2346 = vpop.f32.mrb[0].mxu0
      %v2347 = vadd.f32 0.0, %v2346
      %v2348 = vpop.f32.mrb[0].mxu0
      %2349 = vmatprep.mubr.bf16.mxu0 0
      %2350 = vmatmul.mubr.bf16.gmra.mrb[0].mxu0 %v1554
      %v2351 = vpop.f32.mrb[0].mxu0
      %v2352 = vadd.f32 0.0, %v2351
      %v2353 = vpop.f32.mrb[0].mxu0
      %v2354 = vpop.f32.mrb[0].mxu0
      %v2355 = vadd.f32 0.0, %v2354
      %v2356 = vpop.f32.mrb[0].mxu0
      %2357 = vmatprep.mubr.bf16.mxu0 0
      %2358 = vmatmul.mubr.bf16.gmra.mrb[0].mxu0 %v2200
      %v2359 = vpop.f32.mrb[0].mxu0
      %v2360 = vadd.f32 0.0, %v2359
      %v2361 = vpop.f32.mrb[0].mxu0
      %v2362 = vpop.f32.mrb[0].mxu0
      %v2363 = vadd.f32 0.0, %v2362
      %v2364 = vpop.f32.mrb[0].mxu0
      %2365 = vdwg.mxu0
      %v2366 = vadd.f32 %v2154, %v2240
      %v2367 = vadd.f32 %v2155, %v2243
      %v2368 = vadd.f32 %v2156, %v2248
      %v2369 = vadd.f32 %v2157, %v2251
      %v2370 = vadd.f32 %v2158, %v2256
      %v2371 = vadd.f32 %v2159, %v2259
      %v2372 = vadd.f32 %v2160, %v2264
      %v2373 = vadd.f32 %v2161, %v2267
      %v2374 = vadd.f32 %v2162, %v2272
      %v2375 = vadd.f32 %v2163, %v2275
      %v2376 = vadd.f32 %v2164, %v2280
      %v2377 = vadd.f32 %v2165, %v2283
      %v2378 = vadd.f32 %v2166, %v2288
      %v2379 = vadd.f32 %v2167, %v2291
      %v2380 = vadd.f32 %v2168, %v2296
      %v2381 = vadd.f32 %v2169, %v2299
      %v2382 = vadd.f32 %v2170, %v2304
      %v2383 = vadd.f32 %v2171, %v2307
      %v2384 = vadd.f32 %v2172, %v2312
      %v2385 = vadd.f32 %v2173, %v2315
      %v2386 = vadd.f32 %v2174, %v2320
      %v2387 = vadd.f32 %v2175, %v2323
      %v2388 = vadd.f32 %v2176, %v2328
      %v2389 = vadd.f32 %v2177, %v2331
      %v2390 = vadd.f32 %v2178, %v2336
      %v2391 = vadd.f32 %v2179, %v2339
      %v2392 = vadd.f32 %v2180, %v2344
      %v2393 = vadd.f32 %v2181, %v2347
      %v2394 = vadd.f32 %v2182, %v2352
      %v2395 = vadd.f32 %v2183, %v2355
      %v2396 = vadd.f32 %v2184, %v2360
      %v2397 = vadd.f32 %v2185, %v2363
      %s2398 = scalar_lea.vmem %s2, 12
      %v2399 = vld [vmem:[%s2398] sm:$0x3]
      %v2402 = vunpack.c.l.b16 %v380
      %v2403 = vunpack.c.l.b16 %v381
      %v2404 = vpack.c.b16 %v2403, %v2402
      %v2406 = vsel %vm821, %v2404, 0
      %v2409 = vsel %vm870, %v2399, 0
      %2411 = vmatprep.subr.bf16.mxu0 0
      %2412 = vmatpush1.bf16.msra.mxu0 %v2409
      %2413 = vmatprep.subr.bf16.mxu0 0
      %2414 = vmatpush1.bf16.msra.mxu0 0
      %2415 = vmatprep.subr.bf16.mxu0 0
      %2416 = vmatpush1.bf16.msra.mxu0 0
      %2417 = vmatprep.subr.bf16.mxu0 0
      %2418 = vmatpush1.bf16.msra.mxu0 0
      %2419 = vmatprep.subr.bf16.mxu0 0
      %2420 = vmatpush1.bf16.msra.mxu0 0
      %2421 = vmatprep.subr.bf16.mxu0 0
      %2422 = vmatpush1.bf16.msra.mxu0 0
      %2423 = vmatprep.subr.bf16.mxu0 0
      %2424 = vmatpush1.bf16.msra.mxu0 0
      %2425 = vmatprep.subr.bf16.mxu0 0
      %2426 = vmatpush1.bf16.msra.mxu0 0
      %2427 = vmatprep.subr.bf16.mxu0 0
      %2428 = vmatpush1.bf16.msra.mxu0 0
      %2429 = vmatprep.subr.bf16.mxu0 0
      %2430 = vmatpush1.bf16.msra.mxu0 0
      %2431 = vmatprep.subr.bf16.mxu0 0
      %2432 = vmatpush1.bf16.msra.mxu0 0
      %2433 = vmatprep.subr.bf16.mxu0 0
      %2434 = vmatpush1.bf16.msra.mxu0 0
      %2435 = vmatprep.subr.bf16.mxu0 0
      %2436 = vmatpush1.bf16.msra.mxu0 0
      %2437 = vmatprep.subr.bf16.mxu0 0
      %2438 = vmatpush1.bf16.msra.mxu0 0
      %2439 = vmatprep.subr.bf16.mxu0 0
      %2440 = vmatpush1.bf16.msra.mxu0 0
      %2441 = vmatprep.subr.bf16.mxu0 0
      %2442 = vmatpush1.bf16.msra.mxu0 0
      %2443 = vmatprep.mubr.bf16.mxu0 0
      %2444 = vmatmul.mubr.bf16.gmra.mrb[0].mxu0 %v1122
      %v2445 = vpop.f32.mrb[0].mxu0
      %v2446 = vadd.f32 0.0, %v2445
      %v2447 = vpop.f32.mrb[0].mxu0
      %v2448 = vpop.f32.mrb[0].mxu0
      %v2449 = vadd.f32 0.0, %v2448
      %v2450 = vpop.f32.mrb[0].mxu0
      %2451 = vmatprep.mubr.bf16.mxu0 0
      %2452 = vmatmul.mubr.bf16.gmra.mrb[0].mxu0 %v1125
      %v2453 = vpop.f32.mrb[0].mxu0
      %v2454 = vadd.f32 0.0, %v2453
      %v2455 = vpop.f32.mrb[0].mxu0
      %v2456 = vpop.f32.mrb[0].mxu0
      %v2457 = vadd.f32 0.0, %v2456
      %v2458 = vpop.f32.mrb[0].mxu0
      %2459 = vmatprep.mubr.bf16.mxu0 0
      %2460 = vmatmul.mubr.bf16.gmra.mrb[0].mxu0 %v1128
      %v2461 = vpop.f32.mrb[0].mxu0
      %v2462 = vadd.f32 0.0, %v2461
      %v2463 = vpop.f32.mrb[0].mxu0
      %v2464 = vpop.f32.mrb[0].mxu0
      %v2465 = vadd.f32 0.0, %v2464
      %v2466 = vpop.f32.mrb[0].mxu0
      %2467 = vmatprep.mubr.bf16.mxu0 0
      %2468 = vmatmul.mubr.bf16.gmra.mrb[0].mxu0 %v1131
      %v2469 = vpop.f32.mrb[0].mxu0
      %v2470 = vadd.f32 0.0, %v2469
      %v2471 = vpop.f32.mrb[0].mxu0
      %v2472 = vpop.f32.mrb[0].mxu0
      %v2473 = vadd.f32 0.0, %v2472
      %v2474 = vpop.f32.mrb[0].mxu0
      %2475 = vmatprep.mubr.bf16.mxu0 0
      %2476 = vmatmul.mubr.bf16.gmra.mrb[0].mxu0 %v1134
      %v2477 = vpop.f32.mrb[0].mxu0
      %v2478 = vadd.f32 0.0, %v2477
      %v2479 = vpop.f32.mrb[0].mxu0
      %v2480 = vpop.f32.mrb[0].mxu0
      %v2481 = vadd.f32 0.0, %v2480
      %v2482 = vpop.f32.mrb[0].mxu0
      %2483 = vmatprep.mubr.bf16.mxu0 0
      %2484 = vmatmul.mubr.bf16.gmra.mrb[0].mxu0 %v1137
      %v2485 = vpop.f32.mrb[0].mxu0
      %v2486 = vadd.f32 0.0, %v2485
      %v2487 = vpop.f32.mrb[0].mxu0
      %v2488 = vpop.f32.mrb[0].mxu0
      %v2489 = vadd.f32 0.0, %v2488
      %v2490 = vpop.f32.mrb[0].mxu0
      %2491 = vmatprep.mubr.bf16.mxu0 0
      %2492 = vmatmul.mubr.bf16.gmra.mrb[0].mxu0 %v1140
      %v2493 = vpop.f32.mrb[0].mxu0
      %v2494 = vadd.f32 0.0, %v2493
      %v2495 = vpop.f32.mrb[0].mxu0
      %v2496 = vpop.f32.mrb[0].mxu0
      %v2497 = vadd.f32 0.0, %v2496
      %v2498 = vpop.f32.mrb[0].mxu0
      %2499 = vmatprep.mubr.bf16.mxu0 0
      %2500 = vmatmul.mubr.bf16.gmra.mrb[0].mxu0 %v1143
      %v2501 = vpop.f32.mrb[0].mxu0
      %v2502 = vadd.f32 0.0, %v2501
      %v2503 = vpop.f32.mrb[0].mxu0
      %v2504 = vpop.f32.mrb[0].mxu0
      %v2505 = vadd.f32 0.0, %v2504
      %v2506 = vpop.f32.mrb[0].mxu0
      %2507 = vmatprep.mubr.bf16.mxu0 0
      %2508 = vmatmul.mubr.bf16.gmra.mrb[0].mxu0 %v1146
      %v2509 = vpop.f32.mrb[0].mxu0
      %v2510 = vadd.f32 0.0, %v2509
      %v2511 = vpop.f32.mrb[0].mxu0
      %v2512 = vpop.f32.mrb[0].mxu0
      %v2513 = vadd.f32 0.0, %v2512
      %v2514 = vpop.f32.mrb[0].mxu0
      %2515 = vmatprep.mubr.bf16.mxu0 0
      %2516 = vmatmul.mubr.bf16.gmra.mrb[0].mxu0 %v1149
      %v2517 = vpop.f32.mrb[0].mxu0
      %v2518 = vadd.f32 0.0, %v2517
      %v2519 = vpop.f32.mrb[0].mxu0
      %v2520 = vpop.f32.mrb[0].mxu0
      %v2521 = vadd.f32 0.0, %v2520
      %v2522 = vpop.f32.mrb[0].mxu0
      %2523 = vmatprep.mubr.bf16.mxu0 0
      %2524 = vmatmul.mubr.bf16.gmra.mrb[0].mxu0 %v1152
      %v2525 = vpop.f32.mrb[0].mxu0
      %v2526 = vadd.f32 0.0, %v2525
      %v2527 = vpop.f32.mrb[0].mxu0
      %v2528 = vpop.f32.mrb[0].mxu0
      %v2529 = vadd.f32 0.0, %v2528
      %v2530 = vpop.f32.mrb[0].mxu0
      %2531 = vmatprep.mubr.bf16.mxu0 0
      %2532 = vmatmul.mubr.bf16.gmra.mrb[0].mxu0 %v1155
      %v2533 = vpop.f32.mrb[0].mxu0
      %v2534 = vadd.f32 0.0, %v2533
      %v2535 = vpop.f32.mrb[0].mxu0
      %v2536 = vpop.f32.mrb[0].mxu0
      %v2537 = vadd.f32 0.0, %v2536
      %v2538 = vpop.f32.mrb[0].mxu0
      %2539 = vmatprep.mubr.bf16.mxu0 0
      %2540 = vmatmul.mubr.bf16.gmra.mrb[0].mxu0 %v1158
      %v2541 = vpop.f32.mrb[0].mxu0
      %v2542 = vadd.f32 0.0, %v2541
      %v2543 = vpop.f32.mrb[0].mxu0
      %v2544 = vpop.f32.mrb[0].mxu0
      %v2545 = vadd.f32 0.0, %v2544
      %v2546 = vpop.f32.mrb[0].mxu0
      %2547 = vmatprep.mubr.bf16.mxu0 0
      %2548 = vmatmul.mubr.bf16.gmra.mrb[0].mxu0 %v1161
      %v2549 = vpop.f32.mrb[0].mxu0
      %v2550 = vadd.f32 0.0, %v2549
      %v2551 = vpop.f32.mrb[0].mxu0
      %v2552 = vpop.f32.mrb[0].mxu0
      %v2553 = vadd.f32 0.0, %v2552
      %v2554 = vpop.f32.mrb[0].mxu0
      %2555 = vmatprep.mubr.bf16.mxu0 0
      %2556 = vmatmul.mubr.bf16.gmra.mrb[0].mxu0 %v1760
      %v2557 = vpop.f32.mrb[0].mxu0
      %v2558 = vadd.f32 0.0, %v2557
      %v2559 = vpop.f32.mrb[0].mxu0
      %v2560 = vpop.f32.mrb[0].mxu0
      %v2561 = vadd.f32 0.0, %v2560
      %v2562 = vpop.f32.mrb[0].mxu0
      %2563 = vmatprep.mubr.bf16.mxu0 0
      %2564 = vmatmul.mubr.bf16.gmra.mrb[0].mxu0 %v2406
      %v2565 = vpop.f32.mrb[0].mxu0
      %v2566 = vadd.f32 0.0, %v2565
      %v2567 = vpop.f32.mrb[0].mxu0
      %v2568 = vpop.f32.mrb[0].mxu0
      %v2569 = vadd.f32 0.0, %v2568
      %v2570 = vpop.f32.mrb[0].mxu0
      %2571 = vdwg.mxu0
      %v2572 = vadd.f32 %v2366, %v2446
      %v2573 = vadd.f32 %v2367, %v2449
      %v2574 = vadd.f32 %v2368, %v2454
      %v2575 = vadd.f32 %v2369, %v2457
      %v2576 = vadd.f32 %v2370, %v2462
      %v2577 = vadd.f32 %v2371, %v2465
      %v2578 = vadd.f32 %v2372, %v2470
      %v2579 = vadd.f32 %v2373, %v2473
      %v2580 = vadd.f32 %v2374, %v2478
      %v2581 = vadd.f32 %v2375, %v2481
      %v2582 = vadd.f32 %v2376, %v2486
      %v2583 = vadd.f32 %v2377, %v2489
      %v2584 = vadd.f32 %v2378, %v2494
      %v2585 = vadd.f32 %v2379, %v2497
      %v2586 = vadd.f32 %v2380, %v2502
      %v2587 = vadd.f32 %v2381, %v2505
      %v2588 = vadd.f32 %v2382, %v2510
      %v2589 = vadd.f32 %v2383, %v2513
      %v2590 = vadd.f32 %v2384, %v2518
      %v2591 = vadd.f32 %v2385, %v2521
      %v2592 = vadd.f32 %v2386, %v2526
      %v2593 = vadd.f32 %v2387, %v2529
      %v2594 = vadd.f32 %v2388, %v2534
      %v2595 = vadd.f32 %v2389, %v2537
      %v2596 = vadd.f32 %v2390, %v2542
      %v2597 = vadd.f32 %v2391, %v2545
      %v2598 = vadd.f32 %v2392, %v2550
      %v2599 = vadd.f32 %v2393, %v2553
      %v2600 = vadd.f32 %v2394, %v2558
      %v2601 = vadd.f32 %v2395, %v2561
      %v2602 = vadd.f32 %v2396, %v2566
      %v2603 = vadd.f32 %v2397, %v2569
      %v2605 = vshrl.u32 %v380, 16
      %v2607 = vrot.slane %v2605, 4
      %v2608 = vshll.u32 %v380, 16
      %v2610 = vrot.slane %v2608, 5
      %v2611 = vor.u32 %v2607, %v2610
      %v2612 = vrot.slane %v2611, 4
      %v2614 = vshll.u32 %v381, 16
      %v2616 = vrot.slane %v2614, 5
      %v2617 = vsel %vm386, %v2612, %v2616
      %v2618 = vshrl.u32 %v381, 16
      %v2620 = vrot.slane %v2618, 4
      %v2621 = vor.u32 %v2620, %v2616
      %v2622 = vrot.slane %v2621, 4
      %v2624 = vshll.u32 %v382, 16
      %v2626 = vrot.slane %v2624, 5
      %v2627 = vsel %vm386, %v2622, %v2626
      %s2628 = scalar_lea.vmem %s2, 14
      %v2629 = vld [vmem:[%s2628] sm:$0x3]
      %v2630 = vunpack.c.l.b16 %v2617
      %v2631 = vunpack.c.l.b16 %v2627
      %v2632 = vpack.c.b16 %v2631, %v2630
      %v2634 = vsel %vm821, %v2632, 0
      %v2637 = vsel %vm870, %v2629, 0
      %2639 = vmatprep.subr.bf16.mxu0 0
      %2640 = vmatpush1.bf16.msra.mxu0 %v2637
      %2641 = vmatprep.subr.bf16.mxu0 0
      %2642 = vmatpush1.bf16.msra.mxu0 0
      %2643 = vmatprep.subr.bf16.mxu0 0
      %2644 = vmatpush1.bf16.msra.mxu0 0
      %2645 = vmatprep.subr.bf16.mxu0 0
      %2646 = vmatpush1.bf16.msra.mxu0 0
      %2647 = vmatprep.subr.bf16.mxu0 0
      %2648 = vmatpush1.bf16.msra.mxu0 0
      %2649 = vmatprep.subr.bf16.mxu0 0
      %2650 = vmatpush1.bf16.msra.mxu0 0
      %2651 = vmatprep.subr.bf16.mxu0 0
      %2652 = vmatpush1.bf16.msra.mxu0 0
      %2653 = vmatprep.subr.bf16.mxu0 0
      %2654 = vmatpush1.bf16.msra.mxu0 0
      %2655 = vmatprep.subr.bf16.mxu0 0
      %2656 = vmatpush1.bf16.msra.mxu0 0
      %2657 = vmatprep.subr.bf16.mxu0 0
      %2658 = vmatpush1.bf16.msra.mxu0 0
      %2659 = vmatprep.subr.bf16.mxu0 0
      %2660 = vmatpush1.bf16.msra.mxu0 0
      %2661 = vmatprep.subr.bf16.mxu0 0
      %2662 = vmatpush1.bf16.msra.mxu0 0
      %2663 = vmatprep.subr.bf16.mxu0 0
      %2664 = vmatpush1.bf16.msra.mxu0 0
      %2665 = vmatprep.subr.bf16.mxu0 0
      %2666 = vmatpush1.bf16.msra.mxu0 0
      %2667 = vmatprep.subr.bf16.mxu0 0
      %2668 = vmatpush1.bf16.msra.mxu0 0
      %2669 = vmatprep.subr.bf16.mxu0 0
      %2670 = vmatpush1.bf16.msra.mxu0 0
      %2671 = vmatprep.mubr.bf16.mxu0 0
      %2672 = vmatmul.mubr.bf16.gmra.mrb[0].mxu0 %v829
      %v2673 = vpop.f32.mrb[0].mxu0
      %v2674 = vadd.f32 0.0, %v2673
      %v2675 = vpop.f32.mrb[0].mxu0
      %v2676 = vpop.f32.mrb[0].mxu0
      %v2677 = vadd.f32 0.0, %v2676
      %v2678 = vpop.f32.mrb[0].mxu0
      %2679 = vmatprep.mubr.bf16.mxu0 0
      %2680 = vmatmul.mubr.bf16.gmra.mrb[0].mxu0 %v832
      %v2681 = vpop.f32.mrb[0].mxu0
      %v2682 = vadd.f32 0.0, %v2681
      %v2683 = vpop.f32.mrb[0].mxu0
      %v2684 = vpop.f32.mrb[0].mxu0
      %v2685 = vadd.f32 0.0, %v2684
      %v2686 = vpop.f32.mrb[0].mxu0
      %2687 = vmatprep.mubr.bf16.mxu0 0
      %2688 = vmatmul.mubr.bf16.gmra.mrb[0].mxu0 %v835
      %v2689 = vpop.f32.mrb[0].mxu0
      %v2690 = vadd.f32 0.0, %v2689
      %v2691 = vpop.f32.mrb[0].mxu0
      %v2692 = vpop.f32.mrb[0].mxu0
      %v2693 = vadd.f32 0.0, %v2692
      %v2694 = vpop.f32.mrb[0].mxu0
      %2695 = vmatprep.mubr.bf16.mxu0 0
      %2696 = vmatmul.mubr.bf16.gmra.mrb[0].mxu0 %v838
      %v2697 = vpop.f32.mrb[0].mxu0
      %v2698 = vadd.f32 0.0, %v2697
      %v2699 = vpop.f32.mrb[0].mxu0
      %v2700 = vpop.f32.mrb[0].mxu0
      %v2701 = vadd.f32 0.0, %v2700
      %v2702 = vpop.f32.mrb[0].mxu0
      %2703 = vmatprep.mubr.bf16.mxu0 0
      %2704 = vmatmul.mubr.bf16.gmra.mrb[0].mxu0 %v841
      %v2705 = vpop.f32.mrb[0].mxu0
      %v2706 = vadd.f32 0.0, %v2705
      %v2707 = vpop.f32.mrb[0].mxu0
      %v2708 = vpop.f32.mrb[0].mxu0
      %v2709 = vadd.f32 0.0, %v2708
      %v2710 = vpop.f32.mrb[0].mxu0
      %2711 = vmatprep.mubr.bf16.mxu0 0
      %2712 = vmatmul.mubr.bf16.gmra.mrb[0].mxu0 %v844
      %v2713 = vpop.f32.mrb[0].mxu0
      %v2714 = vadd.f32 0.0, %v2713
      %v2715 = vpop.f32.mrb[0].mxu0
      %v2716 = vpop.f32.mrb[0].mxu0
      %v2717 = vadd.f32 0.0, %v2716
      %v2718 = vpop.f32.mrb[0].mxu0
      %2719 = vmatprep.mubr.bf16.mxu0 0
      %2720 = vmatmul.mubr.bf16.gmra.mrb[0].mxu0 %v847
      %v2721 = vpop.f32.mrb[0].mxu0
      %v2722 = vadd.f32 0.0, %v2721
      %v2723 = vpop.f32.mrb[0].mxu0
      %v2724 = vpop.f32.mrb[0].mxu0
      %v2725 = vadd.f32 0.0, %v2724
      %v2726 = vpop.f32.mrb[0].mxu0
      %2727 = vmatprep.mubr.bf16.mxu0 0
      %2728 = vmatmul.mubr.bf16.gmra.mrb[0].mxu0 %v850
      %v2729 = vpop.f32.mrb[0].mxu0
      %v2730 = vadd.f32 0.0, %v2729
      %v2731 = vpop.f32.mrb[0].mxu0
      %v2732 = vpop.f32.mrb[0].mxu0
      %v2733 = vadd.f32 0.0, %v2732
      %v2734 = vpop.f32.mrb[0].mxu0
      %2735 = vmatprep.mubr.bf16.mxu0 0
      %2736 = vmatmul.mubr.bf16.gmra.mrb[0].mxu0 %v853
      %v2737 = vpop.f32.mrb[0].mxu0
      %v2738 = vadd.f32 0.0, %v2737
      %v2739 = vpop.f32.mrb[0].mxu0
      %v2740 = vpop.f32.mrb[0].mxu0
      %v2741 = vadd.f32 0.0, %v2740
      %v2742 = vpop.f32.mrb[0].mxu0
      %2743 = vmatprep.mubr.bf16.mxu0 0
      %2744 = vmatmul.mubr.bf16.gmra.mrb[0].mxu0 %v856
      %v2745 = vpop.f32.mrb[0].mxu0
      %v2746 = vadd.f32 0.0, %v2745
      %v2747 = vpop.f32.mrb[0].mxu0
      %v2748 = vpop.f32.mrb[0].mxu0
      %v2749 = vadd.f32 0.0, %v2748
      %v2750 = vpop.f32.mrb[0].mxu0
      %2751 = vmatprep.mubr.bf16.mxu0 0
      %2752 = vmatmul.mubr.bf16.gmra.mrb[0].mxu0 %v859
      %v2753 = vpop.f32.mrb[0].mxu0
      %v2754 = vadd.f32 0.0, %v2753
      %v2755 = vpop.f32.mrb[0].mxu0
      %v2756 = vpop.f32.mrb[0].mxu0
      %v2757 = vadd.f32 0.0, %v2756
      %v2758 = vpop.f32.mrb[0].mxu0
      %2759 = vmatprep.mubr.bf16.mxu0 0
      %2760 = vmatmul.mubr.bf16.gmra.mrb[0].mxu0 %v862
      %v2761 = vpop.f32.mrb[0].mxu0
      %v2762 = vadd.f32 0.0, %v2761
      %v2763 = vpop.f32.mrb[0].mxu0
      %v2764 = vpop.f32.mrb[0].mxu0
      %v2765 = vadd.f32 0.0, %v2764
      %v2766 = vpop.f32.mrb[0].mxu0
      %2767 = vmatprep.mubr.bf16.mxu0 0
      %2768 = vmatmul.mubr.bf16.gmra.mrb[0].mxu0 %v865
      %v2769 = vpop.f32.mrb[0].mxu0
      %v2770 = vadd.f32 0.0, %v2769
      %v2771 = vpop.f32.mrb[0].mxu0
      %v2772 = vpop.f32.mrb[0].mxu0
      %v2773 = vadd.f32 0.0, %v2772
      %v2774 = vpop.f32.mrb[0].mxu0
      %2775 = vmatprep.mubr.bf16.mxu0 0
      %2776 = vmatmul.mubr.bf16.gmra.mrb[0].mxu0 %v868
      %v2777 = vpop.f32.mrb[0].mxu0
      %v2778 = vadd.f32 0.0, %v2777
      %v2779 = vpop.f32.mrb[0].mxu0
      %v2780 = vpop.f32.mrb[0].mxu0
      %v2781 = vadd.f32 0.0, %v2780
      %v2782 = vpop.f32.mrb[0].mxu0
      %2783 = vmatprep.mubr.bf16.mxu0 0
      %2784 = vmatmul.mubr.bf16.gmra.mrb[0].mxu0 %v1988
      %v2785 = vpop.f32.mrb[0].mxu0
      %v2786 = vadd.f32 0.0, %v2785
      %v2787 = vpop.f32.mrb[0].mxu0
      %v2788 = vpop.f32.mrb[0].mxu0
      %v2789 = vadd.f32 0.0, %v2788
      %v2790 = vpop.f32.mrb[0].mxu0
      %2791 = vmatprep.mubr.bf16.mxu0 0
      %2792 = vmatmul.mubr.bf16.gmra.mrb[0].mxu0 %v2634
      %v2793 = vpop.f32.mrb[0].mxu0
      %v2794 = vadd.f32 0.0, %v2793
      %v2795 = vpop.f32.mrb[0].mxu0
      %v2796 = vpop.f32.mrb[0].mxu0
      %v2797 = vadd.f32 0.0, %v2796
      %v2798 = vpop.f32.mrb[0].mxu0
      %2799 = vdwg.mxu0
      %v2800 = vadd.f32 %v2572, %v2674
      %v2801 = vadd.f32 %v2573, %v2677
      %v2802 = vadd.f32 %v2574, %v2682
      %v2803 = vadd.f32 %v2575, %v2685
      %v2804 = vadd.f32 %v2576, %v2690
      %v2805 = vadd.f32 %v2577, %v2693
      %v2806 = vadd.f32 %v2578, %v2698
      %v2807 = vadd.f32 %v2579, %v2701
      %v2808 = vadd.f32 %v2580, %v2706
      %v2809 = vadd.f32 %v2581, %v2709
      %v2810 = vadd.f32 %v2582, %v2714
      %v2811 = vadd.f32 %v2583, %v2717
      %v2812 = vadd.f32 %v2584, %v2722
      %v2813 = vadd.f32 %v2585, %v2725
      %v2814 = vadd.f32 %v2586, %v2730
      %v2815 = vadd.f32 %v2587, %v2733
      %v2816 = vadd.f32 %v2588, %v2738
      %v2817 = vadd.f32 %v2589, %v2741
      %v2818 = vadd.f32 %v2590, %v2746
      %v2819 = vadd.f32 %v2591, %v2749
      %v2820 = vadd.f32 %v2592, %v2754
      %v2821 = vadd.f32 %v2593, %v2757
      %v2822 = vadd.f32 %v2594, %v2762
      %v2823 = vadd.f32 %v2595, %v2765
      %v2824 = vadd.f32 %v2596, %v2770
      %v2825 = vadd.f32 %v2597, %v2773
      %v2826 = vadd.f32 %v2598, %v2778
      %v2827 = vadd.f32 %v2599, %v2781
      %v2828 = vadd.f32 %v2600, %v2786
      %v2829 = vadd.f32 %v2601, %v2789
      %v2830 = vadd.f32 %v2602, %v2794
      %v2831 = vadd.f32 %v2603, %v2797
      %v2833 = vrot.slane %v380, 5
      %v2834 = vrot.slane %v2833, 4
      %v2835 = vrot.slane %v381, 5
      %v2836 = vsel %vm1345, %v2834, %v2835
      %v2837 = vrot.slane %v2835, 4
      %v2838 = vrot.slane %v382, 5
      %v2839 = vsel %vm1345, %v2837, %v2838
      %s2840 = scalar_lea.vmem %s2, 16
      %v2841 = vld [vmem:[%s2840] sm:$0x3]
      %v2842 = vunpack.c.l.b16 %v2836
      %v2843 = vunpack.c.l.b16 %v2839
      %v2844 = vpack.c.b16 %v2843, %v2842
      %v2846 = vsel %vm821, %v2844, 0
      %v2849 = vsel %vm870, %v2841, 0
      %2851 = vmatprep.subr.bf16.mxu0 0
      %2852 = vmatpush1.bf16.msra.mxu0 %v2849
      %2853 = vmatprep.subr.bf16.mxu0 0
      %2854 = vmatpush1.bf16.msra.mxu0 0
      %2855 = vmatprep.subr.bf16.mxu0 0
      %2856 = vmatpush1.bf16.msra.mxu0 0
      %2857 = vmatprep.subr.bf16.mxu0 0
      %2858 = vmatpush1.bf16.msra.mxu0 0
      %2859 = vmatprep.subr.bf16.mxu0 0
      %2860 = vmatpush1.bf16.msra.mxu0 0
      %2861 = vmatprep.subr.bf16.mxu0 0
      %2862 = vmatpush1.bf16.msra.mxu0 0
      %2863 = vmatprep.subr.bf16.mxu0 0
      %2864 = vmatpush1.bf16.msra.mxu0 0
      %2865 = vmatprep.subr.bf16.mxu0 0
      %2866 = vmatpush1.bf16.msra.mxu0 0
      %2867 = vmatprep.subr.bf16.mxu0 0
      %2868 = vmatpush1.bf16.msra.mxu0 0
      %2869 = vmatprep.subr.bf16.mxu0 0
      %2870 = vmatpush1.bf16.msra.mxu0 0
      %2871 = vmatprep.subr.bf16.mxu0 0
      %2872 = vmatpush1.bf16.msra.mxu0 0
      %2873 = vmatprep.subr.bf16.mxu0 0
      %2874 = vmatpush1.bf16.msra.mxu0 0
      %2875 = vmatprep.subr.bf16.mxu0 0
      %2876 = vmatpush1.bf16.msra.mxu0 0
      %2877 = vmatprep.subr.bf16.mxu0 0
      %2878 = vmatpush1.bf16.msra.mxu0 0
      %2879 = vmatprep.subr.bf16.mxu0 0
      %2880 = vmatpush1.bf16.msra.mxu0 0
      %2881 = vmatprep.subr.bf16.mxu0 0
      %2882 = vmatpush1.bf16.msra.mxu0 0
      %2883 = vmatprep.mubr.bf16.mxu0 0
      %2884 = vmatmul.mubr.bf16.gmra.mrb[0].mxu0 %v1515
      %v2885 = vpop.f32.mrb[0].mxu0
      %v2886 = vadd.f32 0.0, %v2885
      %v2887 = vpop.f32.mrb[0].mxu0
      %v2888 = vpop.f32.mrb[0].mxu0
      %v2889 = vadd.f32 0.0, %v2888
      %v2890 = vpop.f32.mrb[0].mxu0
      %2891 = vmatprep.mubr.bf16.mxu0 0
      %2892 = vmatmul.mubr.bf16.gmra.mrb[0].mxu0 %v1518
      %v2893 = vpop.f32.mrb[0].mxu0
      %v2894 = vadd.f32 0.0, %v2893
      %v2895 = vpop.f32.mrb[0].mxu0
      %v2896 = vpop.f32.mrb[0].mxu0
      %v2897 = vadd.f32 0.0, %v2896
      %v2898 = vpop.f32.mrb[0].mxu0
      %2899 = vmatprep.mubr.bf16.mxu0 0
      %2900 = vmatmul.mubr.bf16.gmra.mrb[0].mxu0 %v1521
      %v2901 = vpop.f32.mrb[0].mxu0
      %v2902 = vadd.f32 0.0, %v2901
      %v2903 = vpop.f32.mrb[0].mxu0
      %v2904 = vpop.f32.mrb[0].mxu0
      %v2905 = vadd.f32 0.0, %v2904
      %v2906 = vpop.f32.mrb[0].mxu0
      %2907 = vmatprep.mubr.bf16.mxu0 0
      %2908 = vmatmul.mubr.bf16.gmra.mrb[0].mxu0 %v1524
      %v2909 = vpop.f32.mrb[0].mxu0
      %v2910 = vadd.f32 0.0, %v2909
      %v2911 = vpop.f32.mrb[0].mxu0
      %v2912 = vpop.f32.mrb[0].mxu0
      %v2913 = vadd.f32 0.0, %v2912
      %v2914 = vpop.f32.mrb[0].mxu0
      %2915 = vmatprep.mubr.bf16.mxu0 0
      %2916 = vmatmul.mubr.bf16.gmra.mrb[0].mxu0 %v1527
      %v2917 = vpop.f32.mrb[0].mxu0
      %v2918 = vadd.f32 0.0, %v2917
      %v2919 = vpop.f32.mrb[0].mxu0
      %v2920 = vpop.f32.mrb[0].mxu0
      %v2921 = vadd.f32 0.0, %v2920
      %v2922 = vpop.f32.mrb[0].mxu0
      %2923 = vmatprep.mubr.bf16.mxu0 0
      %2924 = vmatmul.mubr.bf16.gmra.mrb[0].mxu0 %v1530
      %v2925 = vpop.f32.mrb[0].mxu0
      %v2926 = vadd.f32 0.0, %v2925
      %v2927 = vpop.f32.mrb[0].mxu0
      %v2928 = vpop.f32.mrb[0].mxu0
      %v2929 = vadd.f32 0.0, %v2928
      %v2930 = vpop.f32.mrb[0].mxu0
      %2931 = vmatprep.mubr.bf16.mxu0 0
      %2932 = vmatmul.mubr.bf16.gmra.mrb[0].mxu0 %v1533
      %v2933 = vpop.f32.mrb[0].mxu0
      %v2934 = vadd.f32 0.0, %v2933
      %v2935 = vpop.f32.mrb[0].mxu0
      %v2936 = vpop.f32.mrb[0].mxu0
      %v2937 = vadd.f32 0.0, %v2936
      %v2938 = vpop.f32.mrb[0].mxu0
      %2939 = vmatprep.mubr.bf16.mxu0 0
      %2940 = vmatmul.mubr.bf16.gmra.mrb[0].mxu0 %v1536
      %v2941 = vpop.f32.mrb[0].mxu0
      %v2942 = vadd.f32 0.0, %v2941
      %v2943 = vpop.f32.mrb[0].mxu0
      %v2944 = vpop.f32.mrb[0].mxu0
      %v2945 = vadd.f32 0.0, %v2944
      %v2946 = vpop.f32.mrb[0].mxu0
      %2947 = vmatprep.mubr.bf16.mxu0 0
      %2948 = vmatmul.mubr.bf16.gmra.mrb[0].mxu0 %v1539
      %v2949 = vpop.f32.mrb[0].mxu0
      %v2950 = vadd.f32 0.0, %v2949
      %v2951 = vpop.f32.mrb[0].mxu0
      %v2952 = vpop.f32.mrb[0].mxu0
      %v2953 = vadd.f32 0.0, %v2952
      %v2954 = vpop.f32.mrb[0].mxu0
      %2955 = vmatprep.mubr.bf16.mxu0 0
      %2956 = vmatmul.mubr.bf16.gmra.mrb[0].mxu0 %v1542
      %v2957 = vpop.f32.mrb[0].mxu0
      %v2958 = vadd.f32 0.0, %v2957
      %v2959 = vpop.f32.mrb[0].mxu0
      %v2960 = vpop.f32.mrb[0].mxu0
      %v2961 = vadd.f32 0.0, %v2960
      %v2962 = vpop.f32.mrb[0].mxu0
      %2963 = vmatprep.mubr.bf16.mxu0 0
      %2964 = vmatmul.mubr.bf16.gmra.mrb[0].mxu0 %v1545
      %v2965 = vpop.f32.mrb[0].mxu0
      %v2966 = vadd.f32 0.0, %v2965
      %v2967 = vpop.f32.mrb[0].mxu0
      %v2968 = vpop.f32.mrb[0].mxu0
      %v2969 = vadd.f32 0.0, %v2968
      %v2970 = vpop.f32.mrb[0].mxu0
      %2971 = vmatprep.mubr.bf16.mxu0 0
      %2972 = vmatmul.mubr.bf16.gmra.mrb[0].mxu0 %v1548
      %v2973 = vpop.f32.mrb[0].mxu0
      %v2974 = vadd.f32 0.0, %v2973
      %v2975 = vpop.f32.mrb[0].mxu0
      %v2976 = vpop.f32.mrb[0].mxu0
      %v2977 = vadd.f32 0.0, %v2976
      %v2978 = vpop.f32.mrb[0].mxu0
      %2979 = vmatprep.mubr.bf16.mxu0 0
      %2980 = vmatmul.mubr.bf16.gmra.mrb[0].mxu0 %v1551
      %v2981 = vpop.f32.mrb[0].mxu0
      %v2982 = vadd.f32 0.0, %v2981
      %v2983 = vpop.f32.mrb[0].mxu0
      %v2984 = vpop.f32.mrb[0].mxu0
      %v2985 = vadd.f32 0.0, %v2984
      %v2986 = vpop.f32.mrb[0].mxu0
      %2987 = vmatprep.mubr.bf16.mxu0 0
      %2988 = vmatmul.mubr.bf16.gmra.mrb[0].mxu0 %v1554
      %v2989 = vpop.f32.mrb[0].mxu0
      %v2990 = vadd.f32 0.0, %v2989
      %v2991 = vpop.f32.mrb[0].mxu0
      %v2992 = vpop.f32.mrb[0].mxu0
      %v2993 = vadd.f32 0.0, %v2992
      %v2994 = vpop.f32.mrb[0].mxu0
      %2995 = vmatprep.mubr.bf16.mxu0 0
      %2996 = vmatmul.mubr.bf16.gmra.mrb[0].mxu0 %v2200
      %v2997 = vpop.f32.mrb[0].mxu0
      %v2998 = vadd.f32 0.0, %v2997
      %v2999 = vpop.f32.mrb[0].mxu0
      %v3000 = vpop.f32.mrb[0].mxu0
      %v3001 = vadd.f32 0.0, %v3000
      %v3002 = vpop.f32.mrb[0].mxu0
      %3003 = vmatprep.mubr.bf16.mxu0 0
      %3004 = vmatmul.mubr.bf16.gmra.mrb[0].mxu0 %v2846
      %v3005 = vpop.f32.mrb[0].mxu0
      %v3006 = vadd.f32 0.0, %v3005
      %v3007 = vpop.f32.mrb[0].mxu0
      %v3008 = vpop.f32.mrb[0].mxu0
      %v3009 = vadd.f32 0.0, %v3008
      %v3010 = vpop.f32.mrb[0].mxu0
      %3011 = vdwg.mxu0
      %v3012 = vadd.f32 %v2800, %v2886
      %v3013 = vadd.f32 %v2801, %v2889
      %v3014 = vadd.f32 %v2802, %v2894
      %v3015 = vadd.f32 %v2803, %v2897
      %v3016 = vadd.f32 %v2804, %v2902
      %v3017 = vadd.f32 %v2805, %v2905
      %v3018 = vadd.f32 %v2806, %v2910
      %v3019 = vadd.f32 %v2807, %v2913
      %v3020 = vadd.f32 %v2808, %v2918
      %v3021 = vadd.f32 %v2809, %v2921
      %v3022 = vadd.f32 %v2810, %v2926
      %v3023 = vadd.f32 %v2811, %v2929
      %v3024 = vadd.f32 %v2812, %v2934
      %v3025 = vadd.f32 %v2813, %v2937
      %v3026 = vadd.f32 %v2814, %v2942
      %v3027 = vadd.f32 %v2815, %v2945
      %v3028 = vadd.f32 %v2816, %v2950
      %v3029 = vadd.f32 %v2817, %v2953
      %v3030 = vadd.f32 %v2818, %v2958
      %v3031 = vadd.f32 %v2819, %v2961
      %v3032 = vadd.f32 %v2820, %v2966
      %v3033 = vadd.f32 %v2821, %v2969
      %v3034 = vadd.f32 %v2822, %v2974
      %v3035 = vadd.f32 %v2823, %v2977
      %v3036 = vadd.f32 %v2824, %v2982
      %v3037 = vadd.f32 %v2825, %v2985
      %v3038 = vadd.f32 %v2826, %v2990
      %v3039 = vadd.f32 %v2827, %v2993
      %v3040 = vadd.f32 %v2828, %v2998
      %v3041 = vadd.f32 %v2829, %v3001
      %v3042 = vadd.f32 %v2830, %v3006
      %v3043 = vadd.f32 %v2831, %v3009
      %v3044 = vadd.f32 %v3012, %v3013
      %v3045 = vadd.f32 %v3044, %v3014
      %v3046 = vadd.f32 %v3045, %v3015
      %v3047 = vadd.f32 %v3046, %v3016
      %v3048 = vadd.f32 %v3047, %v3017
      %v3049 = vadd.f32 %v3048, %v3018
      %v3050 = vadd.f32 %v3049, %v3019
      %v3051 = vadd.f32 %v3050, %v3020
      %v3052 = vadd.f32 %v3051, %v3021
      %v3053 = vadd.f32 %v3052, %v3022
      %v3054 = vadd.f32 %v3053, %v3023
      %v3055 = vadd.f32 %v3054, %v3024
      %v3056 = vadd.f32 %v3055, %v3025
      %v3057 = vadd.f32 %v3056, %v3026
      %v3058 = vadd.f32 %v3057, %v3027
      %v3059 = vadd.f32 %v3058, %v3028
      %v3060 = vadd.f32 %v3059, %v3029
      %v3061 = vadd.f32 %v3060, %v3030
      %v3062 = vadd.f32 %v3061, %v3031
      %v3063 = vadd.f32 %v3062, %v3032
      %v3064 = vadd.f32 %v3063, %v3033
      %v3065 = vadd.f32 %v3064, %v3034
      %v3066 = vadd.f32 %v3065, %v3035
      %v3067 = vadd.f32 %v3066, %v3036
      %v3068 = vadd.f32 %v3067, %v3037
      %v3069 = vadd.f32 %v3068, %v3038
      %v3070 = vadd.f32 %v3069, %v3039
      %v3071 = vadd.f32 %v3070, %v3040
      %v3072 = vadd.f32 %v3071, %v3041
      %v3073 = vadd.f32 %v3072, %v3042
      %v3074 = vadd.f32 %v3073, %v3043
      %v3075 = vrot.slane %v3074, 4
      %v3076 = vadd.f32 %v3074, %v3075
      %v3077 = vrot.slane %v3076, 2
      %v3078 = vadd.f32 %v3076, %v3077
      %v3079 = vrot.slane %v3078, 1
      %v3080 = vadd.f32 %v3078, %v3079
      %3081 = vst [vmem:[%s321] sm:$0x1] %v3080
      %v3082 = vmul.f32 %v3012, %v3012
      %v3083 = vmul.f32 %v3013, %v3013
      %v3084 = vmul.f32 %v3014, %v3014
      %v3085 = vmul.f32 %v3015, %v3015
      %v3086 = vmul.f32 %v3016, %v3016
      %v3087 = vmul.f32 %v3017, %v3017
      %v3088 = vmul.f32 %v3018, %v3018
      %v3089 = vmul.f32 %v3019, %v3019
      %v3090 = vmul.f32 %v3020, %v3020
      %v3091 = vmul.f32 %v3021, %v3021
      %v3092 = vmul.f32 %v3022, %v3022
      %v3093 = vmul.f32 %v3023, %v3023
      %v3094 = vmul.f32 %v3024, %v3024
      %v3095 = vmul.f32 %v3025, %v3025
      %v3096 = vmul.f32 %v3026, %v3026
      %v3097 = vmul.f32 %v3027, %v3027
      %v3098 = vmul.f32 %v3028, %v3028
      %v3099 = vmul.f32 %v3029, %v3029
      %v3100 = vmul.f32 %v3030, %v3030
      %v3101 = vmul.f32 %v3031, %v3031
      %v3102 = vmul.f32 %v3032, %v3032
      %v3103 = vmul.f32 %v3033, %v3033
      %v3104 = vmul.f32 %v3034, %v3034
      %v3105 = vmul.f32 %v3035, %v3035
      %v3106 = vmul.f32 %v3036, %v3036
      %v3107 = vmul.f32 %v3037, %v3037
      %v3108 = vmul.f32 %v3038, %v3038
      %v3109 = vmul.f32 %v3039, %v3039
      %v3110 = vmul.f32 %v3040, %v3040
      %v3111 = vmul.f32 %v3041, %v3041
      %v3112 = vmul.f32 %v3042, %v3042
      %v3113 = vmul.f32 %v3043, %v3043
      %v3114 = vadd.f32 %v3082, %v3083
      %v3115 = vadd.f32 %v3114, %v3084
      %v3116 = vadd.f32 %v3115, %v3085
      %v3117 = vadd.f32 %v3116, %v3086
      %v3118 = vadd.f32 %v3117, %v3087
      %v3119 = vadd.f32 %v3118, %v3088
      %v3120 = vadd.f32 %v3119, %v3089
      %v3121 = vadd.f32 %v3120, %v3090
      %v3122 = vadd.f32 %v3121, %v3091
      %v3123 = vadd.f32 %v3122, %v3092
      %v3124 = vadd.f32 %v3123, %v3093
      %v3125 = vadd.f32 %v3124, %v3094
      %v3126 = vadd.f32 %v3125, %v3095
      %v3127 = vadd.f32 %v3126, %v3096
      %v3128 = vadd.f32 %v3127, %v3097
      %v3129 = vadd.f32 %v3128, %v3098
      %v3130 = vadd.f32 %v3129, %v3099
      %v3131 = vadd.f32 %v3130, %v3100
      %v3132 = vadd.f32 %v3131, %v3101
      %v3133 = vadd.f32 %v3132, %v3102
      %v3134 = vadd.f32 %v3133, %v3103
      %v3135 = vadd.f32 %v3134, %v3104
      %v3136 = vadd.f32 %v3135, %v3105
      %v3137 = vadd.f32 %v3136, %v3106
      %v3138 = vadd.f32 %v3137, %v3107
      %v3139 = vadd.f32 %v3138, %v3108
      %v3140 = vadd.f32 %v3139, %v3109
      %v3141 = vadd.f32 %v3140, %v3110
      %v3142 = vadd.f32 %v3141, %v3111
      %v3143 = vadd.f32 %v3142, %v3112
      %v3144 = vadd.f32 %v3143, %v3113
      %v3145 = vrot.slane %v3144, 4
      %v3146 = vadd.f32 %v3144, %v3145
      %v3147 = vrot.slane %v3146, 2
      %v3148 = vadd.f32 %v3146, %v3147
      %v3149 = vrot.slane %v3148, 1
      %v3150 = vadd.f32 %v3148, %v3149
      %3151 = vst [vmem:[%s327] sm:$0x1] %v3150
      %p3152 = scmp.lt.s32.totalorder %s20, 1
      %s3153 = scalar_select %p3152, %s20, 1
      %p3154 = scmp.lt.s32.totalorder %s21, 0
      %s3155 = scalar_select %p3154, %s21, 0
      %s3156 = sadd.s32 %s3155, %s3153
      %s3157 = scalar_lea.vmem %s3, %s3156
      %p3158 = scmp.lt.s32.totalorder %s20, 1
      %s3159 = scalar_select %p3158, %s20, 1
      %p3160 = scmp.lt.s32.totalorder %s21, 0
      %s3161 = scalar_select %p3160, %s21, 0
      %s3162 = sadd.s32 %s3161, %s3159
      %s3163 = scalar_lea.vmem %s4, %s3162
      // Predicated region
      $region33: #{convlayer_forward.2} parent=31 // pred_check
        %p3164 = pneg %p129
      $region34: #{convlayer_forward.2} parent=31 // pred_check_branch
        %3166 = sbr.rel (%p3164) target = $region36
      $region35: #{convlayer_forward.2} parent=31 // pred_region
        _
      $region36: #{convlayer_forward.2} parent=31 // pred_fallthru
        _
      // Predicated region
      $region37: #{convlayer_forward.2} parent=31 // pred_check
        %p3167 = pneg %p157
      $region38: #{convlayer_forward.2} parent=31 // pred_check_branch
        %3169 = sbr.rel (%p3167) target = $region40
      $region39: #{convlayer_forward.2} parent=31 // pred_region
        _
      $region40: #{convlayer_forward.2} parent=31 // pred_fallthru
        _
    $region32: #{convlayer_forward.2} parent=5 // pred_fallthru
      _
    %p3170 = scmp.le.s32.totalorder 2, %s11
    // Predicated region
    $region41: #{convlayer_forward.2} parent=5 // pred_check
      %p3171 = pneg %p3170
    $region42: #{convlayer_forward.2} parent=5 // pred_check_branch
      %3173 = sbr.rel (%p3171) target = $region44
    $region43: #{convlayer_forward.2} parent=5 // pred_region
      %s3174 = ssub.s32 %s11, 2
      // Predicated region
      $region45: #{convlayer_forward.2} parent=43 // pred_check
        %p3175 = pneg %p135
      $region46: #{convlayer_forward.2} parent=43 // pred_check_branch
        %3177 = sbr.rel (%p3175) target = $region48
      $region47: #{convlayer_forward.2} parent=43 // pred_region
        %p3178 = scmp.lt.s32.totalorder %s22, 1
        %s3179 = scalar_select %p3178, %s22, 1
        %p3180 = scmp.lt.s32.totalorder %s23, 0
        %s3181 = scalar_select %p3180, %s23, 0
        %s3182 = sadd.s32 %s3181, %s3179
        %s3183 = scalar_lea.vmem %s3, %s3182
      $region48: #{convlayer_forward.2} parent=43 // pred_fallthru
        _
      // Predicated region
      $region49: #{convlayer_forward.2} parent=43 // pred_check
        %p3184 = pneg %p163
      $region50: #{convlayer_forward.2} parent=43 // pred_check_branch
        %3186 = sbr.rel (%p3184) target = $region52
      $region51: #{convlayer_forward.2} parent=43 // pred_region
        %p3187 = scmp.lt.s32.totalorder %s22, 1
        %s3188 = scalar_select %p3187, %s22, 1
        %p3189 = scmp.lt.s32.totalorder %s23, 0
        %s3190 = scalar_select %p3189, %s23, 0
        %s3191 = sadd.s32 %s3190, %s3188
        %s3192 = scalar_lea.vmem %s4, %s3191
      $region52: #{convlayer_forward.2} parent=43 // pred_fallthru
        _
    $region44: #{convlayer_forward.2} parent=5 // pred_fallthru
      _
  $region6: #{convlayer_forward.2} parent=0 // loop_footer
    %s15 = sadd.s32 1, %s11
  $region7: #{convlayer_forward.2} parent=0 // loop_footer_branch
    %10 = sbr.rel target = $region3
  $region8: #{convlayer_forward.2} parent=0 // loop_exit
    _

// kernel: convlayer_forward.3
$region0: #{convlayer_forward.3}
  #allocation0 [shape = 'u32[]', space=smem, size = 0x4, offset = 0x4, fixed_abs, tag = 'smem constant byte address 0x4 - core index']
  #allocation1 [shape = 'u32[144,128]{1,0:T(1,128)}', space=vmem, size = 0x12000, scoped, tag = 'internal scratch']
  %s0 = inlined_call_operand.vmem [shape: bf16[2,18,18,4], index: 0, kind: input, shape index: {}, may-alias: {0,1}]
  %s1 = inlined_call_operand.vmem [shape: bf16[2,18,18,4], index: 1, kind: input, shape index: {}, may-alias: {0,1}]
  %s2 = inlined_call_operand.vmem [shape: bf16[3,3,4,128], index: 2, kind: input, shape index: {}]
  %s3 = inlined_call_operand.vmem [shape: f32[1,128], index: 3, kind: input, shape index: {}]
  %s4 = inlined_call_operand.vmem [shape: f32[1,128], index: 4, kind: input, shape index: {}]
  %s5 = inlined_call_operand.vmem [shape: bf16[2,256,128], index: 5, kind: output, shape index: {}]
  %s6 = sld [smem:[#allocation0]]
  $region53: #{convlayer_forward.3} parent=0
    _
  %s8 = ssub.s32 1, %s6
  %s9 = scalar_select 0, %s8, %s6
  loop: start=0, step=1, limit=4
  $region2: #{convlayer_forward.3} parent=0 // loop_pre_header
    _
  $region3: #{convlayer_forward.3} parent=0 // loop_header
    %s11 = sphi 0, %s15
    %p12 = scmp.ge.s32.totalorder %s11, 4
    %s18 = sphi 0, %s30
    %s19 = sphi 0, %s26
    %s20 = sphi 0, %s18
    %s21 = sphi 0, %s19
    %s22 = sphi 0, %s20
    %s23 = sphi 0, %s21
    %s35 = sphi 0, %s37
    %s38 = sphi 0, %s35
    %s39 = sphi 0, %s38
    %s55 = sphi 0, %s39
    %s67 = sphi 0, %s69
    %s70 = sphi 0, %s67
    %s71 = sphi 0, %s70
    %s87 = sphi 0, %s71
    %s91 = sphi 0, %s91
    %s93 = sphi 0, %s91
    %s94 = sphi 0, %s93
    %s108 = sphi 0, %s94
    %s112 = sphi 0, %s112
    %s114 = sphi 0, %s112
    %s115 = sphi 0, %s114
    %s129 = sphi 0, %s115
    %s133 = sphi 0, %s133
    %s135 = sphi 0, %s133
    %s136 = sphi 0, %s135
    %s150 = sphi 0, %s136
    %s158 = sphi 0, %s160
    %s161 = sphi 0, %s158
    %s162 = sphi 0, %s161
    %s178 = sphi 0, %s162
  $region4: #{convlayer_forward.3} parent=0 // loop_header_branch
    %14 = sbr.rel (%p12) target = $region8
  $region5: #{convlayer_forward.3} parent=0 // loop_body
    %s16 = ssub.s32 %s11, 1
    %s17 = ssub.s32 %s11, 2
    %s24 = sadd.s32 1, %s19
    %p25 = scmp.ge.s32.totalorder %s24, 1
    %s26 = scalar_select %p25, 0, %s24
    %s27 = sadd.s32 1, %s18
    %s28 = scalar_select %p25, %s27, %s18
    %p29 = scmp.ge.s32.totalorder %s28, 2
    %s30 = scalar_select %p29, 0, %s28
    %s31 = ssub.s32 %s18, %s30
    %s32 = ssub.s32 %s19, %s26
    %s33 = sor.u32 %s31, %s32
    %p34 = scmp.eq.s32.totalorder %s33, 0
    %s36 = sadd.s32 %s35, 1
    %s37 = scalar_select %p34, %s35, %s36
    %p40 = pneg %p34
    %p41 = scmp.eq.s32.totalorder %s11, 1
    %p42 = por %p40, %p41
    %p43 = scmp.ne.s32.totalorder %s35, %s38
    %p44 = scmp.eq.s32.totalorder %s11, 0
    %p45 = por %p43, %p44
    %p46 = scmp.ne.s32.totalorder %s35, %s38
    %p47 = scmp.eq.s32.totalorder %s16, 1
    %p48 = por %p46, %p47
    %p49 = scmp.ne.s32.totalorder %s38, %s39
    %p50 = scmp.eq.s32.totalorder %s16, 0
    %p51 = por %p49, %p50
    %p52 = scmp.ne.s32.totalorder %s38, %s39
    %p53 = scmp.eq.s32.totalorder %s17, 1
    %p54 = por %p52, %p53
    %p56 = scmp.ne.s32.totalorder %s39, %s55
    %p57 = scmp.eq.s32.totalorder %s17, 0
    %p58 = por %p56, %p57
    %s59 = sadd.s32 %s19, 1
    %s60 = smul.u32 %s59, 8
    %s61 = sadd.s32 %s26, 1
    %s62 = smul.u32 %s61, 8
    %s63 = ssub.s32 %s18, %s30
    %s64 = ssub.s32 %s60, %s62
    %s65 = sor.u32 %s63, %s64
    %p66 = scmp.eq.s32.totalorder %s65, 0
    %s68 = sadd.s32 %s67, 1
    %s69 = scalar_select %p66, %s67, %s68
    %p72 = pneg %p66
    %p73 = scmp.eq.s32.totalorder %s11, 1
    %p74 = por %p72, %p73
    %p75 = scmp.ne.s32.totalorder %s67, %s70
    %p76 = scmp.eq.s32.totalorder %s11, 0
    %p77 = por %p75, %p76
    %p78 = scmp.ne.s32.totalorder %s67, %s70
    %p79 = scmp.eq.s32.totalorder %s16, 1
    %p80 = por %p78, %p79
    %p81 = scmp.ne.s32.totalorder %s70, %s71
    %p82 = scmp.eq.s32.totalorder %s16, 0
    %p83 = por %p81, %p82
    %p84 = scmp.ne.s32.totalorder %s70, %s71
    %p85 = scmp.eq.s32.totalorder %s17, 1
    %p86 = por %p84, %p85
    %p88 = scmp.ne.s32.totalorder %s71, %s87
    %p89 = scmp.eq.s32.totalorder %s17, 0
    %p90 = por %p88, %p89
    %s92 = sadd.s32 %s91, 1
    %p95 = scmp.eq.s32.totalorder %s11, 1
    %p96 = scmp.ne.s32.totalorder %s91, %s93
    %p97 = scmp.eq.s32.totalorder %s11, 0
    %p98 = por %p96, %p97
    %p99 = scmp.ne.s32.totalorder %s91, %s93
    %p100 = scmp.eq.s32.totalorder %s16, 1
    %p101 = por %p99, %p100
    %p102 = scmp.ne.s32.totalorder %s93, %s94
    %p103 = scmp.eq.s32.totalorder %s16, 0
    %p104 = por %p102, %p103
    %p105 = scmp.ne.s32.totalorder %s93, %s94
    %p106 = scmp.eq.s32.totalorder %s17, 1
    %p107 = por %p105, %p106
    %p109 = scmp.ne.s32.totalorder %s94, %s108
    %p110 = scmp.eq.s32.totalorder %s17, 0
    %p111 = por %p109, %p110
    %s113 = sadd.s32 %s112, 1
    %p116 = scmp.eq.s32.totalorder %s11, 1
    %p117 = scmp.ne.s32.totalorder %s112, %s114
    %p118 = scmp.eq.s32.totalorder %s11, 0
    %p119 = por %p117, %p118
    %p120 = scmp.ne.s32.totalorder %s112, %s114
    %p121 = scmp.eq.s32.totalorder %s16, 1
    %p122 = por %p120, %p121
    %p123 = scmp.ne.s32.totalorder %s114, %s115
    %p124 = scmp.eq.s32.totalorder %s16, 0
    %p125 = por %p123, %p124
    %p126 = scmp.ne.s32.totalorder %s114, %s115
    %p127 = scmp.eq.s32.totalorder %s17, 1
    %p128 = por %p126, %p127
    %p130 = scmp.ne.s32.totalorder %s115, %s129
    %p131 = scmp.eq.s32.totalorder %s17, 0
    %p132 = por %p130, %p131
    %s134 = sadd.s32 %s133, 1
    %p137 = scmp.eq.s32.totalorder %s11, 1
    %p138 = scmp.ne.s32.totalorder %s133, %s135
    %p139 = scmp.eq.s32.totalorder %s11, 0
    %p140 = por %p138, %p139
    %p141 = scmp.ne.s32.totalorder %s133, %s135
    %p142 = scmp.eq.s32.totalorder %s16, 1
    %p143 = por %p141, %p142
    %p144 = scmp.ne.s32.totalorder %s135, %s136
    %p145 = scmp.eq.s32.totalorder %s16, 0
    %p146 = por %p144, %p145
    %p147 = scmp.ne.s32.totalorder %s135, %s136
    %p148 = scmp.eq.s32.totalorder %s17, 1
    %p149 = por %p147, %p148
    %p151 = scmp.ne.s32.totalorder %s136, %s150
    %p152 = scmp.eq.s32.totalorder %s17, 0
    %p153 = por %p151, %p152
    %s154 = ssub.s32 %s18, %s30
    %s155 = ssub.s32 %s19, %s26
    %s156 = sor.u32 %s154, %s155
    %p157 = scmp.eq.s32.totalorder %s156, 0
    %s159 = sadd.s32 %s158, 1
    %s160 = scalar_select %p157, %s158, %s159
    %p163 = pneg %p157
    %p164 = scmp.eq.s32.totalorder %s11, 1
    %p165 = por %p163, %p164
    %p166 = scmp.ne.s32.totalorder %s158, %s161
    %p167 = scmp.eq.s32.totalorder %s11, 0
    %p168 = por %p166, %p167
    %p169 = scmp.ne.s32.totalorder %s158, %s161
    %p170 = scmp.eq.s32.totalorder %s16, 1
    %p171 = por %p169, %p170
    %p172 = scmp.ne.s32.totalorder %s161, %s162
    %p173 = scmp.eq.s32.totalorder %s16, 0
    %p174 = por %p172, %p173
    %p175 = scmp.ne.s32.totalorder %s161, %s162
    %p176 = scmp.eq.s32.totalorder %s17, 1
    %p177 = por %p175, %p176
    %p179 = scmp.ne.s32.totalorder %s162, %s178
    %p180 = scmp.eq.s32.totalorder %s17, 0
    %p181 = por %p179, %p180
    %p182 = scmp.le.s32.totalorder 1, %s11
    %p183 = scmp.lt.s32.totalorder %s11, 3
    %p184 = pnand %p182, %p183
    %p185 = pneg %p184
    // Predicated region
    $region9: #{convlayer_forward.3} parent=5 // pred_check
      _
    $region10: #{convlayer_forward.3} parent=5 // pred_check_branch
      %187 = sbr.rel (%p184) target = $region12
    $region11: #{convlayer_forward.3} parent=5 // pred_region
      %s188 = ssub.s32 %s11, 1
      // Predicated region
      $region13: #{convlayer_forward.3} parent=11 // pred_check
        %p189 = pneg %p104
      $region14: #{convlayer_forward.3} parent=11 // pred_check_branch
        %191 = sbr.rel (%p189) target = $region16
      $region15: #{convlayer_forward.3} parent=11 // pred_region
        _
      $region16: #{convlayer_forward.3} parent=11 // pred_fallthru
        _
      // Predicated region
      $region17: #{convlayer_forward.3} parent=11 // pred_check
        %p192 = pneg %p125
      $region18: #{convlayer_forward.3} parent=11 // pred_check_branch
        %194 = sbr.rel (%p192) target = $region20
      $region19: #{convlayer_forward.3} parent=11 // pred_region
        _
      $region20: #{convlayer_forward.3} parent=11 // pred_fallthru
        _
      // Predicated region
      $region21: #{convlayer_forward.3} parent=11 // pred_check
        %p195 = pneg %p146
      $region22: #{convlayer_forward.3} parent=11 // pred_check_branch
        %197 = sbr.rel (%p195) target = $region24
      $region23: #{convlayer_forward.3} parent=11 // pred_region
        _
      $region24: #{convlayer_forward.3} parent=11 // pred_fallthru
        _
    $region12: #{convlayer_forward.3} parent=5 // pred_fallthru
      _
    %p198 = scmp.lt.s32.totalorder %s11, 2
    // Predicated region
    $region25: #{convlayer_forward.3} parent=5 // pred_check
      %p199 = pneg %p198
    $region26: #{convlayer_forward.3} parent=5 // pred_check_branch
      %201 = sbr.rel (%p199) target = $region28
    $region27: #{convlayer_forward.3} parent=5 // pred_region
      // Predicated region
      $region29: #{convlayer_forward.3} parent=27 // pred_check
        %p202 = pneg %p45
      $region30: #{convlayer_forward.3} parent=27 // pred_check_branch
        %204 = sbr.rel (%p202) target = $region32
      $region31: #{convlayer_forward.3} parent=27 // pred_region
        %s205 = smul.u32 16, %s19
        %s206 = ssub.s32 18, %s205
        %p207 = scmp.lt.s32.totalorder %s206, 16
        %s208 = scalar_select %p207, %s206, 16
        %s209 = smul.u32 64, %s208
        %s210 = smul.u32 %s209, 3
        %p211 = scmp.lt.s32.totalorder %s18, 1
        %s212 = scalar_select %p211, %s18, 1
        %p213 = scmp.lt.s32.totalorder %s205, 17
        %s214 = scalar_select %p213, %s205, 17
        %s215 = smul.addr %s214, 3
        %s216 = smul.addr %s212, 54
        %s217 = sadd.s32 %s215, %s216
        %s218 = smul.addr %s217, 4
        %s219 = scalar_lea.vmem %s0, %s218
        %s220 = smul.u32 16, %s19
        %s221 = ssub.s32 18, %s220
        %p222 = scmp.lt.s32.totalorder %s221, 16
        %s223 = scalar_select %p222, %s221, 16
        %s224 = smul.u32 64, %s223
        %s225 = smul.u32 %s224, 3
      $region32: #{convlayer_forward.3} parent=27 // pred_fallthru
        _
      // Predicated region
      $region33: #{convlayer_forward.3} parent=27 // pred_check
        %p226 = pneg %p77
      $region34: #{convlayer_forward.3} parent=27 // pred_check_branch
        %228 = sbr.rel (%p226) target = $region36
      $region35: #{convlayer_forward.3} parent=27 // pred_region
        %s229 = sadd.s32 %s19, 1
        %s230 = smul.u32 %s229, 8
        %s231 = smul.u32 2, %s230
        %p232 = scmp.lt.s32.totalorder %s18, 1
        %s233 = scalar_select %p232, %s18, 1
        %p234 = scmp.lt.s32.totalorder %s231, 17
        %s235 = scalar_select %p234, %s231, 17
        %s236 = smul.addr %s235, 3
        %s237 = smul.addr %s233, 54
        %s238 = sadd.s32 %s236, %s237
        %s239 = smul.addr %s238, 4
        %s240 = scalar_lea.vmem %s1, %s239
        %s241 = sadd.s32 %s19, 1
        %s242 = smul.u32 %s241, 8
        %s243 = smul.u32 2, %s242
      $region36: #{convlayer_forward.3} parent=27 // pred_fallthru
        _
    $region28: #{convlayer_forward.3} parent=5 // pred_fallthru
      _
    %p244 = scmp.le.s32.totalorder 1, %s11
    %p245 = scmp.lt.s32.totalorder %s11, 3
    %p246 = pnand %p244, %p245
    %p247 = pneg %p246
    // Predicated region
    $region37: #{convlayer_forward.3} parent=5 // pred_check
      _
    $region38: #{convlayer_forward.3} parent=5 // pred_check_branch
      %249 = sbr.rel (%p246) target = $region40
    $region39: #{convlayer_forward.3} parent=5 // pred_region
      %s250 = ssub.s32 %s11, 1
      %s251 = smul.u32 16, %s21
      %s252 = ssub.s32 18, %s251
      %p253 = scmp.lt.s32.totalorder %s252, 16
      %s254 = scalar_select %p253, %s252, 16
      %s255 = smul.u32 64, %s254
      %s256 = smul.u32 %s255, 3
      %p257 = scmp.lt.s32.totalorder %s20, 1
      %s258 = scalar_select %p257, %s20, 1
      %p259 = scmp.lt.s32.totalorder %s251, 17
      %s260 = scalar_select %p259, %s251, 17
      %s261 = smul.addr %s260, 3
      %s262 = smul.addr %s258, 54
      %s263 = sadd.s32 %s261, %s262
      %s264 = smul.addr %s263, 4
      %s265 = scalar_lea.vmem %s0, %s264
      %p266 = pneg %p51
      %p267 = pneg %p48
      %s268 = sadd.s32 %s21, 1
      %s269 = smul.u32 %s268, 8
      %s270 = smul.u32 2, %s269
      %p271 = scmp.lt.s32.totalorder %s20, 1
      %s272 = scalar_select %p271, %s20, 1
      %p273 = scmp.lt.s32.totalorder %s270, 17
      %s274 = scalar_select %p273, %s270, 17
      %s275 = smul.addr %s274, 3
      %s276 = smul.addr %s272, 54
      %s277 = sadd.s32 %s275, %s276
      %s278 = smul.addr %s277, 4
      %s279 = scalar_lea.vmem %s1, %s278
      %p280 = pneg %p83
      %p281 = pneg %p80
      %p282 = pneg %p104
      %p283 = pneg %p101
      %p284 = pneg %p125
      %p285 = pneg %p122
      %p286 = pneg %p146
      %p287 = pneg %p143
      %p288 = pneg %p174
      %p289 = pneg %p171
      %s290 = smul.u32 32, %s21
      %p291 = scmp.lt.s32.totalorder %s20, 1
      %s292 = scalar_select %p291, %s20, 1
      %p293 = scmp.lt.s32.totalorder %s290, 31
      %s294 = scalar_select %p293, %s290, 31
      %s295 = smul.addr %s292, 32
      %s296 = sadd.s32 %s294, %s295
      %s297 = smul.addr %s296, 4
      %s298 = scalar_lea.vmem %s5, %s297
      %s299 = smul.u32 16, %s21
      %s300 = ssub.s32 18, %s299
      %p301 = scmp.lt.s32.totalorder %s300, 16
      %s302 = scalar_select %p301, %s300, 16
      %s303 = smul.u32 64, %s302
      %s304 = smul.u32 %s303, 3
      %p305 = scmp.lt.s32.totalorder %s20, 1
      %s306 = scalar_select %p305, %s20, 1
      %p307 = scmp.lt.s32.totalorder %s299, 17
      %s308 = scalar_select %p307, %s299, 17
      %s309 = smul.addr %s308, 3
      %s310 = smul.addr %s306, 54
      %s311 = sadd.s32 %s309, %s310
      %s312 = smul.addr %s311, 4
      %s313 = scalar_lea.vmem %s0, %s312
      %s314 = smul.u32 16, %s21
      %s315 = ssub.s32 18, %s314
      %p316 = scmp.lt.s32.totalorder %s315, 16
      %s317 = scalar_select %p316, %s315, 16
      %s318 = smul.u32 64, %s317
      %s319 = smul.u32 %s318, 3
      %s320 = sadd.s32 %s21, 1
      %s321 = smul.u32 %s320, 8
      %s322 = smul.u32 2, %s321
      %p323 = scmp.lt.s32.totalorder %s20, 1
      %s324 = scalar_select %p323, %s20, 1
      %p325 = scmp.lt.s32.totalorder %s322, 17
      %s326 = scalar_select %p325, %s322, 17
      %s327 = smul.addr %s326, 3
      %s328 = smul.addr %s324, 54
      %s329 = sadd.s32 %s327, %s328
      %s330 = smul.addr %s329, 4
      %s331 = scalar_lea.vmem %s1, %s330
      %s332 = sadd.s32 %s21, 1
      %s333 = smul.u32 %s332, 8
      %s334 = smul.u32 2, %s333
      %s335 = smul.u32 32, %s21
      %p336 = scmp.lt.s32.totalorder %s20, 1
      %s337 = scalar_select %p336, %s20, 1
      %p338 = scmp.lt.s32.totalorder %s335, 31
      %s339 = scalar_select %p338, %s335, 31
      %s340 = smul.addr %s337, 32
      %s341 = sadd.s32 %s339, %s340
      %s342 = smul.addr %s341, 4
      %s343 = scalar_lea.vmem %s5, %s342
      %s344 = smul.u32 32, %s21
      %v346 = vld [vmem:[%s313] sm:$0xf]
      %v347 = vld [vmem:[%s313 + $0x4] sm:$0xf]
      %v348 = vld [vmem:[%s313 + $0x8] sm:$0x1]
      %v349 = vld [vmem:[%s313 + $0xc] sm:$0xf]
      %v350 = vld [vmem:[%s313 + $0x10] sm:$0xf]
      %v351 = vld [vmem:[%s313 + $0x14] sm:$0x1]
      %v352 = vld [vmem:[%s313 + $0x18] sm:$0xf]
      %v353 = vld [vmem:[%s313 + $0x1c] sm:$0xf]
      %v354 = vld [vmem:[%s313 + $0x20] sm:$0x1]
      %v355 = vld [vmem:[%s313 + $0x24] sm:$0xf]
      %v356 = vld [vmem:[%s313 + $0x28] sm:$0xf]
      %v357 = vld [vmem:[%s313 + $0x2c] sm:$0x1]
      %v358 = vld [vmem:[%s313 + $0x30] sm:$0xf]
      %v359 = vld [vmem:[%s313 + $0x34] sm:$0xf]
      %v360 = vld [vmem:[%s313 + $0x38] sm:$0x1]
      %v361 = vld [vmem:[%s313 + $0x3c] sm:$0xf]
      %v362 = vld [vmem:[%s313 + $0x40] sm:$0xf]
      %v363 = vld [vmem:[%s313 + $0x44] sm:$0x1]
      %v364 = vld [vmem:[%s313 + $0x48] sm:$0xf]
      %v365 = vld [vmem:[%s313 + $0x4c] sm:$0xf]
      %v366 = vld [vmem:[%s313 + $0x50] sm:$0x1]
      %v367 = vld [vmem:[%s313 + $0x54] sm:$0xf]
      %v368 = vld [vmem:[%s313 + $0x58] sm:$0xf]
      %v369 = vld [vmem:[%s313 + $0x5c] sm:$0x1]
      %v370 = vld [vmem:[%s313 + $0x60] sm:$0xf]
      %v371 = vld [vmem:[%s313 + $0x64] sm:$0xf]
      %v372 = vld [vmem:[%s313 + $0x68] sm:$0x1]
      %v373 = vld [vmem:[%s313 + $0x6c] sm:$0xf]
      %v374 = vld [vmem:[%s313 + $0x70] sm:$0xf]
      %v375 = vld [vmem:[%s313 + $0x74] sm:$0x1]
      %v376 = vld [vmem:[%s313 + $0x78] sm:$0xf]
      %v377 = vld [vmem:[%s313 + $0x7c] sm:$0xf]
      %v378 = vld [vmem:[%s313 + $0x80] sm:$0x1]
      %v379 = vld [vmem:[%s313 + $0x84] sm:$0xf]
      %v380 = vld [vmem:[%s313 + $0x88] sm:$0xf]
      %v381 = vld [vmem:[%s313 + $0x8c] sm:$0x1]
      %v382 = vld [vmem:[%s313 + $0x90] sm:$0xf]
      %v383 = vld [vmem:[%s313 + $0x94] sm:$0xf]
      %v384 = vld [vmem:[%s313 + $0x98] sm:$0x1]
      %v385 = vld [vmem:[%s313 + $0x9c] sm:$0xf]
      %v386 = vld [vmem:[%s313 + $0xa0] sm:$0xf]
      %v387 = vld [vmem:[%s313 + $0xa4] sm:$0x1]
      %v388 = vld [vmem:[%s313 + $0xa8] sm:$0xf]
      %v389 = vld [vmem:[%s313 + $0xac] sm:$0xf]
      %v390 = vld [vmem:[%s313 + $0xb0] sm:$0x1]
      %v391 = vld [vmem:[%s313 + $0xb4] sm:$0xf]
      %v392 = vld [vmem:[%s313 + $0xb8] sm:$0xf]
      %v393 = vld [vmem:[%s313 + $0xbc] sm:$0x1]
      %v394 = vld [vmem:[%s331] sm:$0xf]
      %v395 = vld [vmem:[%s331 + $0x4] sm:$0xf]
      %v396 = vld [vmem:[%s331 + $0x8] sm:$0x1]
      %v397 = vld [vmem:[%s331 + $0xc] sm:$0xf]
      %v398 = vld [vmem:[%s331 + $0x10] sm:$0xf]
      %v399 = vld [vmem:[%s331 + $0x14] sm:$0x1]
      %v400 = vld [vmem:[%s2] sm:$0x3]
      %vm401 = vsmask.f32 3328
      %vm402 = vsmask.f32 7440
      %vm403 = vmor %vm401, %vm402
      %v405 = vshrl.u32 %v346, 16
      %v407 = vrot.slane %v405, 4
      %v408 = vshll.u32 %v346, 16
      %v410 = vrot.slane %v408, 5
      %v411 = vor.u32 %v407, %v410
      %v412 = vrot.slane %v411, 4
      %v414 = vshll.u32 %v347, 16
      %v416 = vrot.slane %v414, 5
      %v417 = vsel %vm403, %v412, %v416
      %v418 = vshrl.u32 %v347, 16
      %v420 = vrot.slane %v418, 4
      %v421 = vor.u32 %v420, %v416
      %v422 = vrot.slane %v421, 4
      %v424 = vshll.u32 %v348, 16
      %v426 = vrot.slane %v424, 5
      %v427 = vsel %vm403, %v422, %v426
      %v429 = vshrl.u32 %v349, 16
      %v431 = vrot.slane %v429, 4
      %v432 = vshll.u32 %v349, 16
      %v434 = vrot.slane %v432, 5
      %v435 = vor.u32 %v431, %v434
      %v436 = vrot.slane %v435, 4
      %v438 = vshll.u32 %v350, 16
      %v440 = vrot.slane %v438, 5
      %v441 = vsel %vm403, %v436, %v440
      %v442 = vshrl.u32 %v350, 16
      %v444 = vrot.slane %v442, 4
      %v445 = vor.u32 %v444, %v440
      %v446 = vrot.slane %v445, 4
      %v448 = vshll.u32 %v351, 16
      %v450 = vrot.slane %v448, 5
      %v451 = vsel %vm403, %v446, %v450
      %v453 = vshrl.u32 %v352, 16
      %v455 = vrot.slane %v453, 4
      %v456 = vshll.u32 %v352, 16
      %v458 = vrot.slane %v456, 5
      %v459 = vor.u32 %v455, %v458
      %v460 = vrot.slane %v459, 4
      %v462 = vshll.u32 %v353, 16
      %v464 = vrot.slane %v462, 5
      %v465 = vsel %vm403, %v460, %v464
      %v466 = vshrl.u32 %v353, 16
      %v468 = vrot.slane %v466, 4
      %v469 = vor.u32 %v468, %v464
      %v470 = vrot.slane %v469, 4
      %v472 = vshll.u32 %v354, 16
      %v474 = vrot.slane %v472, 5
      %v475 = vsel %vm403, %v470, %v474
      %v477 = vshrl.u32 %v355, 16
      %v479 = vrot.slane %v477, 4
      %v480 = vshll.u32 %v355, 16
      %v482 = vrot.slane %v480, 5
      %v483 = vor.u32 %v479, %v482
      %v484 = vrot.slane %v483, 4
      %v486 = vshll.u32 %v356, 16
      %v488 = vrot.slane %v486, 5
      %v489 = vsel %vm403, %v484, %v488
      %v490 = vshrl.u32 %v356, 16
      %v492 = vrot.slane %v490, 4
      %v493 = vor.u32 %v492, %v488
      %v494 = vrot.slane %v493, 4
      %v496 = vshll.u32 %v357, 16
      %v498 = vrot.slane %v496, 5
      %v499 = vsel %vm403, %v494, %v498
      %v501 = vshrl.u32 %v358, 16
      %v503 = vrot.slane %v501, 4
      %v504 = vshll.u32 %v358, 16
      %v506 = vrot.slane %v504, 5
      %v507 = vor.u32 %v503, %v506
      %v508 = vrot.slane %v507, 4
      %v510 = vshll.u32 %v359, 16
      %v512 = vrot.slane %v510, 5
      %v513 = vsel %vm403, %v508, %v512
      %v514 = vshrl.u32 %v359, 16
      %v516 = vrot.slane %v514, 4
      %v517 = vor.u32 %v516, %v512
      %v518 = vrot.slane %v517, 4
      %v520 = vshll.u32 %v360, 16
      %v522 = vrot.slane %v520, 5
      %v523 = vsel %vm403, %v518, %v522
      %v525 = vshrl.u32 %v361, 16
      %v527 = vrot.slane %v525, 4
      %v528 = vshll.u32 %v361, 16
      %v530 = vrot.slane %v528, 5
      %v531 = vor.u32 %v527, %v530
      %v532 = vrot.slane %v531, 4
      %v534 = vshll.u32 %v362, 16
      %v536 = vrot.slane %v534, 5
      %v537 = vsel %vm403, %v532, %v536
      %v538 = vshrl.u32 %v362, 16
      %v540 = vrot.slane %v538, 4
      %v541 = vor.u32 %v540, %v536
      %v542 = vrot.slane %v541, 4
      %v544 = vshll.u32 %v363, 16
      %v546 = vrot.slane %v544, 5
      %v547 = vsel %vm403, %v542, %v546
      %v549 = vshrl.u32 %v364, 16
      %v551 = vrot.slane %v549, 4
      %v552 = vshll.u32 %v364, 16
      %v554 = vrot.slane %v552, 5
      %v555 = vor.u32 %v551, %v554
      %v556 = vrot.slane %v555, 4
      %v558 = vshll.u32 %v365, 16
      %v560 = vrot.slane %v558, 5
      %v561 = vsel %vm403, %v556, %v560
      %v562 = vshrl.u32 %v365, 16
      %v564 = vrot.slane %v562, 4
      %v565 = vor.u32 %v564, %v560
      %v566 = vrot.slane %v565, 4
      %v568 = vshll.u32 %v366, 16
      %v570 = vrot.slane %v568, 5
      %v571 = vsel %vm403, %v566, %v570
      %v573 = vshrl.u32 %v367, 16
      %v575 = vrot.slane %v573, 4
      %v576 = vshll.u32 %v367, 16
      %v578 = vrot.slane %v576, 5
      %v579 = vor.u32 %v575, %v578
      %v580 = vrot.slane %v579, 4
      %v582 = vshll.u32 %v368, 16
      %v584 = vrot.slane %v582, 5
      %v585 = vsel %vm403, %v580, %v584
      %v586 = vshrl.u32 %v368, 16
      %v588 = vrot.slane %v586, 4
      %v589 = vor.u32 %v588, %v584
      %v590 = vrot.slane %v589, 4
      %v592 = vshll.u32 %v369, 16
      %v594 = vrot.slane %v592, 5
      %v595 = vsel %vm403, %v590, %v594
      %v597 = vshrl.u32 %v370, 16
      %v599 = vrot.slane %v597, 4
      %v600 = vshll.u32 %v370, 16
      %v602 = vrot.slane %v600, 5
      %v603 = vor.u32 %v599, %v602
      %v604 = vrot.slane %v603, 4
      %v606 = vshll.u32 %v371, 16
      %v608 = vrot.slane %v606, 5
      %v609 = vsel %vm403, %v604, %v608
      %v610 = vshrl.u32 %v371, 16
      %v612 = vrot.slane %v610, 4
      %v613 = vor.u32 %v612, %v608
      %v614 = vrot.slane %v613, 4
      %v616 = vshll.u32 %v372, 16
      %v618 = vrot.slane %v616, 5
      %v619 = vsel %vm403, %v614, %v618
      %v621 = vshrl.u32 %v373, 16
      %v623 = vrot.slane %v621, 4
      %v624 = vshll.u32 %v373, 16
      %v626 = vrot.slane %v624, 5
      %v627 = vor.u32 %v623, %v626
      %v628 = vrot.slane %v627, 4
      %v630 = vshll.u32 %v374, 16
      %v632 = vrot.slane %v630, 5
      %v633 = vsel %vm403, %v628, %v632
      %v634 = vshrl.u32 %v374, 16
      %v636 = vrot.slane %v634, 4
      %v637 = vor.u32 %v636, %v632
      %v638 = vrot.slane %v637, 4
      %v640 = vshll.u32 %v375, 16
      %v642 = vrot.slane %v640, 5
      %v643 = vsel %vm403, %v638, %v642
      %v645 = vshrl.u32 %v376, 16
      %v647 = vrot.slane %v645, 4
      %v648 = vshll.u32 %v376, 16
      %v650 = vrot.slane %v648, 5
      %v651 = vor.u32 %v647, %v650
      %v652 = vrot.slane %v651, 4
      %v654 = vshll.u32 %v377, 16
      %v656 = vrot.slane %v654, 5
      %v657 = vsel %vm403, %v652, %v656
      %v658 = vshrl.u32 %v377, 16
      %v660 = vrot.slane %v658, 4
      %v661 = vor.u32 %v660, %v656
      %v662 = vrot.slane %v661, 4
      %v664 = vshll.u32 %v378, 16
      %v666 = vrot.slane %v664, 5
      %v667 = vsel %vm403, %v662, %v666
      %v669 = vshrl.u32 %v379, 16
      %v671 = vrot.slane %v669, 4
      %v672 = vshll.u32 %v379, 16
      %v674 = vrot.slane %v672, 5
      %v675 = vor.u32 %v671, %v674
      %v676 = vrot.slane %v675, 4
      %v678 = vshll.u32 %v380, 16
      %v680 = vrot.slane %v678, 5
      %v681 = vsel %vm403, %v676, %v680
      %v682 = vshrl.u32 %v380, 16
      %v684 = vrot.slane %v682, 4
      %v685 = vor.u32 %v684, %v680
      %v686 = vrot.slane %v685, 4
      %v688 = vshll.u32 %v381, 16
      %v690 = vrot.slane %v688, 5
      %v691 = vsel %vm403, %v686, %v690
      %v693 = vshrl.u32 %v382, 16
      %v695 = vrot.slane %v693, 4
      %v696 = vshll.u32 %v382, 16
      %v698 = vrot.slane %v696, 5
      %v699 = vor.u32 %v695, %v698
      %v700 = vrot.slane %v699, 4
      %v702 = vshll.u32 %v383, 16
      %v704 = vrot.slane %v702, 5
      %v705 = vsel %vm403, %v700, %v704
      %v706 = vshrl.u32 %v383, 16
      %v708 = vrot.slane %v706, 4
      %v709 = vor.u32 %v708, %v704
      %v710 = vrot.slane %v709, 4
      %v712 = vshll.u32 %v384, 16
      %v714 = vrot.slane %v712, 5
      %v715 = vsel %vm403, %v710, %v714
      %v717 = vshrl.u32 %v385, 16
      %v719 = vrot.slane %v717, 4
      %v720 = vshll.u32 %v385, 16
      %v722 = vrot.slane %v720, 5
      %v723 = vor.u32 %v719, %v722
      %v724 = vrot.slane %v723, 4
      %v726 = vshll.u32 %v386, 16
      %v728 = vrot.slane %v726, 5
      %v729 = vsel %vm403, %v724, %v728
      %v730 = vshrl.u32 %v386, 16
      %v732 = vrot.slane %v730, 4
      %v733 = vor.u32 %v732, %v728
      %v734 = vrot.slane %v733, 4
      %v736 = vshll.u32 %v387, 16
      %v738 = vrot.slane %v736, 5
      %v739 = vsel %vm403, %v734, %v738
      %v741 = vshrl.u32 %v388, 16
      %v743 = vrot.slane %v741, 4
      %v744 = vshll.u32 %v388, 16
      %v746 = vrot.slane %v744, 5
      %v747 = vor.u32 %v743, %v746
      %v748 = vrot.slane %v747, 4
      %v750 = vshll.u32 %v389, 16
      %v752 = vrot.slane %v750, 5
      %v753 = vsel %vm403, %v748, %v752
      %v754 = vshrl.u32 %v389, 16
      %v756 = vrot.slane %v754, 4
      %v757 = vor.u32 %v756, %v752
      %v758 = vrot.slane %v757, 4
      %v760 = vshll.u32 %v390, 16
      %v762 = vrot.slane %v760, 5
      %v763 = vsel %vm403, %v758, %v762
      %v765 = vshrl.u32 %v391, 16
      %v767 = vrot.slane %v765, 4
      %v768 = vshll.u32 %v391, 16
      %v770 = vrot.slane %v768, 5
      %v771 = vor.u32 %v767, %v770
      %v772 = vrot.slane %v771, 4
      %v774 = vshll.u32 %v392, 16
      %v776 = vrot.slane %v774, 5
      %v777 = vsel %vm403, %v772, %v776
      %v778 = vshrl.u32 %v392, 16
      %v780 = vrot.slane %v778, 4
      %v781 = vor.u32 %v780, %v776
      %v782 = vrot.slane %v781, 4
      %v784 = vshll.u32 %v393, 16
      %v786 = vrot.slane %v784, 5
      %v787 = vsel %vm403, %v782, %v786
      %s788 = scalar_lea.vmem %s2, 2
      %v789 = vld [vmem:[%s788] sm:$0x3]
      %v790 = vunpack.c.l.b16 %v417
      %v791 = vunpack.c.l.b16 %v427
      %v792 = vunpack.c.l.b16 %v441
      %v793 = vunpack.c.l.b16 %v451
      %v794 = vunpack.c.l.b16 %v465
      %v795 = vunpack.c.l.b16 %v475
      %v796 = vunpack.c.l.b16 %v489
      %v797 = vunpack.c.l.b16 %v499
      %v798 = vunpack.c.l.b16 %v513
      %v799 = vunpack.c.l.b16 %v523
      %v800 = vunpack.c.l.b16 %v537
      %v801 = vunpack.c.l.b16 %v547
      %v802 = vunpack.c.l.b16 %v561
      %v803 = vunpack.c.l.b16 %v571
      %v804 = vunpack.c.l.b16 %v585
      %v805 = vunpack.c.l.b16 %v595
      %v806 = vunpack.c.l.b16 %v609
      %v807 = vunpack.c.l.b16 %v619
      %v808 = vunpack.c.l.b16 %v633
      %v809 = vunpack.c.l.b16 %v643
      %v810 = vunpack.c.l.b16 %v657
      %v811 = vunpack.c.l.b16 %v667
      %v812 = vunpack.c.l.b16 %v681
      %v813 = vunpack.c.l.b16 %v691
      %v814 = vunpack.c.l.b16 %v705
      %v815 = vunpack.c.l.b16 %v715
      %v816 = vunpack.c.l.b16 %v729
      %v817 = vunpack.c.l.b16 %v739
      %v818 = vunpack.c.l.b16 %v753
      %v819 = vunpack.c.l.b16 %v763
      %v820 = vunpack.c.l.b16 %v777
      %v821 = vunpack.c.l.b16 %v787
      %v822 = vpack.c.b16 %v791, %v790
      %v823 = vpack.c.b16 %v793, %v792
      %v824 = vpack.c.b16 %v795, %v794
      %v825 = vpack.c.b16 %v797, %v796
      %v826 = vpack.c.b16 %v799, %v798
      %v827 = vpack.c.b16 %v801, %v800
      %v828 = vpack.c.b16 %v803, %v802
      %v829 = vpack.c.b16 %v805, %v804
      %v830 = vpack.c.b16 %v807, %v806
      %v831 = vpack.c.b16 %v809, %v808
      %v832 = vpack.c.b16 %v811, %v810
      %v833 = vpack.c.b16 %v813, %v812
      %v834 = vpack.c.b16 %v815, %v814
      %v835 = vpack.c.b16 %v817, %v816
      %v836 = vpack.c.b16 %v819, %v818
      %v837 = vpack.c.b16 %v821, %v820
      %vm838 = vcmask 31744
      %v840 = vsel %vm838, %v822, 0
      %v843 = vsel %vm838, %v823, 0
      %v846 = vsel %vm838, %v824, 0
      %v849 = vsel %vm838, %v825, 0
      %v852 = vsel %vm838, %v826, 0
      %v855 = vsel %vm838, %v827, 0
      %v858 = vsel %vm838, %v828, 0
      %v861 = vsel %vm838, %v829, 0
      %v864 = vsel %vm838, %v830, 0
      %v867 = vsel %vm838, %v831, 0
      %v870 = vsel %vm838, %v832, 0
      %v873 = vsel %vm838, %v833, 0
      %v876 = vsel %vm838, %v834, 0
      %v879 = vsel %vm838, %v835, 0
      %v882 = vsel %vm838, %v836, 0
      %v885 = vsel %vm838, %v837, 0
      %vm887 = vcmask 1041408
      %v889 = vsel %vm887, %v789, 0
      %891 = vmatprep.subr.bf16.mxu0 0
      %892 = vmatpush1.bf16.msra.mxu0 %v889
      %893 = vmatprep.subr.bf16.mxu0 0
      %894 = vmatpush1.bf16.msra.mxu0 0
      %895 = vmatprep.subr.bf16.mxu0 0
      %896 = vmatpush1.bf16.msra.mxu0 0
      %897 = vmatprep.subr.bf16.mxu0 0
      %898 = vmatpush1.bf16.msra.mxu0 0
      %899 = vmatprep.subr.bf16.mxu0 0
      %900 = vmatpush1.bf16.msra.mxu0 0
      %901 = vmatprep.subr.bf16.mxu0 0
      %902 = vmatpush1.bf16.msra.mxu0 0
      %903 = vmatprep.subr.bf16.mxu0 0
      %904 = vmatpush1.bf16.msra.mxu0 0
      %905 = vmatprep.subr.bf16.mxu0 0
      %906 = vmatpush1.bf16.msra.mxu0 0
      %907 = vmatprep.subr.bf16.mxu0 0
      %908 = vmatpush1.bf16.msra.mxu0 0
      %909 = vmatprep.subr.bf16.mxu0 0
      %910 = vmatpush1.bf16.msra.mxu0 0
      %911 = vmatprep.subr.bf16.mxu0 0
      %912 = vmatpush1.bf16.msra.mxu0 0
      %913 = vmatprep.subr.bf16.mxu0 0
      %914 = vmatpush1.bf16.msra.mxu0 0
      %915 = vmatprep.subr.bf16.mxu0 0
      %916 = vmatpush1.bf16.msra.mxu0 0
      %917 = vmatprep.subr.bf16.mxu0 0
      %918 = vmatpush1.bf16.msra.mxu0 0
      %919 = vmatprep.subr.bf16.mxu0 0
      %920 = vmatpush1.bf16.msra.mxu0 0
      %921 = vmatprep.subr.bf16.mxu0 0
      %922 = vmatpush1.bf16.msra.mxu0 0
      %923 = vmatprep.mubr.bf16.mxu0 0
      %924 = vmatmul.mubr.bf16.gmra.mrb[0].mxu0 %v840
      %v925 = vpop.f32.mrb[0].mxu0
      %v926 = vadd.f32 0.0, %v925
      %v927 = vpop.f32.mrb[0].mxu0
      %v928 = vpop.f32.mrb[0].mxu0
      %v929 = vadd.f32 0.0, %v928
      %v930 = vpop.f32.mrb[0].mxu0
      %931 = vmatprep.mubr.bf16.mxu0 0
      %932 = vmatmul.mubr.bf16.gmra.mrb[0].mxu0 %v843
      %v933 = vpop.f32.mrb[0].mxu0
      %v934 = vadd.f32 0.0, %v933
      %v935 = vpop.f32.mrb[0].mxu0
      %v936 = vpop.f32.mrb[0].mxu0
      %v937 = vadd.f32 0.0, %v936
      %v938 = vpop.f32.mrb[0].mxu0
      %939 = vmatprep.mubr.bf16.mxu0 0
      %940 = vmatmul.mubr.bf16.gmra.mrb[0].mxu0 %v846
      %v941 = vpop.f32.mrb[0].mxu0
      %v942 = vadd.f32 0.0, %v941
      %v943 = vpop.f32.mrb[0].mxu0
      %v944 = vpop.f32.mrb[0].mxu0
      %v945 = vadd.f32 0.0, %v944
      %v946 = vpop.f32.mrb[0].mxu0
      %947 = vmatprep.mubr.bf16.mxu0 0
      %948 = vmatmul.mubr.bf16.gmra.mrb[0].mxu0 %v849
      %v949 = vpop.f32.mrb[0].mxu0
      %v950 = vadd.f32 0.0, %v949
      %v951 = vpop.f32.mrb[0].mxu0
      %v952 = vpop.f32.mrb[0].mxu0
      %v953 = vadd.f32 0.0, %v952
      %v954 = vpop.f32.mrb[0].mxu0
      %955 = vmatprep.mubr.bf16.mxu0 0
      %956 = vmatmul.mubr.bf16.gmra.mrb[0].mxu0 %v852
      %v957 = vpop.f32.mrb[0].mxu0
      %v958 = vadd.f32 0.0, %v957
      %v959 = vpop.f32.mrb[0].mxu0
      %v960 = vpop.f32.mrb[0].mxu0
      %v961 = vadd.f32 0.0, %v960
      %v962 = vpop.f32.mrb[0].mxu0
      %963 = vmatprep.mubr.bf16.mxu0 0
      %964 = vmatmul.mubr.bf16.gmra.mrb[0].mxu0 %v855
      %v965 = vpop.f32.mrb[0].mxu0
      %v966 = vadd.f32 0.0, %v965
      %v967 = vpop.f32.mrb[0].mxu0
      %v968 = vpop.f32.mrb[0].mxu0
      %v969 = vadd.f32 0.0, %v968
      %v970 = vpop.f32.mrb[0].mxu0
      %971 = vmatprep.mubr.bf16.mxu0 0
      %972 = vmatmul.mubr.bf16.gmra.mrb[0].mxu0 %v858
      %v973 = vpop.f32.mrb[0].mxu0
      %v974 = vadd.f32 0.0, %v973
      %v975 = vpop.f32.mrb[0].mxu0
      %v976 = vpop.f32.mrb[0].mxu0
      %v977 = vadd.f32 0.0, %v976
      %v978 = vpop.f32.mrb[0].mxu0
      %979 = vmatprep.mubr.bf16.mxu0 0
      %980 = vmatmul.mubr.bf16.gmra.mrb[0].mxu0 %v861
      %v981 = vpop.f32.mrb[0].mxu0
      %v982 = vadd.f32 0.0, %v981
      %v983 = vpop.f32.mrb[0].mxu0
      %v984 = vpop.f32.mrb[0].mxu0
      %v985 = vadd.f32 0.0, %v984
      %v986 = vpop.f32.mrb[0].mxu0
      %987 = vmatprep.mubr.bf16.mxu0 0
      %988 = vmatmul.mubr.bf16.gmra.mrb[0].mxu0 %v864
      %v989 = vpop.f32.mrb[0].mxu0
      %v990 = vadd.f32 0.0, %v989
      %v991 = vpop.f32.mrb[0].mxu0
      %v992 = vpop.f32.mrb[0].mxu0
      %v993 = vadd.f32 0.0, %v992
      %v994 = vpop.f32.mrb[0].mxu0
      %995 = vmatprep.mubr.bf16.mxu0 0
      %996 = vmatmul.mubr.bf16.gmra.mrb[0].mxu0 %v867
      %v997 = vpop.f32.mrb[0].mxu0
      %v998 = vadd.f32 0.0, %v997
      %v999 = vpop.f32.mrb[0].mxu0
      %v1000 = vpop.f32.mrb[0].mxu0
      %v1001 = vadd.f32 0.0, %v1000
      %v1002 = vpop.f32.mrb[0].mxu0
      %1003 = vmatprep.mubr.bf16.mxu0 0
      %1004 = vmatmul.mubr.bf16.gmra.mrb[0].mxu0 %v870
      %v1005 = vpop.f32.mrb[0].mxu0
      %v1006 = vadd.f32 0.0, %v1005
      %v1007 = vpop.f32.mrb[0].mxu0
      %v1008 = vpop.f32.mrb[0].mxu0
      %v1009 = vadd.f32 0.0, %v1008
      %v1010 = vpop.f32.mrb[0].mxu0
      %1011 = vmatprep.mubr.bf16.mxu0 0
      %1012 = vmatmul.mubr.bf16.gmra.mrb[0].mxu0 %v873
      %v1013 = vpop.f32.mrb[0].mxu0
      %v1014 = vadd.f32 0.0, %v1013
      %v1015 = vpop.f32.mrb[0].mxu0
      %v1016 = vpop.f32.mrb[0].mxu0
      %v1017 = vadd.f32 0.0, %v1016
      %v1018 = vpop.f32.mrb[0].mxu0
      %1019 = vmatprep.mubr.bf16.mxu0 0
      %1020 = vmatmul.mubr.bf16.gmra.mrb[0].mxu0 %v876
      %v1021 = vpop.f32.mrb[0].mxu0
      %v1022 = vadd.f32 0.0, %v1021
      %v1023 = vpop.f32.mrb[0].mxu0
      %v1024 = vpop.f32.mrb[0].mxu0
      %v1025 = vadd.f32 0.0, %v1024
      %v1026 = vpop.f32.mrb[0].mxu0
      %1027 = vmatprep.mubr.bf16.mxu0 0
      %1028 = vmatmul.mubr.bf16.gmra.mrb[0].mxu0 %v879
      %v1029 = vpop.f32.mrb[0].mxu0
      %v1030 = vadd.f32 0.0, %v1029
      %v1031 = vpop.f32.mrb[0].mxu0
      %v1032 = vpop.f32.mrb[0].mxu0
      %v1033 = vadd.f32 0.0, %v1032
      %v1034 = vpop.f32.mrb[0].mxu0
      %1035 = vmatprep.mubr.bf16.mxu0 0
      %1036 = vmatmul.mubr.bf16.gmra.mrb[0].mxu0 %v882
      %v1037 = vpop.f32.mrb[0].mxu0
      %v1038 = vadd.f32 0.0, %v1037
      %v1039 = vpop.f32.mrb[0].mxu0
      %v1040 = vpop.f32.mrb[0].mxu0
      %v1041 = vadd.f32 0.0, %v1040
      %v1042 = vpop.f32.mrb[0].mxu0
      %1043 = vmatprep.mubr.bf16.mxu0 0
      %1044 = vmatmul.mubr.bf16.gmra.mrb[0].mxu0 %v885
      %v1045 = vpop.f32.mrb[0].mxu0
      %v1046 = vadd.f32 0.0, %v1045
      %v1047 = vpop.f32.mrb[0].mxu0
      %v1048 = vpop.f32.mrb[0].mxu0
      %v1049 = vadd.f32 0.0, %v1048
      %v1050 = vpop.f32.mrb[0].mxu0
      %1051 = vdwg.mxu0
      %v1084 = vunpack.c.l.b16 %v346
      %v1085 = vunpack.c.l.b16 %v347
      %v1086 = vunpack.c.l.b16 %v349
      %v1087 = vunpack.c.l.b16 %v350
      %v1088 = vunpack.c.l.b16 %v352
      %v1089 = vunpack.c.l.b16 %v353
      %v1090 = vunpack.c.l.b16 %v355
      %v1091 = vunpack.c.l.b16 %v356
      %v1092 = vunpack.c.l.b16 %v358
      %v1093 = vunpack.c.l.b16 %v359
      %v1094 = vunpack.c.l.b16 %v361
      %v1095 = vunpack.c.l.b16 %v362
      %v1096 = vunpack.c.l.b16 %v364
      %v1097 = vunpack.c.l.b16 %v365
      %v1098 = vunpack.c.l.b16 %v367
      %v1099 = vunpack.c.l.b16 %v368
      %v1100 = vunpack.c.l.b16 %v370
      %v1101 = vunpack.c.l.b16 %v371
      %v1102 = vunpack.c.l.b16 %v373
      %v1103 = vunpack.c.l.b16 %v374
      %v1104 = vunpack.c.l.b16 %v376
      %v1105 = vunpack.c.l.b16 %v377
      %v1106 = vunpack.c.l.b16 %v379
      %v1107 = vunpack.c.l.b16 %v380
      %v1108 = vunpack.c.l.b16 %v382
      %v1109 = vunpack.c.l.b16 %v383
      %v1110 = vunpack.c.l.b16 %v385
      %v1111 = vunpack.c.l.b16 %v386
      %v1112 = vunpack.c.l.b16 %v388
      %v1113 = vunpack.c.l.b16 %v389
      %v1114 = vunpack.c.l.b16 %v391
      %v1115 = vunpack.c.l.b16 %v392
      %v1116 = vpack.c.b16 %v1085, %v1084
      %v1117 = vpack.c.b16 %v1087, %v1086
      %v1118 = vpack.c.b16 %v1089, %v1088
      %v1119 = vpack.c.b16 %v1091, %v1090
      %v1120 = vpack.c.b16 %v1093, %v1092
      %v1121 = vpack.c.b16 %v1095, %v1094
      %v1122 = vpack.c.b16 %v1097, %v1096
      %v1123 = vpack.c.b16 %v1099, %v1098
      %v1124 = vpack.c.b16 %v1101, %v1100
      %v1125 = vpack.c.b16 %v1103, %v1102
      %v1126 = vpack.c.b16 %v1105, %v1104
      %v1127 = vpack.c.b16 %v1107, %v1106
      %v1128 = vpack.c.b16 %v1109, %v1108
      %v1129 = vpack.c.b16 %v1111, %v1110
      %v1130 = vpack.c.b16 %v1113, %v1112
      %v1131 = vpack.c.b16 %v1115, %v1114
      %v1133 = vsel %vm838, %v1116, 0
      %v1136 = vsel %vm838, %v1117, 0
      %v1139 = vsel %vm838, %v1118, 0
      %v1142 = vsel %vm838, %v1119, 0
      %v1145 = vsel %vm838, %v1120, 0
      %v1148 = vsel %vm838, %v1121, 0
      %v1151 = vsel %vm838, %v1122, 0
      %v1154 = vsel %vm838, %v1123, 0
      %v1157 = vsel %vm838, %v1124, 0
      %v1160 = vsel %vm838, %v1125, 0
      %v1163 = vsel %vm838, %v1126, 0
      %v1166 = vsel %vm838, %v1127, 0
      %v1169 = vsel %vm838, %v1128, 0
      %v1172 = vsel %vm838, %v1129, 0
      %v1175 = vsel %vm838, %v1130, 0
      %v1178 = vsel %vm838, %v1131, 0
      %v1181 = vsel %vm887, %v400, 0
      %1183 = vmatprep.subr.bf16.mxu0 0
      %1184 = vmatpush1.bf16.msra.mxu0 %v1181
      %1185 = vmatprep.subr.bf16.mxu0 0
      %1186 = vmatpush1.bf16.msra.mxu0 0
      %1187 = vmatprep.subr.bf16.mxu0 0
      %1188 = vmatpush1.bf16.msra.mxu0 0
      %1189 = vmatprep.subr.bf16.mxu0 0
      %1190 = vmatpush1.bf16.msra.mxu0 0
      %1191 = vmatprep.subr.bf16.mxu0 0
      %1192 = vmatpush1.bf16.msra.mxu0 0
      %1193 = vmatprep.subr.bf16.mxu0 0
      %1194 = vmatpush1.bf16.msra.mxu0 0
      %1195 = vmatprep.subr.bf16.mxu0 0
      %1196 = vmatpush1.bf16.msra.mxu0 0
      %1197 = vmatprep.subr.bf16.mxu0 0
      %1198 = vmatpush1.bf16.msra.mxu0 0
      %1199 = vmatprep.subr.bf16.mxu0 0
      %1200 = vmatpush1.bf16.msra.mxu0 0
      %1201 = vmatprep.subr.bf16.mxu0 0
      %1202 = vmatpush1.bf16.msra.mxu0 0
      %1203 = vmatprep.subr.bf16.mxu0 0
      %1204 = vmatpush1.bf16.msra.mxu0 0
      %1205 = vmatprep.subr.bf16.mxu0 0
      %1206 = vmatpush1.bf16.msra.mxu0 0
      %1207 = vmatprep.subr.bf16.mxu0 0
      %1208 = vmatpush1.bf16.msra.mxu0 0
      %1209 = vmatprep.subr.bf16.mxu0 0
      %1210 = vmatpush1.bf16.msra.mxu0 0
      %1211 = vmatprep.subr.bf16.mxu0 0
      %1212 = vmatpush1.bf16.msra.mxu0 0
      %1213 = vmatprep.subr.bf16.mxu0 0
      %1214 = vmatpush1.bf16.msra.mxu0 0
      %1215 = vmatprep.mubr.bf16.mxu0 0
      %1216 = vmatmul.mubr.bf16.gmra.mrb[0].mxu0 %v1133
      %v1217 = vpop.f32.mrb[0].mxu0
      %v1218 = vadd.f32 %v926, %v1217
      %v1219 = vpop.f32.mrb[0].mxu0
      %v1220 = vpop.f32.mrb[0].mxu0
      %v1221 = vadd.f32 %v929, %v1220
      %v1222 = vpop.f32.mrb[0].mxu0
      %1223 = vmatprep.mubr.bf16.mxu0 0
      %1224 = vmatmul.mubr.bf16.gmra.mrb[0].mxu0 %v1136
      %v1225 = vpop.f32.mrb[0].mxu0
      %v1226 = vadd.f32 %v934, %v1225
      %v1227 = vpop.f32.mrb[0].mxu0
      %v1228 = vpop.f32.mrb[0].mxu0
      %v1229 = vadd.f32 %v937, %v1228
      %v1230 = vpop.f32.mrb[0].mxu0
      %1231 = vmatprep.mubr.bf16.mxu0 0
      %1232 = vmatmul.mubr.bf16.gmra.mrb[0].mxu0 %v1139
      %v1233 = vpop.f32.mrb[0].mxu0
      %v1234 = vadd.f32 %v942, %v1233
      %v1235 = vpop.f32.mrb[0].mxu0
      %v1236 = vpop.f32.mrb[0].mxu0
      %v1237 = vadd.f32 %v945, %v1236
      %v1238 = vpop.f32.mrb[0].mxu0
      %1239 = vmatprep.mubr.bf16.mxu0 0
      %1240 = vmatmul.mubr.bf16.gmra.mrb[0].mxu0 %v1142
      %v1241 = vpop.f32.mrb[0].mxu0
      %v1242 = vadd.f32 %v950, %v1241
      %v1243 = vpop.f32.mrb[0].mxu0
      %v1244 = vpop.f32.mrb[0].mxu0
      %v1245 = vadd.f32 %v953, %v1244
      %v1246 = vpop.f32.mrb[0].mxu0
      %1247 = vmatprep.mubr.bf16.mxu0 0
      %1248 = vmatmul.mubr.bf16.gmra.mrb[0].mxu0 %v1145
      %v1249 = vpop.f32.mrb[0].mxu0
      %v1250 = vadd.f32 %v958, %v1249
      %v1251 = vpop.f32.mrb[0].mxu0
      %v1252 = vpop.f32.mrb[0].mxu0
      %v1253 = vadd.f32 %v961, %v1252
      %v1254 = vpop.f32.mrb[0].mxu0
      %1255 = vmatprep.mubr.bf16.mxu0 0
      %1256 = vmatmul.mubr.bf16.gmra.mrb[0].mxu0 %v1148
      %v1257 = vpop.f32.mrb[0].mxu0
      %v1258 = vadd.f32 %v966, %v1257
      %v1259 = vpop.f32.mrb[0].mxu0
      %v1260 = vpop.f32.mrb[0].mxu0
      %v1261 = vadd.f32 %v969, %v1260
      %v1262 = vpop.f32.mrb[0].mxu0
      %1263 = vmatprep.mubr.bf16.mxu0 0
      %1264 = vmatmul.mubr.bf16.gmra.mrb[0].mxu0 %v1151
      %v1265 = vpop.f32.mrb[0].mxu0
      %v1266 = vadd.f32 %v974, %v1265
      %v1267 = vpop.f32.mrb[0].mxu0
      %v1268 = vpop.f32.mrb[0].mxu0
      %v1269 = vadd.f32 %v977, %v1268
      %v1270 = vpop.f32.mrb[0].mxu0
      %1271 = vmatprep.mubr.bf16.mxu0 0
      %1272 = vmatmul.mubr.bf16.gmra.mrb[0].mxu0 %v1154
      %v1273 = vpop.f32.mrb[0].mxu0
      %v1274 = vadd.f32 %v982, %v1273
      %v1275 = vpop.f32.mrb[0].mxu0
      %v1276 = vpop.f32.mrb[0].mxu0
      %v1277 = vadd.f32 %v985, %v1276
      %v1278 = vpop.f32.mrb[0].mxu0
      %1279 = vmatprep.mubr.bf16.mxu0 0
      %1280 = vmatmul.mubr.bf16.gmra.mrb[0].mxu0 %v1157
      %v1281 = vpop.f32.mrb[0].mxu0
      %v1282 = vadd.f32 %v990, %v1281
      %v1283 = vpop.f32.mrb[0].mxu0
      %v1284 = vpop.f32.mrb[0].mxu0
      %v1285 = vadd.f32 %v993, %v1284
      %v1286 = vpop.f32.mrb[0].mxu0
      %1287 = vmatprep.mubr.bf16.mxu0 0
      %1288 = vmatmul.mubr.bf16.gmra.mrb[0].mxu0 %v1160
      %v1289 = vpop.f32.mrb[0].mxu0
      %v1290 = vadd.f32 %v998, %v1289
      %v1291 = vpop.f32.mrb[0].mxu0
      %v1292 = vpop.f32.mrb[0].mxu0
      %v1293 = vadd.f32 %v1001, %v1292
      %v1294 = vpop.f32.mrb[0].mxu0
      %1295 = vmatprep.mubr.bf16.mxu0 0
      %1296 = vmatmul.mubr.bf16.gmra.mrb[0].mxu0 %v1163
      %v1297 = vpop.f32.mrb[0].mxu0
      %v1298 = vadd.f32 %v1006, %v1297
      %v1299 = vpop.f32.mrb[0].mxu0
      %v1300 = vpop.f32.mrb[0].mxu0
      %v1301 = vadd.f32 %v1009, %v1300
      %v1302 = vpop.f32.mrb[0].mxu0
      %1303 = vmatprep.mubr.bf16.mxu0 0
      %1304 = vmatmul.mubr.bf16.gmra.mrb[0].mxu0 %v1166
      %v1305 = vpop.f32.mrb[0].mxu0
      %v1306 = vadd.f32 %v1014, %v1305
      %v1307 = vpop.f32.mrb[0].mxu0
      %v1308 = vpop.f32.mrb[0].mxu0
      %v1309 = vadd.f32 %v1017, %v1308
      %v1310 = vpop.f32.mrb[0].mxu0
      %1311 = vmatprep.mubr.bf16.mxu0 0
      %1312 = vmatmul.mubr.bf16.gmra.mrb[0].mxu0 %v1169
      %v1313 = vpop.f32.mrb[0].mxu0
      %v1314 = vadd.f32 %v1022, %v1313
      %v1315 = vpop.f32.mrb[0].mxu0
      %v1316 = vpop.f32.mrb[0].mxu0
      %v1317 = vadd.f32 %v1025, %v1316
      %v1318 = vpop.f32.mrb[0].mxu0
      %1319 = vmatprep.mubr.bf16.mxu0 0
      %1320 = vmatmul.mubr.bf16.gmra.mrb[0].mxu0 %v1172
      %v1321 = vpop.f32.mrb[0].mxu0
      %v1322 = vadd.f32 %v1030, %v1321
      %v1323 = vpop.f32.mrb[0].mxu0
      %v1324 = vpop.f32.mrb[0].mxu0
      %v1325 = vadd.f32 %v1033, %v1324
      %v1326 = vpop.f32.mrb[0].mxu0
      %1327 = vmatprep.mubr.bf16.mxu0 0
      %1328 = vmatmul.mubr.bf16.gmra.mrb[0].mxu0 %v1175
      %v1329 = vpop.f32.mrb[0].mxu0
      %v1330 = vadd.f32 %v1038, %v1329
      %v1331 = vpop.f32.mrb[0].mxu0
      %v1332 = vpop.f32.mrb[0].mxu0
      %v1333 = vadd.f32 %v1041, %v1332
      %v1334 = vpop.f32.mrb[0].mxu0
      %1335 = vmatprep.mubr.bf16.mxu0 0
      %1336 = vmatmul.mubr.bf16.gmra.mrb[0].mxu0 %v1178
      %v1337 = vpop.f32.mrb[0].mxu0
      %v1338 = vadd.f32 %v1046, %v1337
      %v1339 = vpop.f32.mrb[0].mxu0
      %v1340 = vpop.f32.mrb[0].mxu0
      %v1341 = vadd.f32 %v1049, %v1340
      %v1342 = vpop.f32.mrb[0].mxu0
      %1343 = vdwg.mxu0
      %vm1360 = vcmask 1042432
      %vm1361 = vcmask 1046532
      %vm1362 = vmor %vm1360, %vm1361
      %v1363 = vrot.slane %v346, 5
      %v1364 = vrot.slane %v1363, 4
      %v1365 = vrot.slane %v347, 5
      %v1366 = vsel %vm1362, %v1364, %v1365
      %v1367 = vrot.slane %v1365, 4
      %v1368 = vrot.slane %v348, 5
      %v1369 = vsel %vm1362, %v1367, %v1368
      %v1370 = vrot.slane %v349, 5
      %v1371 = vrot.slane %v1370, 4
      %v1372 = vrot.slane %v350, 5
      %v1373 = vsel %vm1362, %v1371, %v1372
      %v1374 = vrot.slane %v1372, 4
      %v1375 = vrot.slane %v351, 5
      %v1376 = vsel %vm1362, %v1374, %v1375
      %v1377 = vrot.slane %v352, 5
      %v1378 = vrot.slane %v1377, 4
      %v1379 = vrot.slane %v353, 5
      %v1380 = vsel %vm1362, %v1378, %v1379
      %v1381 = vrot.slane %v1379, 4
      %v1382 = vrot.slane %v354, 5
      %v1383 = vsel %vm1362, %v1381, %v1382
      %v1384 = vrot.slane %v355, 5
      %v1385 = vrot.slane %v1384, 4
      %v1386 = vrot.slane %v356, 5
      %v1387 = vsel %vm1362, %v1385, %v1386
      %v1388 = vrot.slane %v1386, 4
      %v1389 = vrot.slane %v357, 5
      %v1390 = vsel %vm1362, %v1388, %v1389
      %v1391 = vrot.slane %v358, 5
      %v1392 = vrot.slane %v1391, 4
      %v1393 = vrot.slane %v359, 5
      %v1394 = vsel %vm1362, %v1392, %v1393
      %v1395 = vrot.slane %v1393, 4
      %v1396 = vrot.slane %v360, 5
      %v1397 = vsel %vm1362, %v1395, %v1396
      %v1398 = vrot.slane %v361, 5
      %v1399 = vrot.slane %v1398, 4
      %v1400 = vrot.slane %v362, 5
      %v1401 = vsel %vm1362, %v1399, %v1400
      %v1402 = vrot.slane %v1400, 4
      %v1403 = vrot.slane %v363, 5
      %v1404 = vsel %vm1362, %v1402, %v1403
      %v1405 = vrot.slane %v364, 5
      %v1406 = vrot.slane %v1405, 4
      %v1407 = vrot.slane %v365, 5
      %v1408 = vsel %vm1362, %v1406, %v1407
      %v1409 = vrot.slane %v1407, 4
      %v1410 = vrot.slane %v366, 5
      %v1411 = vsel %vm1362, %v1409, %v1410
      %v1412 = vrot.slane %v367, 5
      %v1413 = vrot.slane %v1412, 4
      %v1414 = vrot.slane %v368, 5
      %v1415 = vsel %vm1362, %v1413, %v1414
      %v1416 = vrot.slane %v1414, 4
      %v1417 = vrot.slane %v369, 5
      %v1418 = vsel %vm1362, %v1416, %v1417
      %v1419 = vrot.slane %v370, 5
      %v1420 = vrot.slane %v1419, 4
      %v1421 = vrot.slane %v371, 5
      %v1422 = vsel %vm1362, %v1420, %v1421
      %v1423 = vrot.slane %v1421, 4
      %v1424 = vrot.slane %v372, 5
      %v1425 = vsel %vm1362, %v1423, %v1424
      %v1426 = vrot.slane %v373, 5
      %v1427 = vrot.slane %v1426, 4
      %v1428 = vrot.slane %v374, 5
      %v1429 = vsel %vm1362, %v1427, %v1428
      %v1430 = vrot.slane %v1428, 4
      %v1431 = vrot.slane %v375, 5
      %v1432 = vsel %vm1362, %v1430, %v1431
      %v1433 = vrot.slane %v376, 5
      %v1434 = vrot.slane %v1433, 4
      %v1435 = vrot.slane %v377, 5
      %v1436 = vsel %vm1362, %v1434, %v1435
      %v1437 = vrot.slane %v1435, 4
      %v1438 = vrot.slane %v378, 5
      %v1439 = vsel %vm1362, %v1437, %v1438
      %v1440 = vrot.slane %v379, 5
      %v1441 = vrot.slane %v1440, 4
      %v1442 = vrot.slane %v380, 5
      %v1443 = vsel %vm1362, %v1441, %v1442
      %v1444 = vrot.slane %v1442, 4
      %v1445 = vrot.slane %v381, 5
      %v1446 = vsel %vm1362, %v1444, %v1445
      %v1447 = vrot.slane %v382, 5
      %v1448 = vrot.slane %v1447, 4
      %v1449 = vrot.slane %v383, 5
      %v1450 = vsel %vm1362, %v1448, %v1449
      %v1451 = vrot.slane %v1449, 4
      %v1452 = vrot.slane %v384, 5
      %v1453 = vsel %vm1362, %v1451, %v1452
      %v1454 = vrot.slane %v385, 5
      %v1455 = vrot.slane %v1454, 4
      %v1456 = vrot.slane %v386, 5
      %v1457 = vsel %vm1362, %v1455, %v1456
      %v1458 = vrot.slane %v1456, 4
      %v1459 = vrot.slane %v387, 5
      %v1460 = vsel %vm1362, %v1458, %v1459
      %v1461 = vrot.slane %v388, 5
      %v1462 = vrot.slane %v1461, 4
      %v1463 = vrot.slane %v389, 5
      %v1464 = vsel %vm1362, %v1462, %v1463
      %v1465 = vrot.slane %v1463, 4
      %v1466 = vrot.slane %v390, 5
      %v1467 = vsel %vm1362, %v1465, %v1466
      %v1468 = vrot.slane %v391, 5
      %v1469 = vrot.slane %v1468, 4
      %v1470 = vrot.slane %v392, 5
      %v1471 = vsel %vm1362, %v1469, %v1470
      %v1472 = vrot.slane %v1470, 4
      %v1473 = vrot.slane %v393, 5
      %v1474 = vsel %vm1362, %v1472, %v1473
      %s1475 = scalar_lea.vmem %s2, 4
      %v1476 = vld [vmem:[%s1475] sm:$0x3]
      %v1477 = vunpack.c.l.b16 %v1366
      %v1478 = vunpack.c.l.b16 %v1369
      %v1479 = vunpack.c.l.b16 %v1373
      %v1480 = vunpack.c.l.b16 %v1376
      %v1481 = vunpack.c.l.b16 %v1380
      %v1482 = vunpack.c.l.b16 %v1383
      %v1483 = vunpack.c.l.b16 %v1387
      %v1484 = vunpack.c.l.b16 %v1390
      %v1485 = vunpack.c.l.b16 %v1394
      %v1486 = vunpack.c.l.b16 %v1397
      %v1487 = vunpack.c.l.b16 %v1401
      %v1488 = vunpack.c.l.b16 %v1404
      %v1489 = vunpack.c.l.b16 %v1408
      %v1490 = vunpack.c.l.b16 %v1411
      %v1491 = vunpack.c.l.b16 %v1415
      %v1492 = vunpack.c.l.b16 %v1418
      %v1493 = vunpack.c.l.b16 %v1422
      %v1494 = vunpack.c.l.b16 %v1425
      %v1495 = vunpack.c.l.b16 %v1429
      %v1496 = vunpack.c.l.b16 %v1432
      %v1497 = vunpack.c.l.b16 %v1436
      %v1498 = vunpack.c.l.b16 %v1439
      %v1499 = vunpack.c.l.b16 %v1443
      %v1500 = vunpack.c.l.b16 %v1446
      %v1501 = vunpack.c.l.b16 %v1450
      %v1502 = vunpack.c.l.b16 %v1453
      %v1503 = vunpack.c.l.b16 %v1457
      %v1504 = vunpack.c.l.b16 %v1460
      %v1505 = vunpack.c.l.b16 %v1464
      %v1506 = vunpack.c.l.b16 %v1467
      %v1507 = vunpack.c.l.b16 %v1471
      %v1508 = vunpack.c.l.b16 %v1474
      %v1509 = vpack.c.b16 %v1478, %v1477
      %v1510 = vpack.c.b16 %v1480, %v1479
      %v1511 = vpack.c.b16 %v1482, %v1481
      %v1512 = vpack.c.b16 %v1484, %v1483
      %v1513 = vpack.c.b16 %v1486, %v1485
      %v1514 = vpack.c.b16 %v1488, %v1487
      %v1515 = vpack.c.b16 %v1490, %v1489
      %v1516 = vpack.c.b16 %v1492, %v1491
      %v1517 = vpack.c.b16 %v1494, %v1493
      %v1518 = vpack.c.b16 %v1496, %v1495
      %v1519 = vpack.c.b16 %v1498, %v1497
      %v1520 = vpack.c.b16 %v1500, %v1499
      %v1521 = vpack.c.b16 %v1502, %v1501
      %v1522 = vpack.c.b16 %v1504, %v1503
      %v1523 = vpack.c.b16 %v1506, %v1505
      %v1524 = vpack.c.b16 %v1508, %v1507
      %v1526 = vsel %vm838, %v1509, 0
      %v1529 = vsel %vm838, %v1510, 0
      %v1532 = vsel %vm838, %v1511, 0
      %v1535 = vsel %vm838, %v1512, 0
      %v1538 = vsel %vm838, %v1513, 0
      %v1541 = vsel %vm838, %v1514, 0
      %v1544 = vsel %vm838, %v1515, 0
      %v1547 = vsel %vm838, %v1516, 0
      %v1550 = vsel %vm838, %v1517, 0
      %v1553 = vsel %vm838, %v1518, 0
      %v1556 = vsel %vm838, %v1519, 0
      %v1559 = vsel %vm838, %v1520, 0
      %v1562 = vsel %vm838, %v1521, 0
      %v1565 = vsel %vm838, %v1522, 0
      %v1568 = vsel %vm838, %v1523, 0
      %v1571 = vsel %vm838, %v1524, 0
      %v1574 = vsel %vm887, %v1476, 0
      %1576 = vmatprep.subr.bf16.mxu0 0
      %1577 = vmatpush1.bf16.msra.mxu0 %v1574
      %1578 = vmatprep.subr.bf16.mxu0 0
      %1579 = vmatpush1.bf16.msra.mxu0 0
      %1580 = vmatprep.subr.bf16.mxu0 0
      %1581 = vmatpush1.bf16.msra.mxu0 0
      %1582 = vmatprep.subr.bf16.mxu0 0
      %1583 = vmatpush1.bf16.msra.mxu0 0
      %1584 = vmatprep.subr.bf16.mxu0 0
      %1585 = vmatpush1.bf16.msra.mxu0 0
      %1586 = vmatprep.subr.bf16.mxu0 0
      %1587 = vmatpush1.bf16.msra.mxu0 0
      %1588 = vmatprep.subr.bf16.mxu0 0
      %1589 = vmatpush1.bf16.msra.mxu0 0
      %1590 = vmatprep.subr.bf16.mxu0 0
      %1591 = vmatpush1.bf16.msra.mxu0 0
      %1592 = vmatprep.subr.bf16.mxu0 0
      %1593 = vmatpush1.bf16.msra.mxu0 0
      %1594 = vmatprep.subr.bf16.mxu0 0
      %1595 = vmatpush1.bf16.msra.mxu0 0
      %1596 = vmatprep.subr.bf16.mxu0 0
      %1597 = vmatpush1.bf16.msra.mxu0 0
      %1598 = vmatprep.subr.bf16.mxu0 0
      %1599 = vmatpush1.bf16.msra.mxu0 0
      %1600 = vmatprep.subr.bf16.mxu0 0
      %1601 = vmatpush1.bf16.msra.mxu0 0
      %1602 = vmatprep.subr.bf16.mxu0 0
      %1603 = vmatpush1.bf16.msra.mxu0 0
      %1604 = vmatprep.subr.bf16.mxu0 0
      %1605 = vmatpush1.bf16.msra.mxu0 0
      %1606 = vmatprep.subr.bf16.mxu0 0
      %1607 = vmatpush1.bf16.msra.mxu0 0
      %1608 = vmatprep.mubr.bf16.mxu0 0
      %1609 = vmatmul.mubr.bf16.gmra.mrb[0].mxu0 %v1526
      %v1610 = vpop.f32.mrb[0].mxu0
      %v1611 = vadd.f32 0.0, %v1610
      %v1612 = vpop.f32.mrb[0].mxu0
      %v1613 = vpop.f32.mrb[0].mxu0
      %v1614 = vadd.f32 0.0, %v1613
      %v1615 = vpop.f32.mrb[0].mxu0
      %1616 = vmatprep.mubr.bf16.mxu0 0
      %1617 = vmatmul.mubr.bf16.gmra.mrb[0].mxu0 %v1529
      %v1618 = vpop.f32.mrb[0].mxu0
      %v1619 = vadd.f32 0.0, %v1618
      %v1620 = vpop.f32.mrb[0].mxu0
      %v1621 = vpop.f32.mrb[0].mxu0
      %v1622 = vadd.f32 0.0, %v1621
      %v1623 = vpop.f32.mrb[0].mxu0
      %1624 = vmatprep.mubr.bf16.mxu0 0
      %1625 = vmatmul.mubr.bf16.gmra.mrb[0].mxu0 %v1532
      %v1626 = vpop.f32.mrb[0].mxu0
      %v1627 = vadd.f32 0.0, %v1626
      %v1628 = vpop.f32.mrb[0].mxu0
      %v1629 = vpop.f32.mrb[0].mxu0
      %v1630 = vadd.f32 0.0, %v1629
      %v1631 = vpop.f32.mrb[0].mxu0
      %1632 = vmatprep.mubr.bf16.mxu0 0
      %1633 = vmatmul.mubr.bf16.gmra.mrb[0].mxu0 %v1535
      %v1634 = vpop.f32.mrb[0].mxu0
      %v1635 = vadd.f32 0.0, %v1634
      %v1636 = vpop.f32.mrb[0].mxu0
      %v1637 = vpop.f32.mrb[0].mxu0
      %v1638 = vadd.f32 0.0, %v1637
      %v1639 = vpop.f32.mrb[0].mxu0
      %1640 = vmatprep.mubr.bf16.mxu0 0
      %1641 = vmatmul.mubr.bf16.gmra.mrb[0].mxu0 %v1538
      %v1642 = vpop.f32.mrb[0].mxu0
      %v1643 = vadd.f32 0.0, %v1642
      %v1644 = vpop.f32.mrb[0].mxu0
      %v1645 = vpop.f32.mrb[0].mxu0
      %v1646 = vadd.f32 0.0, %v1645
      %v1647 = vpop.f32.mrb[0].mxu0
      %1648 = vmatprep.mubr.bf16.mxu0 0
      %1649 = vmatmul.mubr.bf16.gmra.mrb[0].mxu0 %v1541
      %v1650 = vpop.f32.mrb[0].mxu0
      %v1651 = vadd.f32 0.0, %v1650
      %v1652 = vpop.f32.mrb[0].mxu0
      %v1653 = vpop.f32.mrb[0].mxu0
      %v1654 = vadd.f32 0.0, %v1653
      %v1655 = vpop.f32.mrb[0].mxu0
      %1656 = vmatprep.mubr.bf16.mxu0 0
      %1657 = vmatmul.mubr.bf16.gmra.mrb[0].mxu0 %v1544
      %v1658 = vpop.f32.mrb[0].mxu0
      %v1659 = vadd.f32 0.0, %v1658
      %v1660 = vpop.f32.mrb[0].mxu0
      %v1661 = vpop.f32.mrb[0].mxu0
      %v1662 = vadd.f32 0.0, %v1661
      %v1663 = vpop.f32.mrb[0].mxu0
      %1664 = vmatprep.mubr.bf16.mxu0 0
      %1665 = vmatmul.mubr.bf16.gmra.mrb[0].mxu0 %v1547
      %v1666 = vpop.f32.mrb[0].mxu0
      %v1667 = vadd.f32 0.0, %v1666
      %v1668 = vpop.f32.mrb[0].mxu0
      %v1669 = vpop.f32.mrb[0].mxu0
      %v1670 = vadd.f32 0.0, %v1669
      %v1671 = vpop.f32.mrb[0].mxu0
      %1672 = vmatprep.mubr.bf16.mxu0 0
      %1673 = vmatmul.mubr.bf16.gmra.mrb[0].mxu0 %v1550
      %v1674 = vpop.f32.mrb[0].mxu0
      %v1675 = vadd.f32 0.0, %v1674
      %v1676 = vpop.f32.mrb[0].mxu0
      %v1677 = vpop.f32.mrb[0].mxu0
      %v1678 = vadd.f32 0.0, %v1677
      %v1679 = vpop.f32.mrb[0].mxu0
      %1680 = vmatprep.mubr.bf16.mxu0 0
      %1681 = vmatmul.mubr.bf16.gmra.mrb[0].mxu0 %v1553
      %v1682 = vpop.f32.mrb[0].mxu0
      %v1683 = vadd.f32 0.0, %v1682
      %v1684 = vpop.f32.mrb[0].mxu0
      %v1685 = vpop.f32.mrb[0].mxu0
      %v1686 = vadd.f32 0.0, %v1685
      %v1687 = vpop.f32.mrb[0].mxu0
      %1688 = vmatprep.mubr.bf16.mxu0 0
      %1689 = vmatmul.mubr.bf16.gmra.mrb[0].mxu0 %v1556
      %v1690 = vpop.f32.mrb[0].mxu0
      %v1691 = vadd.f32 0.0, %v1690
      %v1692 = vpop.f32.mrb[0].mxu0
      %v1693 = vpop.f32.mrb[0].mxu0
      %v1694 = vadd.f32 0.0, %v1693
      %v1695 = vpop.f32.mrb[0].mxu0
      %1696 = vmatprep.mubr.bf16.mxu0 0
      %1697 = vmatmul.mubr.bf16.gmra.mrb[0].mxu0 %v1559
      %v1698 = vpop.f32.mrb[0].mxu0
      %v1699 = vadd.f32 0.0, %v1698
      %v1700 = vpop.f32.mrb[0].mxu0
      %v1701 = vpop.f32.mrb[0].mxu0
      %v1702 = vadd.f32 0.0, %v1701
      %v1703 = vpop.f32.mrb[0].mxu0
      %1704 = vmatprep.mubr.bf16.mxu0 0
      %1705 = vmatmul.mubr.bf16.gmra.mrb[0].mxu0 %v1562
      %v1706 = vpop.f32.mrb[0].mxu0
      %v1707 = vadd.f32 0.0, %v1706
      %v1708 = vpop.f32.mrb[0].mxu0
      %v1709 = vpop.f32.mrb[0].mxu0
      %v1710 = vadd.f32 0.0, %v1709
      %v1711 = vpop.f32.mrb[0].mxu0
      %1712 = vmatprep.mubr.bf16.mxu0 0
      %1713 = vmatmul.mubr.bf16.gmra.mrb[0].mxu0 %v1565
      %v1714 = vpop.f32.mrb[0].mxu0
      %v1715 = vadd.f32 0.0, %v1714
      %v1716 = vpop.f32.mrb[0].mxu0
      %v1717 = vpop.f32.mrb[0].mxu0
      %v1718 = vadd.f32 0.0, %v1717
      %v1719 = vpop.f32.mrb[0].mxu0
      %1720 = vmatprep.mubr.bf16.mxu0 0
      %1721 = vmatmul.mubr.bf16.gmra.mrb[0].mxu0 %v1568
      %v1722 = vpop.f32.mrb[0].mxu0
      %v1723 = vadd.f32 0.0, %v1722
      %v1724 = vpop.f32.mrb[0].mxu0
      %v1725 = vpop.f32.mrb[0].mxu0
      %v1726 = vadd.f32 0.0, %v1725
      %v1727 = vpop.f32.mrb[0].mxu0
      %1728 = vmatprep.mubr.bf16.mxu0 0
      %1729 = vmatmul.mubr.bf16.gmra.mrb[0].mxu0 %v1571
      %v1730 = vpop.f32.mrb[0].mxu0
      %v1731 = vadd.f32 0.0, %v1730
      %v1732 = vpop.f32.mrb[0].mxu0
      %v1733 = vpop.f32.mrb[0].mxu0
      %v1734 = vadd.f32 0.0, %v1733
      %v1735 = vpop.f32.mrb[0].mxu0
      %1736 = vdwg.mxu0
      %v1737 = vadd.f32 %v1218, %v1611
      %v1738 = vadd.f32 %v1221, %v1614
      %v1739 = vadd.f32 %v1226, %v1619
      %v1740 = vadd.f32 %v1229, %v1622
      %v1741 = vadd.f32 %v1234, %v1627
      %v1742 = vadd.f32 %v1237, %v1630
      %v1743 = vadd.f32 %v1242, %v1635
      %v1744 = vadd.f32 %v1245, %v1638
      %v1745 = vadd.f32 %v1250, %v1643
      %v1746 = vadd.f32 %v1253, %v1646
      %v1747 = vadd.f32 %v1258, %v1651
      %v1748 = vadd.f32 %v1261, %v1654
      %v1749 = vadd.f32 %v1266, %v1659
      %v1750 = vadd.f32 %v1269, %v1662
      %v1751 = vadd.f32 %v1274, %v1667
      %v1752 = vadd.f32 %v1277, %v1670
      %v1753 = vadd.f32 %v1282, %v1675
      %v1754 = vadd.f32 %v1285, %v1678
      %v1755 = vadd.f32 %v1290, %v1683
      %v1756 = vadd.f32 %v1293, %v1686
      %v1757 = vadd.f32 %v1298, %v1691
      %v1758 = vadd.f32 %v1301, %v1694
      %v1759 = vadd.f32 %v1306, %v1699
      %v1760 = vadd.f32 %v1309, %v1702
      %v1761 = vadd.f32 %v1314, %v1707
      %v1762 = vadd.f32 %v1317, %v1710
      %v1763 = vadd.f32 %v1322, %v1715
      %v1764 = vadd.f32 %v1325, %v1718
      %v1765 = vadd.f32 %v1330, %v1723
      %v1766 = vadd.f32 %v1333, %v1726
      %v1767 = vadd.f32 %v1338, %v1731
      %v1768 = vadd.f32 %v1341, %v1734
      %s1769 = scalar_lea.vmem %s2, 6
      %v1770 = vld [vmem:[%s1769] sm:$0x3]
      %v1773 = vunpack.c.l.b16 %v394
      %v1774 = vunpack.c.l.b16 %v395
      %v1775 = vpack.c.b16 %v1774, %v1773
      %v1777 = vsel %vm838, %v1775, 0
      %v1780 = vsel %vm887, %v1770, 0
      %1782 = vmatprep.subr.bf16.mxu0 0
      %1783 = vmatpush1.bf16.msra.mxu0 %v1780
      %1784 = vmatprep.subr.bf16.mxu0 0
      %1785 = vmatpush1.bf16.msra.mxu0 0
      %1786 = vmatprep.subr.bf16.mxu0 0
      %1787 = vmatpush1.bf16.msra.mxu0 0
      %1788 = vmatprep.subr.bf16.mxu0 0
      %1789 = vmatpush1.bf16.msra.mxu0 0
      %1790 = vmatprep.subr.bf16.mxu0 0
      %1791 = vmatpush1.bf16.msra.mxu0 0
      %1792 = vmatprep.subr.bf16.mxu0 0
      %1793 = vmatpush1.bf16.msra.mxu0 0
      %1794 = vmatprep.subr.bf16.mxu0 0
      %1795 = vmatpush1.bf16.msra.mxu0 0
      %1796 = vmatprep.subr.bf16.mxu0 0
      %1797 = vmatpush1.bf16.msra.mxu0 0
      %1798 = vmatprep.subr.bf16.mxu0 0
      %1799 = vmatpush1.bf16.msra.mxu0 0
      %1800 = vmatprep.subr.bf16.mxu0 0
      %1801 = vmatpush1.bf16.msra.mxu0 0
      %1802 = vmatprep.subr.bf16.mxu0 0
      %1803 = vmatpush1.bf16.msra.mxu0 0
      %1804 = vmatprep.subr.bf16.mxu0 0
      %1805 = vmatpush1.bf16.msra.mxu0 0
      %1806 = vmatprep.subr.bf16.mxu0 0
      %1807 = vmatpush1.bf16.msra.mxu0 0
      %1808 = vmatprep.subr.bf16.mxu0 0
      %1809 = vmatpush1.bf16.msra.mxu0 0
      %1810 = vmatprep.subr.bf16.mxu0 0
      %1811 = vmatpush1.bf16.msra.mxu0 0
      %1812 = vmatprep.subr.bf16.mxu0 0
      %1813 = vmatpush1.bf16.msra.mxu0 0
      %1814 = vmatprep.mubr.bf16.mxu0 0
      %1815 = vmatmul.mubr.bf16.gmra.mrb[0].mxu0 %v1136
      %v1816 = vpop.f32.mrb[0].mxu0
      %v1817 = vadd.f32 0.0, %v1816
      %v1818 = vpop.f32.mrb[0].mxu0
      %v1819 = vpop.f32.mrb[0].mxu0
      %v1820 = vadd.f32 0.0, %v1819
      %v1821 = vpop.f32.mrb[0].mxu0
      %1822 = vmatprep.mubr.bf16.mxu0 0
      %1823 = vmatmul.mubr.bf16.gmra.mrb[0].mxu0 %v1139
      %v1824 = vpop.f32.mrb[0].mxu0
      %v1825 = vadd.f32 0.0, %v1824
      %v1826 = vpop.f32.mrb[0].mxu0
      %v1827 = vpop.f32.mrb[0].mxu0
      %v1828 = vadd.f32 0.0, %v1827
      %v1829 = vpop.f32.mrb[0].mxu0
      %1830 = vmatprep.mubr.bf16.mxu0 0
      %1831 = vmatmul.mubr.bf16.gmra.mrb[0].mxu0 %v1142
      %v1832 = vpop.f32.mrb[0].mxu0
      %v1833 = vadd.f32 0.0, %v1832
      %v1834 = vpop.f32.mrb[0].mxu0
      %v1835 = vpop.f32.mrb[0].mxu0
      %v1836 = vadd.f32 0.0, %v1835
      %v1837 = vpop.f32.mrb[0].mxu0
      %1838 = vmatprep.mubr.bf16.mxu0 0
      %1839 = vmatmul.mubr.bf16.gmra.mrb[0].mxu0 %v1145
      %v1840 = vpop.f32.mrb[0].mxu0
      %v1841 = vadd.f32 0.0, %v1840
      %v1842 = vpop.f32.mrb[0].mxu0
      %v1843 = vpop.f32.mrb[0].mxu0
      %v1844 = vadd.f32 0.0, %v1843
      %v1845 = vpop.f32.mrb[0].mxu0
      %1846 = vmatprep.mubr.bf16.mxu0 0
      %1847 = vmatmul.mubr.bf16.gmra.mrb[0].mxu0 %v1148
      %v1848 = vpop.f32.mrb[0].mxu0
      %v1849 = vadd.f32 0.0, %v1848
      %v1850 = vpop.f32.mrb[0].mxu0
      %v1851 = vpop.f32.mrb[0].mxu0
      %v1852 = vadd.f32 0.0, %v1851
      %v1853 = vpop.f32.mrb[0].mxu0
      %1854 = vmatprep.mubr.bf16.mxu0 0
      %1855 = vmatmul.mubr.bf16.gmra.mrb[0].mxu0 %v1151
      %v1856 = vpop.f32.mrb[0].mxu0
      %v1857 = vadd.f32 0.0, %v1856
      %v1858 = vpop.f32.mrb[0].mxu0
      %v1859 = vpop.f32.mrb[0].mxu0
      %v1860 = vadd.f32 0.0, %v1859
      %v1861 = vpop.f32.mrb[0].mxu0
      %1862 = vmatprep.mubr.bf16.mxu0 0
      %1863 = vmatmul.mubr.bf16.gmra.mrb[0].mxu0 %v1154
      %v1864 = vpop.f32.mrb[0].mxu0
      %v1865 = vadd.f32 0.0, %v1864
      %v1866 = vpop.f32.mrb[0].mxu0
      %v1867 = vpop.f32.mrb[0].mxu0
      %v1868 = vadd.f32 0.0, %v1867
      %v1869 = vpop.f32.mrb[0].mxu0
      %1870 = vmatprep.mubr.bf16.mxu0 0
      %1871 = vmatmul.mubr.bf16.gmra.mrb[0].mxu0 %v1157
      %v1872 = vpop.f32.mrb[0].mxu0
      %v1873 = vadd.f32 0.0, %v1872
      %v1874 = vpop.f32.mrb[0].mxu0
      %v1875 = vpop.f32.mrb[0].mxu0
      %v1876 = vadd.f32 0.0, %v1875
      %v1877 = vpop.f32.mrb[0].mxu0
      %1878 = vmatprep.mubr.bf16.mxu0 0
      %1879 = vmatmul.mubr.bf16.gmra.mrb[0].mxu0 %v1160
      %v1880 = vpop.f32.mrb[0].mxu0
      %v1881 = vadd.f32 0.0, %v1880
      %v1882 = vpop.f32.mrb[0].mxu0
      %v1883 = vpop.f32.mrb[0].mxu0
      %v1884 = vadd.f32 0.0, %v1883
      %v1885 = vpop.f32.mrb[0].mxu0
      %1886 = vmatprep.mubr.bf16.mxu0 0
      %1887 = vmatmul.mubr.bf16.gmra.mrb[0].mxu0 %v1163
      %v1888 = vpop.f32.mrb[0].mxu0
      %v1889 = vadd.f32 0.0, %v1888
      %v1890 = vpop.f32.mrb[0].mxu0
      %v1891 = vpop.f32.mrb[0].mxu0
      %v1892 = vadd.f32 0.0, %v1891
      %v1893 = vpop.f32.mrb[0].mxu0
      %1894 = vmatprep.mubr.bf16.mxu0 0
      %1895 = vmatmul.mubr.bf16.gmra.mrb[0].mxu0 %v1166
      %v1896 = vpop.f32.mrb[0].mxu0
      %v1897 = vadd.f32 0.0, %v1896
      %v1898 = vpop.f32.mrb[0].mxu0
      %v1899 = vpop.f32.mrb[0].mxu0
      %v1900 = vadd.f32 0.0, %v1899
      %v1901 = vpop.f32.mrb[0].mxu0
      %1902 = vmatprep.mubr.bf16.mxu0 0
      %1903 = vmatmul.mubr.bf16.gmra.mrb[0].mxu0 %v1169
      %v1904 = vpop.f32.mrb[0].mxu0
      %v1905 = vadd.f32 0.0, %v1904
      %v1906 = vpop.f32.mrb[0].mxu0
      %v1907 = vpop.f32.mrb[0].mxu0
      %v1908 = vadd.f32 0.0, %v1907
      %v1909 = vpop.f32.mrb[0].mxu0
      %1910 = vmatprep.mubr.bf16.mxu0 0
      %1911 = vmatmul.mubr.bf16.gmra.mrb[0].mxu0 %v1172
      %v1912 = vpop.f32.mrb[0].mxu0
      %v1913 = vadd.f32 0.0, %v1912
      %v1914 = vpop.f32.mrb[0].mxu0
      %v1915 = vpop.f32.mrb[0].mxu0
      %v1916 = vadd.f32 0.0, %v1915
      %v1917 = vpop.f32.mrb[0].mxu0
      %1918 = vmatprep.mubr.bf16.mxu0 0
      %1919 = vmatmul.mubr.bf16.gmra.mrb[0].mxu0 %v1175
      %v1920 = vpop.f32.mrb[0].mxu0
      %v1921 = vadd.f32 0.0, %v1920
      %v1922 = vpop.f32.mrb[0].mxu0
      %v1923 = vpop.f32.mrb[0].mxu0
      %v1924 = vadd.f32 0.0, %v1923
      %v1925 = vpop.f32.mrb[0].mxu0
      %1926 = vmatprep.mubr.bf16.mxu0 0
      %1927 = vmatmul.mubr.bf16.gmra.mrb[0].mxu0 %v1178
      %v1928 = vpop.f32.mrb[0].mxu0
      %v1929 = vadd.f32 0.0, %v1928
      %v1930 = vpop.f32.mrb[0].mxu0
      %v1931 = vpop.f32.mrb[0].mxu0
      %v1932 = vadd.f32 0.0, %v1931
      %v1933 = vpop.f32.mrb[0].mxu0
      %1934 = vmatprep.mubr.bf16.mxu0 0
      %1935 = vmatmul.mubr.bf16.gmra.mrb[0].mxu0 %v1777
      %v1936 = vpop.f32.mrb[0].mxu0
      %v1937 = vadd.f32 0.0, %v1936
      %v1938 = vpop.f32.mrb[0].mxu0
      %v1939 = vpop.f32.mrb[0].mxu0
      %v1940 = vadd.f32 0.0, %v1939
      %v1941 = vpop.f32.mrb[0].mxu0
      %1942 = vdwg.mxu0
      %v1943 = vadd.f32 %v1737, %v1817
      %v1944 = vadd.f32 %v1738, %v1820
      %v1945 = vadd.f32 %v1739, %v1825
      %v1946 = vadd.f32 %v1740, %v1828
      %v1947 = vadd.f32 %v1741, %v1833
      %v1948 = vadd.f32 %v1742, %v1836
      %v1949 = vadd.f32 %v1743, %v1841
      %v1950 = vadd.f32 %v1744, %v1844
      %v1951 = vadd.f32 %v1745, %v1849
      %v1952 = vadd.f32 %v1746, %v1852
      %v1953 = vadd.f32 %v1747, %v1857
      %v1954 = vadd.f32 %v1748, %v1860
      %v1955 = vadd.f32 %v1749, %v1865
      %v1956 = vadd.f32 %v1750, %v1868
      %v1957 = vadd.f32 %v1751, %v1873
      %v1958 = vadd.f32 %v1752, %v1876
      %v1959 = vadd.f32 %v1753, %v1881
      %v1960 = vadd.f32 %v1754, %v1884
      %v1961 = vadd.f32 %v1755, %v1889
      %v1962 = vadd.f32 %v1756, %v1892
      %v1963 = vadd.f32 %v1757, %v1897
      %v1964 = vadd.f32 %v1758, %v1900
      %v1965 = vadd.f32 %v1759, %v1905
      %v1966 = vadd.f32 %v1760, %v1908
      %v1967 = vadd.f32 %v1761, %v1913
      %v1968 = vadd.f32 %v1762, %v1916
      %v1969 = vadd.f32 %v1763, %v1921
      %v1970 = vadd.f32 %v1764, %v1924
      %v1971 = vadd.f32 %v1765, %v1929
      %v1972 = vadd.f32 %v1766, %v1932
      %v1973 = vadd.f32 %v1767, %v1937
      %v1974 = vadd.f32 %v1768, %v1940
      %v1976 = vshrl.u32 %v394, 16
      %v1978 = vrot.slane %v1976, 4
      %v1979 = vshll.u32 %v394, 16
      %v1981 = vrot.slane %v1979, 5
      %v1982 = vor.u32 %v1978, %v1981
      %v1983 = vrot.slane %v1982, 4
      %v1985 = vshll.u32 %v395, 16
      %v1987 = vrot.slane %v1985, 5
      %v1988 = vsel %vm403, %v1983, %v1987
      %v1989 = vshrl.u32 %v395, 16
      %v1991 = vrot.slane %v1989, 4
      %v1992 = vor.u32 %v1991, %v1987
      %v1993 = vrot.slane %v1992, 4
      %v1995 = vshll.u32 %v396, 16
      %v1997 = vrot.slane %v1995, 5
      %v1998 = vsel %vm403, %v1993, %v1997
      %s1999 = scalar_lea.vmem %s2, 8
      %v2000 = vld [vmem:[%s1999] sm:$0x3]
      %v2001 = vunpack.c.l.b16 %v1988
      %v2002 = vunpack.c.l.b16 %v1998
      %v2003 = vpack.c.b16 %v2002, %v2001
      %v2005 = vsel %vm838, %v2003, 0
      %v2008 = vsel %vm887, %v2000, 0
      %2010 = vmatprep.subr.bf16.mxu0 0
      %2011 = vmatpush1.bf16.msra.mxu0 %v2008
      %2012 = vmatprep.subr.bf16.mxu0 0
      %2013 = vmatpush1.bf16.msra.mxu0 0
      %2014 = vmatprep.subr.bf16.mxu0 0
      %2015 = vmatpush1.bf16.msra.mxu0 0
      %2016 = vmatprep.subr.bf16.mxu0 0
      %2017 = vmatpush1.bf16.msra.mxu0 0
      %2018 = vmatprep.subr.bf16.mxu0 0
      %2019 = vmatpush1.bf16.msra.mxu0 0
      %2020 = vmatprep.subr.bf16.mxu0 0
      %2021 = vmatpush1.bf16.msra.mxu0 0
      %2022 = vmatprep.subr.bf16.mxu0 0
      %2023 = vmatpush1.bf16.msra.mxu0 0
      %2024 = vmatprep.subr.bf16.mxu0 0
      %2025 = vmatpush1.bf16.msra.mxu0 0
      %2026 = vmatprep.subr.bf16.mxu0 0
      %2027 = vmatpush1.bf16.msra.mxu0 0
      %2028 = vmatprep.subr.bf16.mxu0 0
      %2029 = vmatpush1.bf16.msra.mxu0 0
      %2030 = vmatprep.subr.bf16.mxu0 0
      %2031 = vmatpush1.bf16.msra.mxu0 0
      %2032 = vmatprep.subr.bf16.mxu0 0
      %2033 = vmatpush1.bf16.msra.mxu0 0
      %2034 = vmatprep.subr.bf16.mxu0 0
      %2035 = vmatpush1.bf16.msra.mxu0 0
      %2036 = vmatprep.subr.bf16.mxu0 0
      %2037 = vmatpush1.bf16.msra.mxu0 0
      %2038 = vmatprep.subr.bf16.mxu0 0
      %2039 = vmatpush1.bf16.msra.mxu0 0
      %2040 = vmatprep.subr.bf16.mxu0 0
      %2041 = vmatpush1.bf16.msra.mxu0 0
      %2042 = vmatprep.mubr.bf16.mxu0 0
      %2043 = vmatmul.mubr.bf16.gmra.mrb[0].mxu0 %v843
      %v2044 = vpop.f32.mrb[0].mxu0
      %v2045 = vadd.f32 0.0, %v2044
      %v2046 = vpop.f32.mrb[0].mxu0
      %v2047 = vpop.f32.mrb[0].mxu0
      %v2048 = vadd.f32 0.0, %v2047
      %v2049 = vpop.f32.mrb[0].mxu0
      %2050 = vmatprep.mubr.bf16.mxu0 0
      %2051 = vmatmul.mubr.bf16.gmra.mrb[0].mxu0 %v846
      %v2052 = vpop.f32.mrb[0].mxu0
      %v2053 = vadd.f32 0.0, %v2052
      %v2054 = vpop.f32.mrb[0].mxu0
      %v2055 = vpop.f32.mrb[0].mxu0
      %v2056 = vadd.f32 0.0, %v2055
      %v2057 = vpop.f32.mrb[0].mxu0
      %2058 = vmatprep.mubr.bf16.mxu0 0
      %2059 = vmatmul.mubr.bf16.gmra.mrb[0].mxu0 %v849
      %v2060 = vpop.f32.mrb[0].mxu0
      %v2061 = vadd.f32 0.0, %v2060
      %v2062 = vpop.f32.mrb[0].mxu0
      %v2063 = vpop.f32.mrb[0].mxu0
      %v2064 = vadd.f32 0.0, %v2063
      %v2065 = vpop.f32.mrb[0].mxu0
      %2066 = vmatprep.mubr.bf16.mxu0 0
      %2067 = vmatmul.mubr.bf16.gmra.mrb[0].mxu0 %v852
      %v2068 = vpop.f32.mrb[0].mxu0
      %v2069 = vadd.f32 0.0, %v2068
      %v2070 = vpop.f32.mrb[0].mxu0
      %v2071 = vpop.f32.mrb[0].mxu0
      %v2072 = vadd.f32 0.0, %v2071
      %v2073 = vpop.f32.mrb[0].mxu0
      %2074 = vmatprep.mubr.bf16.mxu0 0
      %2075 = vmatmul.mubr.bf16.gmra.mrb[0].mxu0 %v855
      %v2076 = vpop.f32.mrb[0].mxu0
      %v2077 = vadd.f32 0.0, %v2076
      %v2078 = vpop.f32.mrb[0].mxu0
      %v2079 = vpop.f32.mrb[0].mxu0
      %v2080 = vadd.f32 0.0, %v2079
      %v2081 = vpop.f32.mrb[0].mxu0
      %2082 = vmatprep.mubr.bf16.mxu0 0
      %2083 = vmatmul.mubr.bf16.gmra.mrb[0].mxu0 %v858
      %v2084 = vpop.f32.mrb[0].mxu0
      %v2085 = vadd.f32 0.0, %v2084
      %v2086 = vpop.f32.mrb[0].mxu0
      %v2087 = vpop.f32.mrb[0].mxu0
      %v2088 = vadd.f32 0.0, %v2087
      %v2089 = vpop.f32.mrb[0].mxu0
      %2090 = vmatprep.mubr.bf16.mxu0 0
      %2091 = vmatmul.mubr.bf16.gmra.mrb[0].mxu0 %v861
      %v2092 = vpop.f32.mrb[0].mxu0
      %v2093 = vadd.f32 0.0, %v2092
      %v2094 = vpop.f32.mrb[0].mxu0
      %v2095 = vpop.f32.mrb[0].mxu0
      %v2096 = vadd.f32 0.0, %v2095
      %v2097 = vpop.f32.mrb[0].mxu0
      %2098 = vmatprep.mubr.bf16.mxu0 0
      %2099 = vmatmul.mubr.bf16.gmra.mrb[0].mxu0 %v864
      %v2100 = vpop.f32.mrb[0].mxu0
      %v2101 = vadd.f32 0.0, %v2100
      %v2102 = vpop.f32.mrb[0].mxu0
      %v2103 = vpop.f32.mrb[0].mxu0
      %v2104 = vadd.f32 0.0, %v2103
      %v2105 = vpop.f32.mrb[0].mxu0
      %2106 = vmatprep.mubr.bf16.mxu0 0
      %2107 = vmatmul.mubr.bf16.gmra.mrb[0].mxu0 %v867
      %v2108 = vpop.f32.mrb[0].mxu0
      %v2109 = vadd.f32 0.0, %v2108
      %v2110 = vpop.f32.mrb[0].mxu0
      %v2111 = vpop.f32.mrb[0].mxu0
      %v2112 = vadd.f32 0.0, %v2111
      %v2113 = vpop.f32.mrb[0].mxu0
      %2114 = vmatprep.mubr.bf16.mxu0 0
      %2115 = vmatmul.mubr.bf16.gmra.mrb[0].mxu0 %v870
      %v2116 = vpop.f32.mrb[0].mxu0
      %v2117 = vadd.f32 0.0, %v2116
      %v2118 = vpop.f32.mrb[0].mxu0
      %v2119 = vpop.f32.mrb[0].mxu0
      %v2120 = vadd.f32 0.0, %v2119
      %v2121 = vpop.f32.mrb[0].mxu0
      %2122 = vmatprep.mubr.bf16.mxu0 0
      %2123 = vmatmul.mubr.bf16.gmra.mrb[0].mxu0 %v873
      %v2124 = vpop.f32.mrb[0].mxu0
      %v2125 = vadd.f32 0.0, %v2124
      %v2126 = vpop.f32.mrb[0].mxu0
      %v2127 = vpop.f32.mrb[0].mxu0
      %v2128 = vadd.f32 0.0, %v2127
      %v2129 = vpop.f32.mrb[0].mxu0
      %2130 = vmatprep.mubr.bf16.mxu0 0
      %2131 = vmatmul.mubr.bf16.gmra.mrb[0].mxu0 %v876
      %v2132 = vpop.f32.mrb[0].mxu0
      %v2133 = vadd.f32 0.0, %v2132
      %v2134 = vpop.f32.mrb[0].mxu0
      %v2135 = vpop.f32.mrb[0].mxu0
      %v2136 = vadd.f32 0.0, %v2135
      %v2137 = vpop.f32.mrb[0].mxu0
      %2138 = vmatprep.mubr.bf16.mxu0 0
      %2139 = vmatmul.mubr.bf16.gmra.mrb[0].mxu0 %v879
      %v2140 = vpop.f32.mrb[0].mxu0
      %v2141 = vadd.f32 0.0, %v2140
      %v2142 = vpop.f32.mrb[0].mxu0
      %v2143 = vpop.f32.mrb[0].mxu0
      %v2144 = vadd.f32 0.0, %v2143
      %v2145 = vpop.f32.mrb[0].mxu0
      %2146 = vmatprep.mubr.bf16.mxu0 0
      %2147 = vmatmul.mubr.bf16.gmra.mrb[0].mxu0 %v882
      %v2148 = vpop.f32.mrb[0].mxu0
      %v2149 = vadd.f32 0.0, %v2148
      %v2150 = vpop.f32.mrb[0].mxu0
      %v2151 = vpop.f32.mrb[0].mxu0
      %v2152 = vadd.f32 0.0, %v2151
      %v2153 = vpop.f32.mrb[0].mxu0
      %2154 = vmatprep.mubr.bf16.mxu0 0
      %2155 = vmatmul.mubr.bf16.gmra.mrb[0].mxu0 %v885
      %v2156 = vpop.f32.mrb[0].mxu0
      %v2157 = vadd.f32 0.0, %v2156
      %v2158 = vpop.f32.mrb[0].mxu0
      %v2159 = vpop.f32.mrb[0].mxu0
      %v2160 = vadd.f32 0.0, %v2159
      %v2161 = vpop.f32.mrb[0].mxu0
      %2162 = vmatprep.mubr.bf16.mxu0 0
      %2163 = vmatmul.mubr.bf16.gmra.mrb[0].mxu0 %v2005
      %v2164 = vpop.f32.mrb[0].mxu0
      %v2165 = vadd.f32 0.0, %v2164
      %v2166 = vpop.f32.mrb[0].mxu0
      %v2167 = vpop.f32.mrb[0].mxu0
      %v2168 = vadd.f32 0.0, %v2167
      %v2169 = vpop.f32.mrb[0].mxu0
      %2170 = vdwg.mxu0
      %v2171 = vadd.f32 %v1943, %v2045
      %v2172 = vadd.f32 %v1944, %v2048
      %v2173 = vadd.f32 %v1945, %v2053
      %v2174 = vadd.f32 %v1946, %v2056
      %v2175 = vadd.f32 %v1947, %v2061
      %v2176 = vadd.f32 %v1948, %v2064
      %v2177 = vadd.f32 %v1949, %v2069
      %v2178 = vadd.f32 %v1950, %v2072
      %v2179 = vadd.f32 %v1951, %v2077
      %v2180 = vadd.f32 %v1952, %v2080
      %v2181 = vadd.f32 %v1953, %v2085
      %v2182 = vadd.f32 %v1954, %v2088
      %v2183 = vadd.f32 %v1955, %v2093
      %v2184 = vadd.f32 %v1956, %v2096
      %v2185 = vadd.f32 %v1957, %v2101
      %v2186 = vadd.f32 %v1958, %v2104
      %v2187 = vadd.f32 %v1959, %v2109
      %v2188 = vadd.f32 %v1960, %v2112
      %v2189 = vadd.f32 %v1961, %v2117
      %v2190 = vadd.f32 %v1962, %v2120
      %v2191 = vadd.f32 %v1963, %v2125
      %v2192 = vadd.f32 %v1964, %v2128
      %v2193 = vadd.f32 %v1965, %v2133
      %v2194 = vadd.f32 %v1966, %v2136
      %v2195 = vadd.f32 %v1967, %v2141
      %v2196 = vadd.f32 %v1968, %v2144
      %v2197 = vadd.f32 %v1969, %v2149
      %v2198 = vadd.f32 %v1970, %v2152
      %v2199 = vadd.f32 %v1971, %v2157
      %v2200 = vadd.f32 %v1972, %v2160
      %v2201 = vadd.f32 %v1973, %v2165
      %v2202 = vadd.f32 %v1974, %v2168
      %v2204 = vrot.slane %v394, 5
      %v2205 = vrot.slane %v2204, 4
      %v2206 = vrot.slane %v395, 5
      %v2207 = vsel %vm1362, %v2205, %v2206
      %v2208 = vrot.slane %v2206, 4
      %v2209 = vrot.slane %v396, 5
      %v2210 = vsel %vm1362, %v2208, %v2209
      %s2211 = scalar_lea.vmem %s2, 10
      %v2212 = vld [vmem:[%s2211] sm:$0x3]
      %v2213 = vunpack.c.l.b16 %v2207
      %v2214 = vunpack.c.l.b16 %v2210
      %v2215 = vpack.c.b16 %v2214, %v2213
      %v2217 = vsel %vm838, %v2215, 0
      %v2220 = vsel %vm887, %v2212, 0
      %2222 = vmatprep.subr.bf16.mxu0 0
      %2223 = vmatpush1.bf16.msra.mxu0 %v2220
      %2224 = vmatprep.subr.bf16.mxu0 0
      %2225 = vmatpush1.bf16.msra.mxu0 0
      %2226 = vmatprep.subr.bf16.mxu0 0
      %2227 = vmatpush1.bf16.msra.mxu0 0
      %2228 = vmatprep.subr.bf16.mxu0 0
      %2229 = vmatpush1.bf16.msra.mxu0 0
      %2230 = vmatprep.subr.bf16.mxu0 0
      %2231 = vmatpush1.bf16.msra.mxu0 0
      %2232 = vmatprep.subr.bf16.mxu0 0
      %2233 = vmatpush1.bf16.msra.mxu0 0
      %2234 = vmatprep.subr.bf16.mxu0 0
      %2235 = vmatpush1.bf16.msra.mxu0 0
      %2236 = vmatprep.subr.bf16.mxu0 0
      %2237 = vmatpush1.bf16.msra.mxu0 0
      %2238 = vmatprep.subr.bf16.mxu0 0
      %2239 = vmatpush1.bf16.msra.mxu0 0
      %2240 = vmatprep.subr.bf16.mxu0 0
      %2241 = vmatpush1.bf16.msra.mxu0 0
      %2242 = vmatprep.subr.bf16.mxu0 0
      %2243 = vmatpush1.bf16.msra.mxu0 0
      %2244 = vmatprep.subr.bf16.mxu0 0
      %2245 = vmatpush1.bf16.msra.mxu0 0
      %2246 = vmatprep.subr.bf16.mxu0 0
      %2247 = vmatpush1.bf16.msra.mxu0 0
      %2248 = vmatprep.subr.bf16.mxu0 0
      %2249 = vmatpush1.bf16.msra.mxu0 0
      %2250 = vmatprep.subr.bf16.mxu0 0
      %2251 = vmatpush1.bf16.msra.mxu0 0
      %2252 = vmatprep.subr.bf16.mxu0 0
      %2253 = vmatpush1.bf16.msra.mxu0 0
      %2254 = vmatprep.mubr.bf16.mxu0 0
      %2255 = vmatmul.mubr.bf16.gmra.mrb[0].mxu0 %v1529
      %v2256 = vpop.f32.mrb[0].mxu0
      %v2257 = vadd.f32 0.0, %v2256
      %v2258 = vpop.f32.mrb[0].mxu0
      %v2259 = vpop.f32.mrb[0].mxu0
      %v2260 = vadd.f32 0.0, %v2259
      %v2261 = vpop.f32.mrb[0].mxu0
      %2262 = vmatprep.mubr.bf16.mxu0 0
      %2263 = vmatmul.mubr.bf16.gmra.mrb[0].mxu0 %v1532
      %v2264 = vpop.f32.mrb[0].mxu0
      %v2265 = vadd.f32 0.0, %v2264
      %v2266 = vpop.f32.mrb[0].mxu0
      %v2267 = vpop.f32.mrb[0].mxu0
      %v2268 = vadd.f32 0.0, %v2267
      %v2269 = vpop.f32.mrb[0].mxu0
      %2270 = vmatprep.mubr.bf16.mxu0 0
      %2271 = vmatmul.mubr.bf16.gmra.mrb[0].mxu0 %v1535
      %v2272 = vpop.f32.mrb[0].mxu0
      %v2273 = vadd.f32 0.0, %v2272
      %v2274 = vpop.f32.mrb[0].mxu0
      %v2275 = vpop.f32.mrb[0].mxu0
      %v2276 = vadd.f32 0.0, %v2275
      %v2277 = vpop.f32.mrb[0].mxu0
      %2278 = vmatprep.mubr.bf16.mxu0 0
      %2279 = vmatmul.mubr.bf16.gmra.mrb[0].mxu0 %v1538
      %v2280 = vpop.f32.mrb[0].mxu0
      %v2281 = vadd.f32 0.0, %v2280
      %v2282 = vpop.f32.mrb[0].mxu0
      %v2283 = vpop.f32.mrb[0].mxu0
      %v2284 = vadd.f32 0.0, %v2283
      %v2285 = vpop.f32.mrb[0].mxu0
      %2286 = vmatprep.mubr.bf16.mxu0 0
      %2287 = vmatmul.mubr.bf16.gmra.mrb[0].mxu0 %v1541
      %v2288 = vpop.f32.mrb[0].mxu0
      %v2289 = vadd.f32 0.0, %v2288
      %v2290 = vpop.f32.mrb[0].mxu0
      %v2291 = vpop.f32.mrb[0].mxu0
      %v2292 = vadd.f32 0.0, %v2291
      %v2293 = vpop.f32.mrb[0].mxu0
      %2294 = vmatprep.mubr.bf16.mxu0 0
      %2295 = vmatmul.mubr.bf16.gmra.mrb[0].mxu0 %v1544
      %v2296 = vpop.f32.mrb[0].mxu0
      %v2297 = vadd.f32 0.0, %v2296
      %v2298 = vpop.f32.mrb[0].mxu0
      %v2299 = vpop.f32.mrb[0].mxu0
      %v2300 = vadd.f32 0.0, %v2299
      %v2301 = vpop.f32.mrb[0].mxu0
      %2302 = vmatprep.mubr.bf16.mxu0 0
      %2303 = vmatmul.mubr.bf16.gmra.mrb[0].mxu0 %v1547
      %v2304 = vpop.f32.mrb[0].mxu0
      %v2305 = vadd.f32 0.0, %v2304
      %v2306 = vpop.f32.mrb[0].mxu0
      %v2307 = vpop.f32.mrb[0].mxu0
      %v2308 = vadd.f32 0.0, %v2307
      %v2309 = vpop.f32.mrb[0].mxu0
      %2310 = vmatprep.mubr.bf16.mxu0 0
      %2311 = vmatmul.mubr.bf16.gmra.mrb[0].mxu0 %v1550
      %v2312 = vpop.f32.mrb[0].mxu0
      %v2313 = vadd.f32 0.0, %v2312
      %v2314 = vpop.f32.mrb[0].mxu0
      %v2315 = vpop.f32.mrb[0].mxu0
      %v2316 = vadd.f32 0.0, %v2315
      %v2317 = vpop.f32.mrb[0].mxu0
      %2318 = vmatprep.mubr.bf16.mxu0 0
      %2319 = vmatmul.mubr.bf16.gmra.mrb[0].mxu0 %v1553
      %v2320 = vpop.f32.mrb[0].mxu0
      %v2321 = vadd.f32 0.0, %v2320
      %v2322 = vpop.f32.mrb[0].mxu0
      %v2323 = vpop.f32.mrb[0].mxu0
      %v2324 = vadd.f32 0.0, %v2323
      %v2325 = vpop.f32.mrb[0].mxu0
      %2326 = vmatprep.mubr.bf16.mxu0 0
      %2327 = vmatmul.mubr.bf16.gmra.mrb[0].mxu0 %v1556
      %v2328 = vpop.f32.mrb[0].mxu0
      %v2329 = vadd.f32 0.0, %v2328
      %v2330 = vpop.f32.mrb[0].mxu0
      %v2331 = vpop.f32.mrb[0].mxu0
      %v2332 = vadd.f32 0.0, %v2331
      %v2333 = vpop.f32.mrb[0].mxu0
      %2334 = vmatprep.mubr.bf16.mxu0 0
      %2335 = vmatmul.mubr.bf16.gmra.mrb[0].mxu0 %v1559
      %v2336 = vpop.f32.mrb[0].mxu0
      %v2337 = vadd.f32 0.0, %v2336
      %v2338 = vpop.f32.mrb[0].mxu0
      %v2339 = vpop.f32.mrb[0].mxu0
      %v2340 = vadd.f32 0.0, %v2339
      %v2341 = vpop.f32.mrb[0].mxu0
      %2342 = vmatprep.mubr.bf16.mxu0 0
      %2343 = vmatmul.mubr.bf16.gmra.mrb[0].mxu0 %v1562
      %v2344 = vpop.f32.mrb[0].mxu0
      %v2345 = vadd.f32 0.0, %v2344
      %v2346 = vpop.f32.mrb[0].mxu0
      %v2347 = vpop.f32.mrb[0].mxu0
      %v2348 = vadd.f32 0.0, %v2347
      %v2349 = vpop.f32.mrb[0].mxu0
      %2350 = vmatprep.mubr.bf16.mxu0 0
      %2351 = vmatmul.mubr.bf16.gmra.mrb[0].mxu0 %v1565
      %v2352 = vpop.f32.mrb[0].mxu0
      %v2353 = vadd.f32 0.0, %v2352
      %v2354 = vpop.f32.mrb[0].mxu0
      %v2355 = vpop.f32.mrb[0].mxu0
      %v2356 = vadd.f32 0.0, %v2355
      %v2357 = vpop.f32.mrb[0].mxu0
      %2358 = vmatprep.mubr.bf16.mxu0 0
      %2359 = vmatmul.mubr.bf16.gmra.mrb[0].mxu0 %v1568
      %v2360 = vpop.f32.mrb[0].mxu0
      %v2361 = vadd.f32 0.0, %v2360
      %v2362 = vpop.f32.mrb[0].mxu0
      %v2363 = vpop.f32.mrb[0].mxu0
      %v2364 = vadd.f32 0.0, %v2363
      %v2365 = vpop.f32.mrb[0].mxu0
      %2366 = vmatprep.mubr.bf16.mxu0 0
      %2367 = vmatmul.mubr.bf16.gmra.mrb[0].mxu0 %v1571
      %v2368 = vpop.f32.mrb[0].mxu0
      %v2369 = vadd.f32 0.0, %v2368
      %v2370 = vpop.f32.mrb[0].mxu0
      %v2371 = vpop.f32.mrb[0].mxu0
      %v2372 = vadd.f32 0.0, %v2371
      %v2373 = vpop.f32.mrb[0].mxu0
      %2374 = vmatprep.mubr.bf16.mxu0 0
      %2375 = vmatmul.mubr.bf16.gmra.mrb[0].mxu0 %v2217
      %v2376 = vpop.f32.mrb[0].mxu0
      %v2377 = vadd.f32 0.0, %v2376
      %v2378 = vpop.f32.mrb[0].mxu0
      %v2379 = vpop.f32.mrb[0].mxu0
      %v2380 = vadd.f32 0.0, %v2379
      %v2381 = vpop.f32.mrb[0].mxu0
      %2382 = vdwg.mxu0
      %v2383 = vadd.f32 %v2171, %v2257
      %v2384 = vadd.f32 %v2172, %v2260
      %v2385 = vadd.f32 %v2173, %v2265
      %v2386 = vadd.f32 %v2174, %v2268
      %v2387 = vadd.f32 %v2175, %v2273
      %v2388 = vadd.f32 %v2176, %v2276
      %v2389 = vadd.f32 %v2177, %v2281
      %v2390 = vadd.f32 %v2178, %v2284
      %v2391 = vadd.f32 %v2179, %v2289
      %v2392 = vadd.f32 %v2180, %v2292
      %v2393 = vadd.f32 %v2181, %v2297
      %v2394 = vadd.f32 %v2182, %v2300
      %v2395 = vadd.f32 %v2183, %v2305
      %v2396 = vadd.f32 %v2184, %v2308
      %v2397 = vadd.f32 %v2185, %v2313
      %v2398 = vadd.f32 %v2186, %v2316
      %v2399 = vadd.f32 %v2187, %v2321
      %v2400 = vadd.f32 %v2188, %v2324
      %v2401 = vadd.f32 %v2189, %v2329
      %v2402 = vadd.f32 %v2190, %v2332
      %v2403 = vadd.f32 %v2191, %v2337
      %v2404 = vadd.f32 %v2192, %v2340
      %v2405 = vadd.f32 %v2193, %v2345
      %v2406 = vadd.f32 %v2194, %v2348
      %v2407 = vadd.f32 %v2195, %v2353
      %v2408 = vadd.f32 %v2196, %v2356
      %v2409 = vadd.f32 %v2197, %v2361
      %v2410 = vadd.f32 %v2198, %v2364
      %v2411 = vadd.f32 %v2199, %v2369
      %v2412 = vadd.f32 %v2200, %v2372
      %v2413 = vadd.f32 %v2201, %v2377
      %v2414 = vadd.f32 %v2202, %v2380
      %s2415 = scalar_lea.vmem %s2, 12
      %v2416 = vld [vmem:[%s2415] sm:$0x3]
      %v2419 = vunpack.c.l.b16 %v397
      %v2420 = vunpack.c.l.b16 %v398
      %v2421 = vpack.c.b16 %v2420, %v2419
      %v2423 = vsel %vm838, %v2421, 0
      %v2426 = vsel %vm887, %v2416, 0
      %2428 = vmatprep.subr.bf16.mxu0 0
      %2429 = vmatpush1.bf16.msra.mxu0 %v2426
      %2430 = vmatprep.subr.bf16.mxu0 0
      %2431 = vmatpush1.bf16.msra.mxu0 0
      %2432 = vmatprep.subr.bf16.mxu0 0
      %2433 = vmatpush1.bf16.msra.mxu0 0
      %2434 = vmatprep.subr.bf16.mxu0 0
      %2435 = vmatpush1.bf16.msra.mxu0 0
      %2436 = vmatprep.subr.bf16.mxu0 0
      %2437 = vmatpush1.bf16.msra.mxu0 0
      %2438 = vmatprep.subr.bf16.mxu0 0
      %2439 = vmatpush1.bf16.msra.mxu0 0
      %2440 = vmatprep.subr.bf16.mxu0 0
      %2441 = vmatpush1.bf16.msra.mxu0 0
      %2442 = vmatprep.subr.bf16.mxu0 0
      %2443 = vmatpush1.bf16.msra.mxu0 0
      %2444 = vmatprep.subr.bf16.mxu0 0
      %2445 = vmatpush1.bf16.msra.mxu0 0
      %2446 = vmatprep.subr.bf16.mxu0 0
      %2447 = vmatpush1.bf16.msra.mxu0 0
      %2448 = vmatprep.subr.bf16.mxu0 0
      %2449 = vmatpush1.bf16.msra.mxu0 0
      %2450 = vmatprep.subr.bf16.mxu0 0
      %2451 = vmatpush1.bf16.msra.mxu0 0
      %2452 = vmatprep.subr.bf16.mxu0 0
      %2453 = vmatpush1.bf16.msra.mxu0 0
      %2454 = vmatprep.subr.bf16.mxu0 0
      %2455 = vmatpush1.bf16.msra.mxu0 0
      %2456 = vmatprep.subr.bf16.mxu0 0
      %2457 = vmatpush1.bf16.msra.mxu0 0
      %2458 = vmatprep.subr.bf16.mxu0 0
      %2459 = vmatpush1.bf16.msra.mxu0 0
      %2460 = vmatprep.mubr.bf16.mxu0 0
      %2461 = vmatmul.mubr.bf16.gmra.mrb[0].mxu0 %v1139
      %v2462 = vpop.f32.mrb[0].mxu0
      %v2463 = vadd.f32 0.0, %v2462
      %v2464 = vpop.f32.mrb[0].mxu0
      %v2465 = vpop.f32.mrb[0].mxu0
      %v2466 = vadd.f32 0.0, %v2465
      %v2467 = vpop.f32.mrb[0].mxu0
      %2468 = vmatprep.mubr.bf16.mxu0 0
      %2469 = vmatmul.mubr.bf16.gmra.mrb[0].mxu0 %v1142
      %v2470 = vpop.f32.mrb[0].mxu0
      %v2471 = vadd.f32 0.0, %v2470
      %v2472 = vpop.f32.mrb[0].mxu0
      %v2473 = vpop.f32.mrb[0].mxu0
      %v2474 = vadd.f32 0.0, %v2473
      %v2475 = vpop.f32.mrb[0].mxu0
      %2476 = vmatprep.mubr.bf16.mxu0 0
      %2477 = vmatmul.mubr.bf16.gmra.mrb[0].mxu0 %v1145
      %v2478 = vpop.f32.mrb[0].mxu0
      %v2479 = vadd.f32 0.0, %v2478
      %v2480 = vpop.f32.mrb[0].mxu0
      %v2481 = vpop.f32.mrb[0].mxu0
      %v2482 = vadd.f32 0.0, %v2481
      %v2483 = vpop.f32.mrb[0].mxu0
      %2484 = vmatprep.mubr.bf16.mxu0 0
      %2485 = vmatmul.mubr.bf16.gmra.mrb[0].mxu0 %v1148
      %v2486 = vpop.f32.mrb[0].mxu0
      %v2487 = vadd.f32 0.0, %v2486
      %v2488 = vpop.f32.mrb[0].mxu0
      %v2489 = vpop.f32.mrb[0].mxu0
      %v2490 = vadd.f32 0.0, %v2489
      %v2491 = vpop.f32.mrb[0].mxu0
      %2492 = vmatprep.mubr.bf16.mxu0 0
      %2493 = vmatmul.mubr.bf16.gmra.mrb[0].mxu0 %v1151
      %v2494 = vpop.f32.mrb[0].mxu0
      %v2495 = vadd.f32 0.0, %v2494
      %v2496 = vpop.f32.mrb[0].mxu0
      %v2497 = vpop.f32.mrb[0].mxu0
      %v2498 = vadd.f32 0.0, %v2497
      %v2499 = vpop.f32.mrb[0].mxu0
      %2500 = vmatprep.mubr.bf16.mxu0 0
      %2501 = vmatmul.mubr.bf16.gmra.mrb[0].mxu0 %v1154
      %v2502 = vpop.f32.mrb[0].mxu0
      %v2503 = vadd.f32 0.0, %v2502
      %v2504 = vpop.f32.mrb[0].mxu0
      %v2505 = vpop.f32.mrb[0].mxu0
      %v2506 = vadd.f32 0.0, %v2505
      %v2507 = vpop.f32.mrb[0].mxu0
      %2508 = vmatprep.mubr.bf16.mxu0 0
      %2509 = vmatmul.mubr.bf16.gmra.mrb[0].mxu0 %v1157
      %v2510 = vpop.f32.mrb[0].mxu0
      %v2511 = vadd.f32 0.0, %v2510
      %v2512 = vpop.f32.mrb[0].mxu0
      %v2513 = vpop.f32.mrb[0].mxu0
      %v2514 = vadd.f32 0.0, %v2513
      %v2515 = vpop.f32.mrb[0].mxu0
      %2516 = vmatprep.mubr.bf16.mxu0 0
      %2517 = vmatmul.mubr.bf16.gmra.mrb[0].mxu0 %v1160
      %v2518 = vpop.f32.mrb[0].mxu0
      %v2519 = vadd.f32 0.0, %v2518
      %v2520 = vpop.f32.mrb[0].mxu0
      %v2521 = vpop.f32.mrb[0].mxu0
      %v2522 = vadd.f32 0.0, %v2521
      %v2523 = vpop.f32.mrb[0].mxu0
      %2524 = vmatprep.mubr.bf16.mxu0 0
      %2525 = vmatmul.mubr.bf16.gmra.mrb[0].mxu0 %v1163
      %v2526 = vpop.f32.mrb[0].mxu0
      %v2527 = vadd.f32 0.0, %v2526
      %v2528 = vpop.f32.mrb[0].mxu0
      %v2529 = vpop.f32.mrb[0].mxu0
      %v2530 = vadd.f32 0.0, %v2529
      %v2531 = vpop.f32.mrb[0].mxu0
      %2532 = vmatprep.mubr.bf16.mxu0 0
      %2533 = vmatmul.mubr.bf16.gmra.mrb[0].mxu0 %v1166
      %v2534 = vpop.f32.mrb[0].mxu0
      %v2535 = vadd.f32 0.0, %v2534
      %v2536 = vpop.f32.mrb[0].mxu0
      %v2537 = vpop.f32.mrb[0].mxu0
      %v2538 = vadd.f32 0.0, %v2537
      %v2539 = vpop.f32.mrb[0].mxu0
      %2540 = vmatprep.mubr.bf16.mxu0 0
      %2541 = vmatmul.mubr.bf16.gmra.mrb[0].mxu0 %v1169
      %v2542 = vpop.f32.mrb[0].mxu0
      %v2543 = vadd.f32 0.0, %v2542
      %v2544 = vpop.f32.mrb[0].mxu0
      %v2545 = vpop.f32.mrb[0].mxu0
      %v2546 = vadd.f32 0.0, %v2545
      %v2547 = vpop.f32.mrb[0].mxu0
      %2548 = vmatprep.mubr.bf16.mxu0 0
      %2549 = vmatmul.mubr.bf16.gmra.mrb[0].mxu0 %v1172
      %v2550 = vpop.f32.mrb[0].mxu0
      %v2551 = vadd.f32 0.0, %v2550
      %v2552 = vpop.f32.mrb[0].mxu0
      %v2553 = vpop.f32.mrb[0].mxu0
      %v2554 = vadd.f32 0.0, %v2553
      %v2555 = vpop.f32.mrb[0].mxu0
      %2556 = vmatprep.mubr.bf16.mxu0 0
      %2557 = vmatmul.mubr.bf16.gmra.mrb[0].mxu0 %v1175
      %v2558 = vpop.f32.mrb[0].mxu0
      %v2559 = vadd.f32 0.0, %v2558
      %v2560 = vpop.f32.mrb[0].mxu0
      %v2561 = vpop.f32.mrb[0].mxu0
      %v2562 = vadd.f32 0.0, %v2561
      %v2563 = vpop.f32.mrb[0].mxu0
      %2564 = vmatprep.mubr.bf16.mxu0 0
      %2565 = vmatmul.mubr.bf16.gmra.mrb[0].mxu0 %v1178
      %v2566 = vpop.f32.mrb[0].mxu0
      %v2567 = vadd.f32 0.0, %v2566
      %v2568 = vpop.f32.mrb[0].mxu0
      %v2569 = vpop.f32.mrb[0].mxu0
      %v2570 = vadd.f32 0.0, %v2569
      %v2571 = vpop.f32.mrb[0].mxu0
      %2572 = vmatprep.mubr.bf16.mxu0 0
      %2573 = vmatmul.mubr.bf16.gmra.mrb[0].mxu0 %v1777
      %v2574 = vpop.f32.mrb[0].mxu0
      %v2575 = vadd.f32 0.0, %v2574
      %v2576 = vpop.f32.mrb[0].mxu0
      %v2577 = vpop.f32.mrb[0].mxu0
      %v2578 = vadd.f32 0.0, %v2577
      %v2579 = vpop.f32.mrb[0].mxu0
      %2580 = vmatprep.mubr.bf16.mxu0 0
      %2581 = vmatmul.mubr.bf16.gmra.mrb[0].mxu0 %v2423
      %v2582 = vpop.f32.mrb[0].mxu0
      %v2583 = vadd.f32 0.0, %v2582
      %v2584 = vpop.f32.mrb[0].mxu0
      %v2585 = vpop.f32.mrb[0].mxu0
      %v2586 = vadd.f32 0.0, %v2585
      %v2587 = vpop.f32.mrb[0].mxu0
      %2588 = vdwg.mxu0
      %v2589 = vadd.f32 %v2383, %v2463
      %v2590 = vadd.f32 %v2384, %v2466
      %v2591 = vadd.f32 %v2385, %v2471
      %v2592 = vadd.f32 %v2386, %v2474
      %v2593 = vadd.f32 %v2387, %v2479
      %v2594 = vadd.f32 %v2388, %v2482
      %v2595 = vadd.f32 %v2389, %v2487
      %v2596 = vadd.f32 %v2390, %v2490
      %v2597 = vadd.f32 %v2391, %v2495
      %v2598 = vadd.f32 %v2392, %v2498
      %v2599 = vadd.f32 %v2393, %v2503
      %v2600 = vadd.f32 %v2394, %v2506
      %v2601 = vadd.f32 %v2395, %v2511
      %v2602 = vadd.f32 %v2396, %v2514
      %v2603 = vadd.f32 %v2397, %v2519
      %v2604 = vadd.f32 %v2398, %v2522
      %v2605 = vadd.f32 %v2399, %v2527
      %v2606 = vadd.f32 %v2400, %v2530
      %v2607 = vadd.f32 %v2401, %v2535
      %v2608 = vadd.f32 %v2402, %v2538
      %v2609 = vadd.f32 %v2403, %v2543
      %v2610 = vadd.f32 %v2404, %v2546
      %v2611 = vadd.f32 %v2405, %v2551
      %v2612 = vadd.f32 %v2406, %v2554
      %v2613 = vadd.f32 %v2407, %v2559
      %v2614 = vadd.f32 %v2408, %v2562
      %v2615 = vadd.f32 %v2409, %v2567
      %v2616 = vadd.f32 %v2410, %v2570
      %v2617 = vadd.f32 %v2411, %v2575
      %v2618 = vadd.f32 %v2412, %v2578
      %v2619 = vadd.f32 %v2413, %v2583
      %v2620 = vadd.f32 %v2414, %v2586
      %v2622 = vshrl.u32 %v397, 16
      %v2624 = vrot.slane %v2622, 4
      %v2625 = vshll.u32 %v397, 16
      %v2627 = vrot.slane %v2625, 5
      %v2628 = vor.u32 %v2624, %v2627
      %v2629 = vrot.slane %v2628, 4
      %v2631 = vshll.u32 %v398, 16
      %v2633 = vrot.slane %v2631, 5
      %v2634 = vsel %vm403, %v2629, %v2633
      %v2635 = vshrl.u32 %v398, 16
      %v2637 = vrot.slane %v2635, 4
      %v2638 = vor.u32 %v2637, %v2633
      %v2639 = vrot.slane %v2638, 4
      %v2641 = vshll.u32 %v399, 16
      %v2643 = vrot.slane %v2641, 5
      %v2644 = vsel %vm403, %v2639, %v2643
      %s2645 = scalar_lea.vmem %s2, 14
      %v2646 = vld [vmem:[%s2645] sm:$0x3]
      %v2647 = vunpack.c.l.b16 %v2634
      %v2648 = vunpack.c.l.b16 %v2644
      %v2649 = vpack.c.b16 %v2648, %v2647
      %v2651 = vsel %vm838, %v2649, 0
      %v2654 = vsel %vm887, %v2646, 0
      %2656 = vmatprep.subr.bf16.mxu0 0
      %2657 = vmatpush1.bf16.msra.mxu0 %v2654
      %2658 = vmatprep.subr.bf16.mxu0 0
      %2659 = vmatpush1.bf16.msra.mxu0 0
      %2660 = vmatprep.subr.bf16.mxu0 0
      %2661 = vmatpush1.bf16.msra.mxu0 0
      %2662 = vmatprep.subr.bf16.mxu0 0
      %2663 = vmatpush1.bf16.msra.mxu0 0
      %2664 = vmatprep.subr.bf16.mxu0 0
      %2665 = vmatpush1.bf16.msra.mxu0 0
      %2666 = vmatprep.subr.bf16.mxu0 0
      %2667 = vmatpush1.bf16.msra.mxu0 0
      %2668 = vmatprep.subr.bf16.mxu0 0
      %2669 = vmatpush1.bf16.msra.mxu0 0
      %2670 = vmatprep.subr.bf16.mxu0 0
      %2671 = vmatpush1.bf16.msra.mxu0 0
      %2672 = vmatprep.subr.bf16.mxu0 0
      %2673 = vmatpush1.bf16.msra.mxu0 0
      %2674 = vmatprep.subr.bf16.mxu0 0
      %2675 = vmatpush1.bf16.msra.mxu0 0
      %2676 = vmatprep.subr.bf16.mxu0 0
      %2677 = vmatpush1.bf16.msra.mxu0 0
      %2678 = vmatprep.subr.bf16.mxu0 0
      %2679 = vmatpush1.bf16.msra.mxu0 0
      %2680 = vmatprep.subr.bf16.mxu0 0
      %2681 = vmatpush1.bf16.msra.mxu0 0
      %2682 = vmatprep.subr.bf16.mxu0 0
      %2683 = vmatpush1.bf16.msra.mxu0 0
      %2684 = vmatprep.subr.bf16.mxu0 0
      %2685 = vmatpush1.bf16.msra.mxu0 0
      %2686 = vmatprep.subr.bf16.mxu0 0
      %2687 = vmatpush1.bf16.msra.mxu0 0
      %2688 = vmatprep.mubr.bf16.mxu0 0
      %2689 = vmatmul.mubr.bf16.gmra.mrb[0].mxu0 %v846
      %v2690 = vpop.f32.mrb[0].mxu0
      %v2691 = vadd.f32 0.0, %v2690
      %v2692 = vpop.f32.mrb[0].mxu0
      %v2693 = vpop.f32.mrb[0].mxu0
      %v2694 = vadd.f32 0.0, %v2693
      %v2695 = vpop.f32.mrb[0].mxu0
      %2696 = vmatprep.mubr.bf16.mxu0 0
      %2697 = vmatmul.mubr.bf16.gmra.mrb[0].mxu0 %v849
      %v2698 = vpop.f32.mrb[0].mxu0
      %v2699 = vadd.f32 0.0, %v2698
      %v2700 = vpop.f32.mrb[0].mxu0
      %v2701 = vpop.f32.mrb[0].mxu0
      %v2702 = vadd.f32 0.0, %v2701
      %v2703 = vpop.f32.mrb[0].mxu0
      %2704 = vmatprep.mubr.bf16.mxu0 0
      %2705 = vmatmul.mubr.bf16.gmra.mrb[0].mxu0 %v852
      %v2706 = vpop.f32.mrb[0].mxu0
      %v2707 = vadd.f32 0.0, %v2706
      %v2708 = vpop.f32.mrb[0].mxu0
      %v2709 = vpop.f32.mrb[0].mxu0
      %v2710 = vadd.f32 0.0, %v2709
      %v2711 = vpop.f32.mrb[0].mxu0
      %2712 = vmatprep.mubr.bf16.mxu0 0
      %2713 = vmatmul.mubr.bf16.gmra.mrb[0].mxu0 %v855
      %v2714 = vpop.f32.mrb[0].mxu0
      %v2715 = vadd.f32 0.0, %v2714
      %v2716 = vpop.f32.mrb[0].mxu0
      %v2717 = vpop.f32.mrb[0].mxu0
      %v2718 = vadd.f32 0.0, %v2717
      %v2719 = vpop.f32.mrb[0].mxu0
      %2720 = vmatprep.mubr.bf16.mxu0 0
      %2721 = vmatmul.mubr.bf16.gmra.mrb[0].mxu0 %v858
      %v2722 = vpop.f32.mrb[0].mxu0
      %v2723 = vadd.f32 0.0, %v2722
      %v2724 = vpop.f32.mrb[0].mxu0
      %v2725 = vpop.f32.mrb[0].mxu0
      %v2726 = vadd.f32 0.0, %v2725
      %v2727 = vpop.f32.mrb[0].mxu0
      %2728 = vmatprep.mubr.bf16.mxu0 0
      %2729 = vmatmul.mubr.bf16.gmra.mrb[0].mxu0 %v861
      %v2730 = vpop.f32.mrb[0].mxu0
      %v2731 = vadd.f32 0.0, %v2730
      %v2732 = vpop.f32.mrb[0].mxu0
      %v2733 = vpop.f32.mrb[0].mxu0
      %v2734 = vadd.f32 0.0, %v2733
      %v2735 = vpop.f32.mrb[0].mxu0
      %2736 = vmatprep.mubr.bf16.mxu0 0
      %2737 = vmatmul.mubr.bf16.gmra.mrb[0].mxu0 %v864
      %v2738 = vpop.f32.mrb[0].mxu0
      %v2739 = vadd.f32 0.0, %v2738
      %v2740 = vpop.f32.mrb[0].mxu0
      %v2741 = vpop.f32.mrb[0].mxu0
      %v2742 = vadd.f32 0.0, %v2741
      %v2743 = vpop.f32.mrb[0].mxu0
      %2744 = vmatprep.mubr.bf16.mxu0 0
      %2745 = vmatmul.mubr.bf16.gmra.mrb[0].mxu0 %v867
      %v2746 = vpop.f32.mrb[0].mxu0
      %v2747 = vadd.f32 0.0, %v2746
      %v2748 = vpop.f32.mrb[0].mxu0
      %v2749 = vpop.f32.mrb[0].mxu0
      %v2750 = vadd.f32 0.0, %v2749
      %v2751 = vpop.f32.mrb[0].mxu0
      %2752 = vmatprep.mubr.bf16.mxu0 0
      %2753 = vmatmul.mubr.bf16.gmra.mrb[0].mxu0 %v870
      %v2754 = vpop.f32.mrb[0].mxu0
      %v2755 = vadd.f32 0.0, %v2754
      %v2756 = vpop.f32.mrb[0].mxu0
      %v2757 = vpop.f32.mrb[0].mxu0
      %v2758 = vadd.f32 0.0, %v2757
      %v2759 = vpop.f32.mrb[0].mxu0
      %2760 = vmatprep.mubr.bf16.mxu0 0
      %2761 = vmatmul.mubr.bf16.gmra.mrb[0].mxu0 %v873
      %v2762 = vpop.f32.mrb[0].mxu0
      %v2763 = vadd.f32 0.0, %v2762
      %v2764 = vpop.f32.mrb[0].mxu0
      %v2765 = vpop.f32.mrb[0].mxu0
      %v2766 = vadd.f32 0.0, %v2765
      %v2767 = vpop.f32.mrb[0].mxu0
      %2768 = vmatprep.mubr.bf16.mxu0 0
      %2769 = vmatmul.mubr.bf16.gmra.mrb[0].mxu0 %v876
      %v2770 = vpop.f32.mrb[0].mxu0
      %v2771 = vadd.f32 0.0, %v2770
      %v2772 = vpop.f32.mrb[0].mxu0
      %v2773 = vpop.f32.mrb[0].mxu0
      %v2774 = vadd.f32 0.0, %v2773
      %v2775 = vpop.f32.mrb[0].mxu0
      %2776 = vmatprep.mubr.bf16.mxu0 0
      %2777 = vmatmul.mubr.bf16.gmra.mrb[0].mxu0 %v879
      %v2778 = vpop.f32.mrb[0].mxu0
      %v2779 = vadd.f32 0.0, %v2778
      %v2780 = vpop.f32.mrb[0].mxu0
      %v2781 = vpop.f32.mrb[0].mxu0
      %v2782 = vadd.f32 0.0, %v2781
      %v2783 = vpop.f32.mrb[0].mxu0
      %2784 = vmatprep.mubr.bf16.mxu0 0
      %2785 = vmatmul.mubr.bf16.gmra.mrb[0].mxu0 %v882
      %v2786 = vpop.f32.mrb[0].mxu0
      %v2787 = vadd.f32 0.0, %v2786
      %v2788 = vpop.f32.mrb[0].mxu0
      %v2789 = vpop.f32.mrb[0].mxu0
      %v2790 = vadd.f32 0.0, %v2789
      %v2791 = vpop.f32.mrb[0].mxu0
      %2792 = vmatprep.mubr.bf16.mxu0 0
      %2793 = vmatmul.mubr.bf16.gmra.mrb[0].mxu0 %v885
      %v2794 = vpop.f32.mrb[0].mxu0
      %v2795 = vadd.f32 0.0, %v2794
      %v2796 = vpop.f32.mrb[0].mxu0
      %v2797 = vpop.f32.mrb[0].mxu0
      %v2798 = vadd.f32 0.0, %v2797
      %v2799 = vpop.f32.mrb[0].mxu0
      %2800 = vmatprep.mubr.bf16.mxu0 0
      %2801 = vmatmul.mubr.bf16.gmra.mrb[0].mxu0 %v2005
      %v2802 = vpop.f32.mrb[0].mxu0
      %v2803 = vadd.f32 0.0, %v2802
      %v2804 = vpop.f32.mrb[0].mxu0
      %v2805 = vpop.f32.mrb[0].mxu0
      %v2806 = vadd.f32 0.0, %v2805
      %v2807 = vpop.f32.mrb[0].mxu0
      %2808 = vmatprep.mubr.bf16.mxu0 0
      %2809 = vmatmul.mubr.bf16.gmra.mrb[0].mxu0 %v2651
      %v2810 = vpop.f32.mrb[0].mxu0
      %v2811 = vadd.f32 0.0, %v2810
      %v2812 = vpop.f32.mrb[0].mxu0
      %v2813 = vpop.f32.mrb[0].mxu0
      %v2814 = vadd.f32 0.0, %v2813
      %v2815 = vpop.f32.mrb[0].mxu0
      %2816 = vdwg.mxu0
      %v2817 = vadd.f32 %v2589, %v2691
      %v2818 = vadd.f32 %v2590, %v2694
      %v2819 = vadd.f32 %v2591, %v2699
      %v2820 = vadd.f32 %v2592, %v2702
      %v2821 = vadd.f32 %v2593, %v2707
      %v2822 = vadd.f32 %v2594, %v2710
      %v2823 = vadd.f32 %v2595, %v2715
      %v2824 = vadd.f32 %v2596, %v2718
      %v2825 = vadd.f32 %v2597, %v2723
      %v2826 = vadd.f32 %v2598, %v2726
      %v2827 = vadd.f32 %v2599, %v2731
      %v2828 = vadd.f32 %v2600, %v2734
      %v2829 = vadd.f32 %v2601, %v2739
      %v2830 = vadd.f32 %v2602, %v2742
      %v2831 = vadd.f32 %v2603, %v2747
      %v2832 = vadd.f32 %v2604, %v2750
      %v2833 = vadd.f32 %v2605, %v2755
      %v2834 = vadd.f32 %v2606, %v2758
      %v2835 = vadd.f32 %v2607, %v2763
      %v2836 = vadd.f32 %v2608, %v2766
      %v2837 = vadd.f32 %v2609, %v2771
      %v2838 = vadd.f32 %v2610, %v2774
      %v2839 = vadd.f32 %v2611, %v2779
      %v2840 = vadd.f32 %v2612, %v2782
      %v2841 = vadd.f32 %v2613, %v2787
      %v2842 = vadd.f32 %v2614, %v2790
      %v2843 = vadd.f32 %v2615, %v2795
      %v2844 = vadd.f32 %v2616, %v2798
      %v2845 = vadd.f32 %v2617, %v2803
      %v2846 = vadd.f32 %v2618, %v2806
      %v2847 = vadd.f32 %v2619, %v2811
      %v2848 = vadd.f32 %v2620, %v2814
      %v2850 = vrot.slane %v397, 5
      %v2851 = vrot.slane %v2850, 4
      %v2852 = vrot.slane %v398, 5
      %v2853 = vsel %vm1362, %v2851, %v2852
      %v2854 = vrot.slane %v2852, 4
      %v2855 = vrot.slane %v399, 5
      %v2856 = vsel %vm1362, %v2854, %v2855
      %s2857 = scalar_lea.vmem %s2, 16
      %v2858 = vld [vmem:[%s2857] sm:$0x3]
      %v2859 = vunpack.c.l.b16 %v2853
      %v2860 = vunpack.c.l.b16 %v2856
      %v2861 = vpack.c.b16 %v2860, %v2859
      %v2863 = vsel %vm838, %v2861, 0
      %v2866 = vsel %vm887, %v2858, 0
      %2868 = vmatprep.subr.bf16.mxu0 0
      %2869 = vmatpush1.bf16.msra.mxu0 %v2866
      %2870 = vmatprep.subr.bf16.mxu0 0
      %2871 = vmatpush1.bf16.msra.mxu0 0
      %2872 = vmatprep.subr.bf16.mxu0 0
      %2873 = vmatpush1.bf16.msra.mxu0 0
      %2874 = vmatprep.subr.bf16.mxu0 0
      %2875 = vmatpush1.bf16.msra.mxu0 0
      %2876 = vmatprep.subr.bf16.mxu0 0
      %2877 = vmatpush1.bf16.msra.mxu0 0
      %2878 = vmatprep.subr.bf16.mxu0 0
      %2879 = vmatpush1.bf16.msra.mxu0 0
      %2880 = vmatprep.subr.bf16.mxu0 0
      %2881 = vmatpush1.bf16.msra.mxu0 0
      %2882 = vmatprep.subr.bf16.mxu0 0
      %2883 = vmatpush1.bf16.msra.mxu0 0
      %2884 = vmatprep.subr.bf16.mxu0 0
      %2885 = vmatpush1.bf16.msra.mxu0 0
      %2886 = vmatprep.subr.bf16.mxu0 0
      %2887 = vmatpush1.bf16.msra.mxu0 0
      %2888 = vmatprep.subr.bf16.mxu0 0
      %2889 = vmatpush1.bf16.msra.mxu0 0
      %2890 = vmatprep.subr.bf16.mxu0 0
      %2891 = vmatpush1.bf16.msra.mxu0 0
      %2892 = vmatprep.subr.bf16.mxu0 0
      %2893 = vmatpush1.bf16.msra.mxu0 0
      %2894 = vmatprep.subr.bf16.mxu0 0
      %2895 = vmatpush1.bf16.msra.mxu0 0
      %2896 = vmatprep.subr.bf16.mxu0 0
      %2897 = vmatpush1.bf16.msra.mxu0 0
      %2898 = vmatprep.subr.bf16.mxu0 0
      %2899 = vmatpush1.bf16.msra.mxu0 0
      %2900 = vmatprep.mubr.bf16.mxu0 0
      %2901 = vmatmul.mubr.bf16.gmra.mrb[0].mxu0 %v1532
      %v2902 = vpop.f32.mrb[0].mxu0
      %v2903 = vadd.f32 0.0, %v2902
      %v2904 = vpop.f32.mrb[0].mxu0
      %v2905 = vpop.f32.mrb[0].mxu0
      %v2906 = vadd.f32 0.0, %v2905
      %v2907 = vpop.f32.mrb[0].mxu0
      %2908 = vmatprep.mubr.bf16.mxu0 0
      %2909 = vmatmul.mubr.bf16.gmra.mrb[0].mxu0 %v1535
      %v2910 = vpop.f32.mrb[0].mxu0
      %v2911 = vadd.f32 0.0, %v2910
      %v2912 = vpop.f32.mrb[0].mxu0
      %v2913 = vpop.f32.mrb[0].mxu0
      %v2914 = vadd.f32 0.0, %v2913
      %v2915 = vpop.f32.mrb[0].mxu0
      %2916 = vmatprep.mubr.bf16.mxu0 0
      %2917 = vmatmul.mubr.bf16.gmra.mrb[0].mxu0 %v1538
      %v2918 = vpop.f32.mrb[0].mxu0
      %v2919 = vadd.f32 0.0, %v2918
      %v2920 = vpop.f32.mrb[0].mxu0
      %v2921 = vpop.f32.mrb[0].mxu0
      %v2922 = vadd.f32 0.0, %v2921
      %v2923 = vpop.f32.mrb[0].mxu0
      %2924 = vmatprep.mubr.bf16.mxu0 0
      %2925 = vmatmul.mubr.bf16.gmra.mrb[0].mxu0 %v1541
      %v2926 = vpop.f32.mrb[0].mxu0
      %v2927 = vadd.f32 0.0, %v2926
      %v2928 = vpop.f32.mrb[0].mxu0
      %v2929 = vpop.f32.mrb[0].mxu0
      %v2930 = vadd.f32 0.0, %v2929
      %v2931 = vpop.f32.mrb[0].mxu0
      %2932 = vmatprep.mubr.bf16.mxu0 0
      %2933 = vmatmul.mubr.bf16.gmra.mrb[0].mxu0 %v1544
      %v2934 = vpop.f32.mrb[0].mxu0
      %v2935 = vadd.f32 0.0, %v2934
      %v2936 = vpop.f32.mrb[0].mxu0
      %v2937 = vpop.f32.mrb[0].mxu0
      %v2938 = vadd.f32 0.0, %v2937
      %v2939 = vpop.f32.mrb[0].mxu0
      %2940 = vmatprep.mubr.bf16.mxu0 0
      %2941 = vmatmul.mubr.bf16.gmra.mrb[0].mxu0 %v1547
      %v2942 = vpop.f32.mrb[0].mxu0
      %v2943 = vadd.f32 0.0, %v2942
      %v2944 = vpop.f32.mrb[0].mxu0
      %v2945 = vpop.f32.mrb[0].mxu0
      %v2946 = vadd.f32 0.0, %v2945
      %v2947 = vpop.f32.mrb[0].mxu0
      %2948 = vmatprep.mubr.bf16.mxu0 0
      %2949 = vmatmul.mubr.bf16.gmra.mrb[0].mxu0 %v1550
      %v2950 = vpop.f32.mrb[0].mxu0
      %v2951 = vadd.f32 0.0, %v2950
      %v2952 = vpop.f32.mrb[0].mxu0
      %v2953 = vpop.f32.mrb[0].mxu0
      %v2954 = vadd.f32 0.0, %v2953
      %v2955 = vpop.f32.mrb[0].mxu0
      %2956 = vmatprep.mubr.bf16.mxu0 0
      %2957 = vmatmul.mubr.bf16.gmra.mrb[0].mxu0 %v1553
      %v2958 = vpop.f32.mrb[0].mxu0
      %v2959 = vadd.f32 0.0, %v2958
      %v2960 = vpop.f32.mrb[0].mxu0
      %v2961 = vpop.f32.mrb[0].mxu0
      %v2962 = vadd.f32 0.0, %v2961
      %v2963 = vpop.f32.mrb[0].mxu0
      %2964 = vmatprep.mubr.bf16.mxu0 0
      %2965 = vmatmul.mubr.bf16.gmra.mrb[0].mxu0 %v1556
      %v2966 = vpop.f32.mrb[0].mxu0
      %v2967 = vadd.f32 0.0, %v2966
      %v2968 = vpop.f32.mrb[0].mxu0
      %v2969 = vpop.f32.mrb[0].mxu0
      %v2970 = vadd.f32 0.0, %v2969
      %v2971 = vpop.f32.mrb[0].mxu0
      %2972 = vmatprep.mubr.bf16.mxu0 0
      %2973 = vmatmul.mubr.bf16.gmra.mrb[0].mxu0 %v1559
      %v2974 = vpop.f32.mrb[0].mxu0
      %v2975 = vadd.f32 0.0, %v2974
      %v2976 = vpop.f32.mrb[0].mxu0
      %v2977 = vpop.f32.mrb[0].mxu0
      %v2978 = vadd.f32 0.0, %v2977
      %v2979 = vpop.f32.mrb[0].mxu0
      %2980 = vmatprep.mubr.bf16.mxu0 0
      %2981 = vmatmul.mubr.bf16.gmra.mrb[0].mxu0 %v1562
      %v2982 = vpop.f32.mrb[0].mxu0
      %v2983 = vadd.f32 0.0, %v2982
      %v2984 = vpop.f32.mrb[0].mxu0
      %v2985 = vpop.f32.mrb[0].mxu0
      %v2986 = vadd.f32 0.0, %v2985
      %v2987 = vpop.f32.mrb[0].mxu0
      %2988 = vmatprep.mubr.bf16.mxu0 0
      %2989 = vmatmul.mubr.bf16.gmra.mrb[0].mxu0 %v1565
      %v2990 = vpop.f32.mrb[0].mxu0
      %v2991 = vadd.f32 0.0, %v2990
      %v2992 = vpop.f32.mrb[0].mxu0
      %v2993 = vpop.f32.mrb[0].mxu0
      %v2994 = vadd.f32 0.0, %v2993
      %v2995 = vpop.f32.mrb[0].mxu0
      %2996 = vmatprep.mubr.bf16.mxu0 0
      %2997 = vmatmul.mubr.bf16.gmra.mrb[0].mxu0 %v1568
      %v2998 = vpop.f32.mrb[0].mxu0
      %v2999 = vadd.f32 0.0, %v2998
      %v3000 = vpop.f32.mrb[0].mxu0
      %v3001 = vpop.f32.mrb[0].mxu0
      %v3002 = vadd.f32 0.0, %v3001
      %v3003 = vpop.f32.mrb[0].mxu0
      %3004 = vmatprep.mubr.bf16.mxu0 0
      %3005 = vmatmul.mubr.bf16.gmra.mrb[0].mxu0 %v1571
      %v3006 = vpop.f32.mrb[0].mxu0
      %v3007 = vadd.f32 0.0, %v3006
      %v3008 = vpop.f32.mrb[0].mxu0
      %v3009 = vpop.f32.mrb[0].mxu0
      %v3010 = vadd.f32 0.0, %v3009
      %v3011 = vpop.f32.mrb[0].mxu0
      %3012 = vmatprep.mubr.bf16.mxu0 0
      %3013 = vmatmul.mubr.bf16.gmra.mrb[0].mxu0 %v2217
      %v3014 = vpop.f32.mrb[0].mxu0
      %v3015 = vadd.f32 0.0, %v3014
      %v3016 = vpop.f32.mrb[0].mxu0
      %v3017 = vpop.f32.mrb[0].mxu0
      %v3018 = vadd.f32 0.0, %v3017
      %v3019 = vpop.f32.mrb[0].mxu0
      %3020 = vmatprep.mubr.bf16.mxu0 0
      %3021 = vmatmul.mubr.bf16.gmra.mrb[0].mxu0 %v2863
      %v3022 = vpop.f32.mrb[0].mxu0
      %v3023 = vadd.f32 0.0, %v3022
      %v3024 = vpop.f32.mrb[0].mxu0
      %v3025 = vpop.f32.mrb[0].mxu0
      %v3026 = vadd.f32 0.0, %v3025
      %v3027 = vpop.f32.mrb[0].mxu0
      %3028 = vdwg.mxu0
      %v3029 = vadd.f32 %v2817, %v2903
      %v3030 = vadd.f32 %v2818, %v2906
      %v3031 = vadd.f32 %v2819, %v2911
      %v3032 = vadd.f32 %v2820, %v2914
      %v3033 = vadd.f32 %v2821, %v2919
      %v3034 = vadd.f32 %v2822, %v2922
      %v3035 = vadd.f32 %v2823, %v2927
      %v3036 = vadd.f32 %v2824, %v2930
      %v3037 = vadd.f32 %v2825, %v2935
      %v3038 = vadd.f32 %v2826, %v2938
      %v3039 = vadd.f32 %v2827, %v2943
      %v3040 = vadd.f32 %v2828, %v2946
      %v3041 = vadd.f32 %v2829, %v2951
      %v3042 = vadd.f32 %v2830, %v2954
      %v3043 = vadd.f32 %v2831, %v2959
      %v3044 = vadd.f32 %v2832, %v2962
      %v3045 = vadd.f32 %v2833, %v2967
      %v3046 = vadd.f32 %v2834, %v2970
      %v3047 = vadd.f32 %v2835, %v2975
      %v3048 = vadd.f32 %v2836, %v2978
      %v3049 = vadd.f32 %v2837, %v2983
      %v3050 = vadd.f32 %v2838, %v2986
      %v3051 = vadd.f32 %v2839, %v2991
      %v3052 = vadd.f32 %v2840, %v2994
      %v3053 = vadd.f32 %v2841, %v2999
      %v3054 = vadd.f32 %v2842, %v3002
      %v3055 = vadd.f32 %v2843, %v3007
      %v3056 = vadd.f32 %v2844, %v3010
      %v3057 = vadd.f32 %v2845, %v3015
      %v3058 = vadd.f32 %v2846, %v3018
      %v3059 = vadd.f32 %v2847, %v3023
      %v3060 = vadd.f32 %v2848, %v3026
      %v3061 = vld [vmem:[%s3] sm:$0x1]
      %v3063 = vlaneseq
      %v3064 = vshrl.u32 %v3063, 7
      %v3065 = vsub.s32 0, %v3064
      %v3066 = vrot.slane %v3061, %v3065
      %v3068 = vmul.f32 %v3029, %v3066
      %v3069 = vmul.f32 %v3030, %v3066
      %v3070 = vmul.f32 %v3031, %v3066
      %v3071 = vmul.f32 %v3032, %v3066
      %v3072 = vmul.f32 %v3033, %v3066
      %v3073 = vmul.f32 %v3034, %v3066
      %v3074 = vmul.f32 %v3035, %v3066
      %v3075 = vmul.f32 %v3036, %v3066
      %v3076 = vmul.f32 %v3037, %v3066
      %v3077 = vmul.f32 %v3038, %v3066
      %v3078 = vmul.f32 %v3039, %v3066
      %v3079 = vmul.f32 %v3040, %v3066
      %v3080 = vmul.f32 %v3041, %v3066
      %v3081 = vmul.f32 %v3042, %v3066
      %v3082 = vmul.f32 %v3043, %v3066
      %v3083 = vmul.f32 %v3044, %v3066
      %v3084 = vmul.f32 %v3045, %v3066
      %v3085 = vmul.f32 %v3046, %v3066
      %v3086 = vmul.f32 %v3047, %v3066
      %v3087 = vmul.f32 %v3048, %v3066
      %v3088 = vmul.f32 %v3049, %v3066
      %v3089 = vmul.f32 %v3050, %v3066
      %v3090 = vmul.f32 %v3051, %v3066
      %v3091 = vmul.f32 %v3052, %v3066
      %v3092 = vmul.f32 %v3053, %v3066
      %v3093 = vmul.f32 %v3054, %v3066
      %v3094 = vmul.f32 %v3055, %v3066
      %v3095 = vmul.f32 %v3056, %v3066
      %v3096 = vmul.f32 %v3057, %v3066
      %v3097 = vmul.f32 %v3058, %v3066
      %v3098 = vmul.f32 %v3059, %v3066
      %v3099 = vmul.f32 %v3060, %v3066
      %v3100 = vld [vmem:[%s4] sm:$0x1]
      %v3102 = vlaneseq
      %v3103 = vshrl.u32 %v3102, 7
      %v3104 = vsub.s32 0, %v3103
      %v3105 = vrot.slane %v3100, %v3104
      %v3107 = vadd.f32 %v3068, %v3105
      %v3108 = vadd.f32 %v3069, %v3105
      %v3109 = vadd.f32 %v3070, %v3105
      %v3110 = vadd.f32 %v3071, %v3105
      %v3111 = vadd.f32 %v3072, %v3105
      %v3112 = vadd.f32 %v3073, %v3105
      %v3113 = vadd.f32 %v3074, %v3105
      %v3114 = vadd.f32 %v3075, %v3105
      %v3115 = vadd.f32 %v3076, %v3105
      %v3116 = vadd.f32 %v3077, %v3105
      %v3117 = vadd.f32 %v3078, %v3105
      %v3118 = vadd.f32 %v3079, %v3105
      %v3119 = vadd.f32 %v3080, %v3105
      %v3120 = vadd.f32 %v3081, %v3105
      %v3121 = vadd.f32 %v3082, %v3105
      %v3122 = vadd.f32 %v3083, %v3105
      %v3123 = vadd.f32 %v3084, %v3105
      %v3124 = vadd.f32 %v3085, %v3105
      %v3125 = vadd.f32 %v3086, %v3105
      %v3126 = vadd.f32 %v3087, %v3105
      %v3127 = vadd.f32 %v3088, %v3105
      %v3128 = vadd.f32 %v3089, %v3105
      %v3129 = vadd.f32 %v3090, %v3105
      %v3130 = vadd.f32 %v3091, %v3105
      %v3131 = vadd.f32 %v3092, %v3105
      %v3132 = vadd.f32 %v3093, %v3105
      %v3133 = vadd.f32 %v3094, %v3105
      %v3134 = vadd.f32 %v3095, %v3105
      %v3135 = vadd.f32 %v3096, %v3105
      %v3136 = vadd.f32 %v3097, %v3105
      %v3137 = vadd.f32 %v3098, %v3105
      %v3138 = vadd.f32 %v3099, %v3105
      %v3139 = vmax.f32 %v3107, 0.0
      %v3140 = vmax.f32 %v3108, 0.0
      %v3141 = vmax.f32 %v3109, 0.0
      %v3142 = vmax.f32 %v3110, 0.0
      %v3143 = vmax.f32 %v3111, 0.0
      %v3144 = vmax.f32 %v3112, 0.0
      %v3145 = vmax.f32 %v3113, 0.0
      %v3146 = vmax.f32 %v3114, 0.0
      %v3147 = vmax.f32 %v3115, 0.0
      %v3148 = vmax.f32 %v3116, 0.0
      %v3149 = vmax.f32 %v3117, 0.0
      %v3150 = vmax.f32 %v3118, 0.0
      %v3151 = vmax.f32 %v3119, 0.0
      %v3152 = vmax.f32 %v3120, 0.0
      %v3153 = vmax.f32 %v3121, 0.0
      %v3154 = vmax.f32 %v3122, 0.0
      %v3155 = vmax.f32 %v3123, 0.0
      %v3156 = vmax.f32 %v3124, 0.0
      %v3157 = vmax.f32 %v3125, 0.0
      %v3158 = vmax.f32 %v3126, 0.0
      %v3159 = vmax.f32 %v3127, 0.0
      %v3160 = vmax.f32 %v3128, 0.0
      %v3161 = vmax.f32 %v3129, 0.0
      %v3162 = vmax.f32 %v3130, 0.0
      %v3163 = vmax.f32 %v3131, 0.0
      %v3164 = vmax.f32 %v3132, 0.0
      %v3165 = vmax.f32 %v3133, 0.0
      %v3166 = vmax.f32 %v3134, 0.0
      %v3167 = vmax.f32 %v3135, 0.0
      %v3168 = vmax.f32 %v3136, 0.0
      %v3169 = vmax.f32 %v3137, 0.0
      %v3170 = vmax.f32 %v3138, 0.0
      %v3171 = vpack.c.bf16 %v3140, %v3139
      %v3172 = vpack.c.bf16 %v3142, %v3141
      %v3173 = vpack.c.bf16 %v3144, %v3143
      %v3174 = vpack.c.bf16 %v3146, %v3145
      %v3175 = vpack.c.bf16 %v3148, %v3147
      %v3176 = vpack.c.bf16 %v3150, %v3149
      %v3177 = vpack.c.bf16 %v3152, %v3151
      %v3178 = vpack.c.bf16 %v3154, %v3153
      %v3179 = vpack.c.bf16 %v3156, %v3155
      %v3180 = vpack.c.bf16 %v3158, %v3157
      %v3181 = vpack.c.bf16 %v3160, %v3159
      %v3182 = vpack.c.bf16 %v3162, %v3161
      %v3183 = vpack.c.bf16 %v3164, %v3163
      %v3184 = vpack.c.bf16 %v3166, %v3165
      %v3185 = vpack.c.bf16 %v3168, %v3167
      %v3186 = vpack.c.bf16 %v3170, %v3169
      %v3203 = vunpack.c.l.b16 %v3171
      %v3204 = vunpack.c.h.b16 %v3171
      %v3205 = vunpack.c.l.b16 %v3172
      %v3206 = vunpack.c.h.b16 %v3172
      %v3207 = vunpack.c.l.b16 %v3173
      %v3208 = vunpack.c.h.b16 %v3173
      %v3209 = vunpack.c.l.b16 %v3174
      %v3210 = vunpack.c.h.b16 %v3174
      %v3211 = vunpack.c.l.b16 %v3175
      %v3212 = vunpack.c.h.b16 %v3175
      %v3213 = vunpack.c.l.b16 %v3176
      %v3214 = vunpack.c.h.b16 %v3176
      %v3215 = vunpack.c.l.b16 %v3177
      %v3216 = vunpack.c.h.b16 %v3177
      %v3217 = vunpack.c.l.b16 %v3178
      %v3218 = vunpack.c.h.b16 %v3178
      %v3219 = vunpack.c.l.b16 %v3179
      %v3220 = vunpack.c.h.b16 %v3179
      %v3221 = vunpack.c.l.b16 %v3180
      %v3222 = vunpack.c.h.b16 %v3180
      %v3223 = vunpack.c.l.b16 %v3181
      %v3224 = vunpack.c.h.b16 %v3181
      %v3225 = vunpack.c.l.b16 %v3182
      %v3226 = vunpack.c.h.b16 %v3182
      %v3227 = vunpack.c.l.b16 %v3183
      %v3228 = vunpack.c.h.b16 %v3183
      %v3229 = vunpack.c.l.b16 %v3184
      %v3230 = vunpack.c.h.b16 %v3184
      %v3231 = vunpack.c.l.b16 %v3185
      %v3232 = vunpack.c.h.b16 %v3185
      %v3233 = vunpack.c.l.b16 %v3186
      %v3234 = vunpack.c.h.b16 %v3186
      %v3235 = vpack.c.b16 %v3203, %v3203
      %v3236 = vpack.c.b16 %v3204, %v3204
      %v3237 = vpack.c.b16 %v3205, %v3205
      %v3238 = vpack.c.b16 %v3206, %v3206
      %v3239 = vpack.c.b16 %v3207, %v3207
      %v3240 = vpack.c.b16 %v3208, %v3208
      %v3241 = vpack.c.b16 %v3209, %v3209
      %v3242 = vpack.c.b16 %v3210, %v3210
      %v3243 = vpack.c.b16 %v3211, %v3211
      %v3244 = vpack.c.b16 %v3212, %v3212
      %v3245 = vpack.c.b16 %v3213, %v3213
      %v3246 = vpack.c.b16 %v3214, %v3214
      %v3247 = vpack.c.b16 %v3215, %v3215
      %v3248 = vpack.c.b16 %v3216, %v3216
      %v3249 = vpack.c.b16 %v3217, %v3217
      %v3250 = vpack.c.b16 %v3218, %v3218
      %v3251 = vpack.c.b16 %v3219, %v3219
      %v3252 = vpack.c.b16 %v3220, %v3220
      %v3253 = vpack.c.b16 %v3221, %v3221
      %v3254 = vpack.c.b16 %v3222, %v3222
      %v3255 = vpack.c.b16 %v3223, %v3223
      %v3256 = vpack.c.b16 %v3224, %v3224
      %v3257 = vpack.c.b16 %v3225, %v3225
      %v3258 = vpack.c.b16 %v3226, %v3226
      %v3259 = vpack.c.b16 %v3227, %v3227
      %v3260 = vpack.c.b16 %v3228, %v3228
      %v3261 = vpack.c.b16 %v3229, %v3229
      %v3262 = vpack.c.b16 %v3230, %v3230
      %v3263 = vpack.c.b16 %v3231, %v3231
      %v3264 = vpack.c.b16 %v3232, %v3232
      %v3265 = vpack.c.b16 %v3233, %v3233
      %v3266 = vpack.c.b16 %v3234, %v3234
      %3299 = vst [vmem:[%s343] sm:$0xf] %v3235
      %3300 = vst [vmem:[%s343 + $0x4] sm:$0xf] %v3236
      %3301 = vst [vmem:[%s343 + $0x8] sm:$0xf] %v3237
      %3302 = vst [vmem:[%s343 + $0xc] sm:$0xf] %v3238
      %3303 = vst [vmem:[%s343 + $0x10] sm:$0xf] %v3239
      %3304 = vst [vmem:[%s343 + $0x14] sm:$0xf] %v3240
      %3305 = vst [vmem:[%s343 + $0x18] sm:$0xf] %v3241
      %3306 = vst [vmem:[%s343 + $0x1c] sm:$0xf] %v3242
      %3307 = vst [vmem:[%s343 + $0x20] sm:$0xf] %v3243
      %3308 = vst [vmem:[%s343 + $0x24] sm:$0xf] %v3244
      %3309 = vst [vmem:[%s343 + $0x28] sm:$0xf] %v3245
      %3310 = vst [vmem:[%s343 + $0x2c] sm:$0xf] %v3246
      %3311 = vst [vmem:[%s343 + $0x30] sm:$0xf] %v3247
      %3312 = vst [vmem:[%s343 + $0x34] sm:$0xf] %v3248
      %3313 = vst [vmem:[%s343 + $0x38] sm:$0xf] %v3249
      %3314 = vst [vmem:[%s343 + $0x3c] sm:$0xf] %v3250
      %3315 = vst [vmem:[%s343 + $0x40] sm:$0xf] %v3251
      %3316 = vst [vmem:[%s343 + $0x44] sm:$0xf] %v3252
      %3317 = vst [vmem:[%s343 + $0x48] sm:$0xf] %v3253
      %3318 = vst [vmem:[%s343 + $0x4c] sm:$0xf] %v3254
      %3319 = vst [vmem:[%s343 + $0x50] sm:$0xf] %v3255
      %3320 = vst [vmem:[%s343 + $0x54] sm:$0xf] %v3256
      %3321 = vst [vmem:[%s343 + $0x58] sm:$0xf] %v3257
      %3322 = vst [vmem:[%s343 + $0x5c] sm:$0xf] %v3258
      %3323 = vst [vmem:[%s343 + $0x60] sm:$0xf] %v3259
      %3324 = vst [vmem:[%s343 + $0x64] sm:$0xf] %v3260
      %3325 = vst [vmem:[%s343 + $0x68] sm:$0xf] %v3261
      %3326 = vst [vmem:[%s343 + $0x6c] sm:$0xf] %v3262
      %3327 = vst [vmem:[%s343 + $0x70] sm:$0xf] %v3263
      %3328 = vst [vmem:[%s343 + $0x74] sm:$0xf] %v3264
      %3329 = vst [vmem:[%s343 + $0x78] sm:$0xf] %v3265
      %3330 = vst [vmem:[%s343 + $0x7c] sm:$0xf] %v3266
      %s3331 = smul.u32 32, %s21
      %p3332 = scmp.lt.s32.totalorder %s20, 1
      %s3333 = scalar_select %p3332, %s20, 1
      %p3334 = scmp.lt.s32.totalorder %s3331, 31
      %s3335 = scalar_select %p3334, %s3331, 31
      %s3336 = smul.addr %s3333, 32
      %s3337 = sadd.s32 %s3335, %s3336
      %s3338 = smul.addr %s3337, 4
      %s3339 = scalar_lea.vmem %s5, %s3338
      // Predicated region
      $region41: #{convlayer_forward.3} parent=39 // pred_check
        %p3340 = pneg %p171
      $region42: #{convlayer_forward.3} parent=39 // pred_check_branch
        %3342 = sbr.rel (%p3340) target = $region44
      $region43: #{convlayer_forward.3} parent=39 // pred_region
        %s3343 = smul.u32 32, %s21
      $region44: #{convlayer_forward.3} parent=39 // pred_fallthru
        _
    $region40: #{convlayer_forward.3} parent=5 // pred_fallthru
      _
    %p3344 = scmp.le.s32.totalorder 2, %s11
    // Predicated region
    $region45: #{convlayer_forward.3} parent=5 // pred_check
      %p3345 = pneg %p3344
    $region46: #{convlayer_forward.3} parent=5 // pred_check_branch
      %3347 = sbr.rel (%p3345) target = $region48
    $region47: #{convlayer_forward.3} parent=5 // pred_region
      %s3348 = ssub.s32 %s11, 2
      // Predicated region
      $region49: #{convlayer_forward.3} parent=47 // pred_check
        %p3349 = pneg %p177
      $region50: #{convlayer_forward.3} parent=47 // pred_check_branch
        %3351 = sbr.rel (%p3349) target = $region52
      $region51: #{convlayer_forward.3} parent=47 // pred_region
        %s3352 = smul.u32 32, %s23
        %p3353 = scmp.lt.s32.totalorder %s22, 1
        %s3354 = scalar_select %p3353, %s22, 1
        %p3355 = scmp.lt.s32.totalorder %s3352, 31
        %s3356 = scalar_select %p3355, %s3352, 31
        %s3357 = smul.addr %s3354, 32
        %s3358 = sadd.s32 %s3356, %s3357
        %s3359 = smul.addr %s3358, 4
        %s3360 = scalar_lea.vmem %s5, %s3359
      $region52: #{convlayer_forward.3} parent=47 // pred_fallthru
        _
    $region48: #{convlayer_forward.3} parent=5 // pred_fallthru
      _
  $region6: #{convlayer_forward.3} parent=0 // loop_footer
    %s15 = sadd.s32 1, %s11
  $region7: #{convlayer_forward.3} parent=0 // loop_footer_branch
    %10 = sbr.rel target = $region3
  $region8: #{convlayer_forward.3} parent=0 // loop_exit
    _

</llo_original>
